<compile_context>
chip_gen: v6e
topology: v6e:2x2x1
jax: 0.10.0
libtpu: 0.0.40
codegen_flags: <defaults>
</compile_context>

<pallas_src>
import functools

import jax
import jax.numpy as jnp
from jax.experimental import pallas as pl
from jax.experimental.pallas import tpu as pltpu

D_IN = 48 * 48      # 2304
D_H = 512
D_OUT = 7
D_OUT_PAD = 128     # lane-dense padded output width


def _round_up(x, m):
    return ((x + m - 1) // m) * m


def mlp_kernel(x_ref, w1_ref, b1_ref, w2_ref, b2_ref, w3_ref, b3_ref, o_ref):
    # x, w* are bf16; biases and accumulation are f32.
    # Linear(2304 -> 512) + ReLU
    h1 = jnp.dot(x_ref[...], w1_ref[...], preferred_element_type=jnp.float32)
    h1 = jnp.maximum(h1 + b1_ref[...], 0.0)
    # Linear(512 -> 512) + ReLU
    h2 = jnp.dot(h1.astype(w2_ref.dtype), w2_ref[...],
                 preferred_element_type=jnp.float32)
    h2 = jnp.maximum(h2 + b2_ref[...], 0.0)
    # Linear(512 -> 128 padded; real columns are the first 7)
    h3 = jnp.dot(h2.astype(w3_ref.dtype), w3_ref[...],
                 preferred_element_type=jnp.float32)
    o_ref[...] = (h3 + b3_ref[...]).astype(o_ref.dtype)


@functools.partial(jax.jit, static_argnames=("tb",))
def neural_network_forward(x, params, *, tb=256):
    """x: (B, 1, 48, 48) or (B, 48, 48) float32. Returns (B, 7) f32 logits."""
    B = x.shape[0]
    x_flat = x.reshape(B, -1).astype(jnp.bfloat16)   # nn.Flatten() + bf16 feed

    w1, b1, w2, b2, w3, b3 = params  # weights bf16 (in, out); biases f32 (1, out)

    # Batch tile: multiple of 8 (sublane), capped at `tb`; pad B up to a tile multiple.
    TB = min(tb, _round_up(B, 8))
    Bp = _round_up(B, TB)
    if Bp != B:
        x_flat = jnp.pad(x_flat, ((0, Bp - B), (0, 0)))
    grid = (Bp // TB,)

    # Weights/biases stay VMEM-resident across batch tiles.
    resident = lambda shape: pl.BlockSpec(shape, lambda i: (0, 0))

    weight_bytes = (w1.size + w2.size + w3.size) * 2 + (b1.size + b2.size + b3.size) * 4
    cost = pl.CostEstimate(
        flops=2 * Bp * (D_IN * D_H + D_H * D_H + D_H * D_OUT_PAD),
        transcendentals=0,
        bytes_accessed=weight_bytes + x_flat.size * 2 + Bp * D_OUT_PAD * 4,
    )

    out = pl.pallas_call(
        mlp_kernel,
        out_shape=jax.ShapeDtypeStruct((Bp, D_OUT_PAD), jnp.float32),
        grid=grid,
        in_specs=[
            pl.BlockSpec((TB, D_IN), lambda i: (i, 0)),   # batch-tiled input
            resident(w1.shape), resident(b1.shape),
            resident(w2.shape), resident(b2.shape),
            resident(w3.shape), resident(b3.shape),
        ],
        out_specs=pl.BlockSpec((TB, D_OUT_PAD), lambda i: (i, 0)),
        compiler_params=pltpu.CompilerParams(
            dimension_semantics=("parallel",),
        ),
        cost_estimate=cost,
    )(x_flat, w1, b1, w2, b2, w3, b3)

    return out[:B, :D_OUT]


def init_params(key):
    """PyTorch-style (Kaiming-uniform-ish) init. Weights stored (in, out) in bf16;
    biases in f32. Final layer padded to 128 output lanes with zeros."""
    def linear(key, fan_in, fan_out, pad_out=None):
        k_w, k_b = jax.random.split(key)
        bound = 1.0 / jnp.sqrt(fan_in)
        w = jax.random.uniform(k_w, (fan_in, fan_out), jnp.float32, -bound, bound)
        b = jax.random.uniform(k_b, (1, fan_out), jnp.float32, -bound, bound)
        if pad_out is not None and pad_out > fan_out:
            w = jnp.pad(w, ((0, 0), (0, pad_out - fan_out)))
            b = jnp.pad(b, ((0, 0), (0, pad_out - fan_out)))
        return w.astype(jnp.bfloat16), b.astype(jnp.float32)

    k1, k2, k3 = jax.random.split(key, 3)
    w1, b1 = linear(k1, D_IN, D_H)
    w2, b2 = linear(k2, D_H, D_H)
    w3, b3 = linear(k3, D_H, D_OUT, pad_out=D_OUT_PAD)
    return (w1, b1, w2, b2, w3, b3)


def reference_forward(x, params):
    """Pure-JAX reference using the exact same (bf16) quantized operands."""
    w1, b1, w2, b2, w3, b3 = params
    xf = x.reshape(x.shape[0], -1).astype(jnp.bfloat16)
    h = jnp.dot(xf, w1, preferred_element_type=jnp.float32) + b1
    h = jnp.maximum(h, 0.0)
    h = jnp.dot(h.astype(jnp.bfloat16), w2, preferred_element_type=jnp.float32) + b2
    h = jnp.maximum(h, 0.0)
    h = jnp.dot(h.astype(jnp.bfloat16), w3, preferred_element_type=jnp.float32) + b3
    return h[:, :D_OUT]


if __name__ == "__main__":
    key = jax.random.PRNGKey(0)
    k_params, k_x = jax.random.split(key)

    params = init_params(k_params)
    # Small batch of 48x48 single-channel "images" (NCHW), matching the module spec.
    x = jax.random.normal(k_x, (8, 1, 48, 48), dtype=jnp.float32)

    logits = neural_network_forward(x, params)
    logits = jax.block_until_ready(logits)

    ref = reference_forward(x, params)
    assert logits.shape == (8, 7)
    assert jnp.allclose(logits, ref, atol=2e-3, rtol=2e-3), (
        jnp.max(jnp.abs(logits - ref)))

    print("KERNEL_OK")
</pallas_src>

<mosaic_0001>
module attributes {stable_mosaic.version = 11 : i64} {
  func.func @mlp_kernel(%arg0: i32, %arg1: memref<8x2304xbf16, #tpu.memory_space<vmem>>, %arg2: memref<2304x512xbf16, #tpu.memory_space<vmem>>, %arg3: memref<1x512xf32, #tpu.memory_space<vmem>>, %arg4: memref<512x512xbf16, #tpu.memory_space<vmem>>, %arg5: memref<1x512xf32, #tpu.memory_space<vmem>>, %arg6: memref<512x128xbf16, #tpu.memory_space<vmem>>, %arg7: memref<1x128xf32, #tpu.memory_space<vmem>>, %arg8: memref<8x128xf32, #tpu.memory_space<vmem>>) attributes {dimension_semantics = [#tpu.dimension_semantics<parallel>], iteration_bounds = array<i64: 1>, scalar_prefetch = 0 : i64, scratch_operands = 0 : i64, tpu.core_type = #tpu.core_type<tc>, window_params = [{transform_indices = @transform_0, window_bounds = array<i64: 8, 2304>}, {pipeline_mode = #tpu.pipeline_mode<synchronous>, transform_indices = @transform_1, window_bounds = array<i64: 2304, 512>}, {pipeline_mode = #tpu.pipeline_mode<synchronous>, transform_indices = @transform_2, window_bounds = array<i64: 1, 512>}, {pipeline_mode = #tpu.pipeline_mode<synchronous>, transform_indices = @transform_3, window_bounds = array<i64: 512, 512>}, {pipeline_mode = #tpu.pipeline_mode<synchronous>, transform_indices = @transform_4, window_bounds = array<i64: 1, 512>}, {pipeline_mode = #tpu.pipeline_mode<synchronous>, transform_indices = @transform_5, window_bounds = array<i64: 512, 128>}, {pipeline_mode = #tpu.pipeline_mode<synchronous>, transform_indices = @transform_6, window_bounds = array<i64: 1, 128>}, {transform_indices = @transform_7, window_bounds = array<i64: 8, 128>}]} {
    %c0 = arith.constant 0 : index
    %c0_0 = arith.constant 0 : index
    %0 = vector.load %arg1[%c0, %c0_0] : memref<8x2304xbf16, #tpu.memory_space<vmem>>, vector<8x2304xbf16>
    %c0_1 = arith.constant 0 : index
    %c0_2 = arith.constant 0 : index
    %1 = vector.load %arg2[%c0_1, %c0_2] : memref<2304x512xbf16, #tpu.memory_space<vmem>>, vector<2304x512xbf16>
    %cst = arith.constant dense<0.000000e+00> : vector<8x512xf32>
    %2 = tpu.matmul %0, %1, %cst {dimension_numbers = #tpu.dot_dimension_numbers<[1], [0], [0], [1], [0, 0, 1, 1], [], []>} : vector<8x2304xbf16>, vector<2304x512xbf16>, vector<8x512xf32> -> vector<8x512xf32>
    %c0_3 = arith.constant 0 : index
    %c0_4 = arith.constant 0 : index
    %3 = vector.load %arg3[%c0_3, %c0_4] : memref<1x512xf32, #tpu.memory_space<vmem>>, vector<1x512xf32>
    %4 = vector.broadcast %3 : vector<1x512xf32> to vector<8x512xf32>
    %5 = arith.addf %2, %4 : vector<8x512xf32>
    %cst_5 = arith.constant 0.000000e+00 : f32
    %6 = vector.broadcast %cst_5 : f32 to vector<8x512xf32>
    %7 = arith.maximumf %5, %6 : vector<8x512xf32>
    %8 = arith.truncf %7 : vector<8x512xf32> to vector<8x512xbf16>
    %c0_6 = arith.constant 0 : index
    %c0_7 = arith.constant 0 : index
    %9 = vector.load %arg4[%c0_6, %c0_7] : memref<512x512xbf16, #tpu.memory_space<vmem>>, vector<512x512xbf16>
    %cst_8 = arith.constant dense<0.000000e+00> : vector<8x512xf32>
    %10 = tpu.matmul %8, %9, %cst_8 {dimension_numbers = #tpu.dot_dimension_numbers<[1], [0], [0], [1], [0, 0, 1, 1], [], []>} : vector<8x512xbf16>, vector<512x512xbf16>, vector<8x512xf32> -> vector<8x512xf32>
    %c0_9 = arith.constant 0 : index
    %c0_10 = arith.constant 0 : index
    %11 = vector.load %arg5[%c0_9, %c0_10] : memref<1x512xf32, #tpu.memory_space<vmem>>, vector<1x512xf32>
    %12 = vector.broadcast %11 : vector<1x512xf32> to vector<8x512xf32>
    %13 = arith.addf %10, %12 : vector<8x512xf32>
    %cst_11 = arith.constant 0.000000e+00 : f32
    %14 = vector.broadcast %cst_11 : f32 to vector<8x512xf32>
    %15 = arith.maximumf %13, %14 : vector<8x512xf32>
    %16 = arith.truncf %15 : vector<8x512xf32> to vector<8x512xbf16>
    %c0_12 = arith.constant 0 : index
    %c0_13 = arith.constant 0 : index
    %17 = vector.load %arg6[%c0_12, %c0_13] : memref<512x128xbf16, #tpu.memory_space<vmem>>, vector<512x128xbf16>
    %cst_14 = arith.constant dense<0.000000e+00> : vector<8x128xf32>
    %18 = tpu.matmul %16, %17, %cst_14 {dimension_numbers = #tpu.dot_dimension_numbers<[1], [0], [0], [1], [0, 0, 1, 1], [], []>} : vector<8x512xbf16>, vector<512x128xbf16>, vector<8x128xf32> -> vector<8x128xf32>
    %c0_15 = arith.constant 0 : index
    %c0_16 = arith.constant 0 : index
    %19 = vector.load %arg7[%c0_15, %c0_16] : memref<1x128xf32, #tpu.memory_space<vmem>>, vector<1x128xf32>
    %20 = vector.broadcast %19 : vector<1x128xf32> to vector<8x128xf32>
    %21 = arith.addf %18, %20 : vector<8x128xf32>
    %c0_17 = arith.constant 0 : index
    %c0_18 = arith.constant 0 : index
    %22 = vector.load %arg8[%c0_17, %c0_18] : memref<8x128xf32, #tpu.memory_space<vmem>>, vector<8x128xf32>
    tpu.vector_store %arg8[%c0_17, %c0_18], %21 {strides = array<i32>} : memref<8x128xf32, #tpu.memory_space<vmem>>, vector<8x128xf32>,
    return
  }
  func.func @transform_0(%arg0: i32) -> (i32, i32) {
    %c0_i32 = arith.constant 0 : i32
    %c0_i32_0 = arith.constant 0 : i32
    return %arg0, %c0_i32 : i32, i32
  }
  func.func @transform_1(%arg0: i32) -> (i32, i32) {
    %c0_i32 = arith.constant 0 : i32
    %c0_i32_0 = arith.constant 0 : i32
    %c0_i32_1 = arith.constant 0 : i32
    return %c0_i32, %c0_i32_0 : i32, i32
  }
  func.func @transform_2(%arg0: i32) -> (i32, i32) {
    %c0_i32 = arith.constant 0 : i32
    %c0_i32_0 = arith.constant 0 : i32
    %c0_i32_1 = arith.constant 0 : i32
    return %c0_i32, %c0_i32_0 : i32, i32
  }
  func.func @transform_3(%arg0: i32) -> (i32, i32) {
    %c0_i32 = arith.constant 0 : i32
    %c0_i32_0 = arith.constant 0 : i32
    %c0_i32_1 = arith.constant 0 : i32
    return %c0_i32, %c0_i32_0 : i32, i32
  }
  func.func @transform_4(%arg0: i32) -> (i32, i32) {
    %c0_i32 = arith.constant 0 : i32
    %c0_i32_0 = arith.constant 0 : i32
    %c0_i32_1 = arith.constant 0 : i32
    return %c0_i32, %c0_i32_0 : i32, i32
  }
  func.func @transform_5(%arg0: i32) -> (i32, i32) {
    %c0_i32 = arith.constant 0 : i32
    %c0_i32_0 = arith.constant 0 : i32
    %c0_i32_1 = arith.constant 0 : i32
    return %c0_i32, %c0_i32_0 : i32, i32
  }
  func.func @transform_6(%arg0: i32) -> (i32, i32) {
    %c0_i32 = arith.constant 0 : i32
    %c0_i32_0 = arith.constant 0 : i32
    %c0_i32_1 = arith.constant 0 : i32
    return %c0_i32, %c0_i32_0 : i32, i32
  }
  func.func @transform_7(%arg0: i32) -> (i32, i32) {
    %c0_i32 = arith.constant 0 : i32
    %c0_i32_0 = arith.constant 0 : i32
    return %arg0, %c0_i32 : i32, i32
  }
}

</mosaic_0001>

<llo_original>
// kernel: neural_network_forward.1
$region0: #{neural_network_forward.1}
  #allocation0 [shape = 'u32[]', space=smem, size = 0x4, offset = 0x4, fixed_abs, tag = 'smem constant byte address 0x4 - core index']
  #allocation1 [shape = 'u32[144,128]{1,0:T(1,128)}', space=vmem, size = 0x12000, scoped, tag = 'internal scratch']
  %s0 = inlined_call_operand.vmem [shape: bf16[8,2304], index: 0, kind: input, shape index: {}]
  %s1 = inlined_call_operand.hbm [shape: bf16[2304,512], index: 1, kind: input, shape index: {}]
  %s2 = inlined_call_operand.hbm [shape: f32[1,512], index: 2, kind: input, shape index: {}]
  %s3 = inlined_call_operand.hbm [shape: bf16[512,512], index: 3, kind: input, shape index: {}]
  %s4 = inlined_call_operand.hbm [shape: f32[1,512], index: 4, kind: input, shape index: {}]
  %s5 = inlined_call_operand.hbm [shape: bf16[512,128], index: 5, kind: input, shape index: {}]
  %s6 = inlined_call_operand.hbm [shape: f32[1,128], index: 6, kind: input, shape index: {}]
  %s7 = inlined_call_operand.hbm [shape: f32[8,128], index: 7, kind: output, shape index: {}]
  %s8 = sld [smem:[#allocation0]]
  $region62: #{neural_network_forward.1} parent=0
    _
  %s10 = ssub.s32 1, %s8
  %s11 = scalar_select 0, %s10, %s8
  $region1: #{neural_network_forward.1} parent=0
    #allocation2 [shape = 'u8[2359296]{0}', space=vmem, size = 0x240000, scoped, tag = 'input window, operand 1, single buffered']
    #allocation3 [shape = 's32[1]{0}', space=sflag, size = 0x4, scoped, tag = 'scoped memory for neural_network_forward.1']
    #allocation4 [shape = 's32[1]{0}', space=sflag, size = 0x4, scoped, tag = 'scoped memory for neural_network_forward.1']
    #allocation5 [shape = 'u8[2048]{0}', space=vmem, size = 0x800, scoped, tag = 'input window, operand 2, single buffered']
    #allocation6 [shape = 's32[1]{0}', space=sflag, size = 0x4, scoped, tag = 'scoped memory for neural_network_forward.1']
    #allocation7 [shape = 'u8[524288]{0}', space=vmem, size = 0x80000, scoped, tag = 'input window, operand 3, single buffered']
    #allocation8 [shape = 'u8[2048]{0}', space=vmem, size = 0x800, scoped, tag = 'input window, operand 4, single buffered']
    #allocation9 [shape = 's32[1]{0}', space=sflag, size = 0x4, scoped, tag = 'scoped memory for neural_network_forward.1']
    #allocation10 [shape = 'u8[131072]{0}', space=vmem, size = 0x20000, scoped, tag = 'input window, operand 5, single buffered']
    #allocation11 [shape = 'u8[512]{0}', space=vmem, size = 0x400, scoped, tag = 'input window, operand 6, single buffered']
    #allocation12 [shape = 's32[1]{0}', space=sflag, size = 0x4, scoped, tag = 'scoped memory for neural_network_forward.1']
    #allocation13 [shape = 'u8[4096]{0}', space=vmem, size = 0x1000, scoped, tag = 'output window, operand 0, single buffered']
    %12 = vsyncpa [#allocation3], 0
    %13 = vsyncpa [#allocation6], 0
    %14 = vsyncpa [#allocation9], 0
    %15 = vsyncpa [#allocation12], 0
    %16 = vsyncpa [#allocation4], 0
    // Predicated region
    $region2: #{neural_network_forward.1} parent=1 // pred_check
      _
    $region3: #{neural_network_forward.1} parent=1 // pred_check_branch
      %18 = sbr.rel (0) target = $region5
    $region4: #{neural_network_forward.1} parent=1 // pred_region
      _
    $region5: #{neural_network_forward.1} parent=1 // pred_fallthru
      _
    // Predicated region
    $region6: #{neural_network_forward.1} parent=1 // pred_check
      _
    $region7: #{neural_network_forward.1} parent=1 // pred_check_branch
      %20 = sbr.rel (0) target = $region9
    $region8: #{neural_network_forward.1} parent=1 // pred_region
      %s22 = ssub.s32 73728, 73728
      %23 = vsyncadd [#allocation3], %s22
      %s24 = sshll.u32 [#allocation2], 4
      %s25 = int_to_ptr.vmem [resolvable:$true] %s24
      %30 = dma.hbm_to_vmem [thread:$0]  %s1, 73728, %s25, [#allocation3], 256, 256, 16
    $region9: #{neural_network_forward.1} parent=1 // pred_fallthru
      _
    // Predicated region
    $region10: #{neural_network_forward.1} parent=1 // pred_check
      _
    $region11: #{neural_network_forward.1} parent=1 // pred_check_branch
      %32 = sbr.rel (0) target = $region13
    $region12: #{neural_network_forward.1} parent=1 // pred_region
      %s34 = ssub.s32 64, 64
      %35 = vsyncadd [#allocation6], %s34
      %s37 = sshll.u32 [#allocation5], 4
      %s38 = int_to_ptr.vmem [resolvable:$true] %s37
      %40 = dma.hbm_to_vmem [thread:$0]  %s2, 64, %s38, [#allocation6]
    $region13: #{neural_network_forward.1} parent=1 // pred_fallthru
      _
    // Predicated region
    $region14: #{neural_network_forward.1} parent=1 // pred_check
      _
    $region15: #{neural_network_forward.1} parent=1 // pred_check_branch
      %42 = sbr.rel (0) target = $region17
    $region16: #{neural_network_forward.1} parent=1 // pred_region
      %s44 = ssub.s32 16384, 16384
      %45 = vsyncadd [#allocation6], %s44
      %s46 = sshll.u32 [#allocation7], 4
      %s47 = int_to_ptr.vmem [resolvable:$true] %s46
      %52 = dma.hbm_to_vmem [thread:$0]  %s3, 16384, %s47, [#allocation6], 256, 256, 16
    $region17: #{neural_network_forward.1} parent=1 // pred_fallthru
      _
    // Predicated region
    $region18: #{neural_network_forward.1} parent=1 // pred_check
      _
    $region19: #{neural_network_forward.1} parent=1 // pred_check_branch
      %54 = sbr.rel (0) target = $region21
    $region20: #{neural_network_forward.1} parent=1 // pred_region
      %s56 = ssub.s32 64, 64
      %57 = vsyncadd [#allocation9], %s56
      %s59 = sshll.u32 [#allocation8], 4
      %s60 = int_to_ptr.vmem [resolvable:$true] %s59
      %62 = dma.hbm_to_vmem [thread:$0]  %s4, 64, %s60, [#allocation9]
    $region21: #{neural_network_forward.1} parent=1 // pred_fallthru
      _
    // Predicated region
    $region22: #{neural_network_forward.1} parent=1 // pred_check
      _
    $region23: #{neural_network_forward.1} parent=1 // pred_check_branch
      %64 = sbr.rel (0) target = $region25
    $region24: #{neural_network_forward.1} parent=1 // pred_region
      %s66 = ssub.s32 4096, 4096
      %67 = vsyncadd [#allocation9], %s66
      %s68 = sshll.u32 [#allocation10], 4
      %s69 = int_to_ptr.vmem [resolvable:$true] %s68
      %74 = dma.hbm_to_vmem [thread:$0]  %s5, 4096, %s69, [#allocation9], 64, 64, 4
    $region25: #{neural_network_forward.1} parent=1 // pred_fallthru
      _
    // Predicated region
    $region26: #{neural_network_forward.1} parent=1 // pred_check
      _
    $region27: #{neural_network_forward.1} parent=1 // pred_check_branch
      %76 = sbr.rel (0) target = $region29
    $region28: #{neural_network_forward.1} parent=1 // pred_region
      %s78 = ssub.s32 16, 16
      %79 = vsyncadd [#allocation12], %s78
      %s81 = sshll.u32 [#allocation11], 4
      %s82 = int_to_ptr.vmem [resolvable:$true] %s81
      %84 = dma.hbm_to_vmem [thread:$0]  %s6, 16, %s82, [#allocation12]
    $region29: #{neural_network_forward.1} parent=1 // pred_fallthru
      _
    // Predicated region
    $region30: #{neural_network_forward.1} parent=1 // pred_check
      _
    $region31: #{neural_network_forward.1} parent=1 // pred_check_branch
      %86 = sbr.rel (0) target = $region33
    $region32: #{neural_network_forward.1} parent=1 // pred_region
      %87 = dma.done [#allocation3], 73728
    $region33: #{neural_network_forward.1} parent=1 // pred_fallthru
      _
    // Predicated region
    $region34: #{neural_network_forward.1} parent=1 // pred_check
      _
    $region35: #{neural_network_forward.1} parent=1 // pred_check_branch
      %89 = sbr.rel (0) target = $region37
    $region36: #{neural_network_forward.1} parent=1 // pred_region
      %90 = dma.done [#allocation6], 64
    $region37: #{neural_network_forward.1} parent=1 // pred_fallthru
      _
    // Predicated region
    $region38: #{neural_network_forward.1} parent=1 // pred_check
      _
    $region39: #{neural_network_forward.1} parent=1 // pred_check_branch
      %92 = sbr.rel (0) target = $region41
    $region40: #{neural_network_forward.1} parent=1 // pred_region
      %93 = dma.done [#allocation6], 16384
    $region41: #{neural_network_forward.1} parent=1 // pred_fallthru
      _
    // Predicated region
    $region42: #{neural_network_forward.1} parent=1 // pred_check
      _
    $region43: #{neural_network_forward.1} parent=1 // pred_check_branch
      %95 = sbr.rel (0) target = $region45
    $region44: #{neural_network_forward.1} parent=1 // pred_region
      %96 = dma.done [#allocation9], 64
    $region45: #{neural_network_forward.1} parent=1 // pred_fallthru
      _
    // Predicated region
    $region46: #{neural_network_forward.1} parent=1 // pred_check
      _
    $region47: #{neural_network_forward.1} parent=1 // pred_check_branch
      %98 = sbr.rel (0) target = $region49
    $region48: #{neural_network_forward.1} parent=1 // pred_region
      %99 = dma.done [#allocation9], 4096
    $region49: #{neural_network_forward.1} parent=1 // pred_fallthru
      _
    // Predicated region
    $region50: #{neural_network_forward.1} parent=1 // pred_check
      _
    $region51: #{neural_network_forward.1} parent=1 // pred_check_branch
      %101 = sbr.rel (0) target = $region53
    $region52: #{neural_network_forward.1} parent=1 // pred_region
      %102 = dma.done [#allocation12], 16
    $region53: #{neural_network_forward.1} parent=1 // pred_fallthru
      _
    %v104 = vld [vmem:[%s0] sm:$0xff]
    %v105 = vld [vmem:[%s0 + $0x8] sm:$0xff]
    %v106 = vld [vmem:[%s0 + $0x10] sm:$0xff]
    %v107 = vld [vmem:[%s0 + $0x18] sm:$0xff]
    %v108 = vld [vmem:[%s0 + $0x20] sm:$0xff]
    %v109 = vld [vmem:[%s0 + $0x28] sm:$0xff]
    %v110 = vld [vmem:[%s0 + $0x30] sm:$0xff]
    %v111 = vld [vmem:[%s0 + $0x38] sm:$0xff]
    %v112 = vld [vmem:[%s0 + $0x40] sm:$0xff]
    %v113 = vld [vmem:[#allocation2] sm:$0xff]
    %v114 = vld [vmem:[#allocation2 + $0x8] sm:$0xff]
    %v115 = vld [vmem:[#allocation2 + $0x10] sm:$0xff]
    %v116 = vld [vmem:[#allocation2 + $0x18] sm:$0xff]
    %v117 = vld [vmem:[#allocation2 + $0x20] sm:$0xff]
    %v118 = vld [vmem:[#allocation2 + $0x28] sm:$0xff]
    %v119 = vld [vmem:[#allocation2 + $0x30] sm:$0xff]
    %v120 = vld [vmem:[#allocation2 + $0x38] sm:$0xff]
    %v121 = vld [vmem:[#allocation2 + $0x40] sm:$0xff]
    %v122 = vld [vmem:[#allocation2 + $0x48] sm:$0xff]
    %v123 = vld [vmem:[#allocation2 + $0x50] sm:$0xff]
    %v124 = vld [vmem:[#allocation2 + $0x58] sm:$0xff]
    %v125 = vld [vmem:[#allocation2 + $0x60] sm:$0xff]
    %v126 = vld [vmem:[#allocation2 + $0x68] sm:$0xff]
    %v127 = vld [vmem:[#allocation2 + $0x70] sm:$0xff]
    %v128 = vld [vmem:[#allocation2 + $0x78] sm:$0xff]
    %v129 = vld [vmem:[#allocation2 + $0x80] sm:$0xff]
    %v130 = vld [vmem:[#allocation2 + $0x88] sm:$0xff]
    %v131 = vld [vmem:[#allocation2 + $0x90] sm:$0xff]
    %v132 = vld [vmem:[#allocation2 + $0x98] sm:$0xff]
    %v133 = vld [vmem:[#allocation2 + $0xa0] sm:$0xff]
    %v134 = vld [vmem:[#allocation2 + $0xa8] sm:$0xff]
    %v135 = vld [vmem:[#allocation2 + $0xb0] sm:$0xff]
    %v136 = vld [vmem:[#allocation2 + $0xb8] sm:$0xff]
    %v137 = vld [vmem:[#allocation2 + $0xc0] sm:$0xff]
    %v138 = vld [vmem:[#allocation2 + $0xc8] sm:$0xff]
    %v139 = vld [vmem:[#allocation2 + $0xd0] sm:$0xff]
    %v140 = vld [vmem:[#allocation2 + $0xd8] sm:$0xff]
    %v141 = vld [vmem:[#allocation2 + $0xe0] sm:$0xff]
    %v142 = vld [vmem:[#allocation2 + $0xe8] sm:$0xff]
    %v143 = vld [vmem:[#allocation2 + $0xf0] sm:$0xff]
    %v144 = vld [vmem:[#allocation2 + $0xf8] sm:$0xff]
    %v145 = vld [vmem:[#allocation2 + $0x100] sm:$0xff]
    %v146 = vld [vmem:[#allocation2 + $0x108] sm:$0xff]
    %v147 = vld [vmem:[#allocation2 + $0x110] sm:$0xff]
    %v148 = vld [vmem:[#allocation2 + $0x118] sm:$0xff]
    %v149 = vld [vmem:[#allocation2 + $0x120] sm:$0xff]
    %v150 = vld [vmem:[#allocation2 + $0x128] sm:$0xff]
    %v151 = vld [vmem:[#allocation2 + $0x130] sm:$0xff]
    %v152 = vld [vmem:[#allocation2 + $0x138] sm:$0xff]
    %v153 = vld [vmem:[#allocation2 + $0x140] sm:$0xff]
    %v154 = vld [vmem:[#allocation2 + $0x148] sm:$0xff]
    %v155 = vld [vmem:[#allocation2 + $0x150] sm:$0xff]
    %v156 = vld [vmem:[#allocation2 + $0x158] sm:$0xff]
    %v157 = vld [vmem:[#allocation2 + $0x160] sm:$0xff]
    %v158 = vld [vmem:[#allocation2 + $0x168] sm:$0xff]
    %v159 = vld [vmem:[#allocation2 + $0x170] sm:$0xff]
    %v160 = vld [vmem:[#allocation2 + $0x178] sm:$0xff]
    %v161 = vld [vmem:[#allocation2 + $0x180] sm:$0xff]
    %v162 = vld [vmem:[#allocation2 + $0x188] sm:$0xff]
    %v163 = vld [vmem:[#allocation2 + $0x190] sm:$0xff]
    %v164 = vld [vmem:[#allocation2 + $0x198] sm:$0xff]
    %v165 = vld [vmem:[#allocation2 + $0x1a0] sm:$0xff]
    %v166 = vld [vmem:[#allocation2 + $0x1a8] sm:$0xff]
    %v167 = vld [vmem:[#allocation2 + $0x1b0] sm:$0xff]
    %v168 = vld [vmem:[#allocation2 + $0x1b8] sm:$0xff]
    %v169 = vld [vmem:[#allocation2 + $0x1c0] sm:$0xff]
    %v170 = vld [vmem:[#allocation2 + $0x1c8] sm:$0xff]
    %v171 = vld [vmem:[#allocation2 + $0x1d0] sm:$0xff]
    %v172 = vld [vmem:[#allocation2 + $0x1d8] sm:$0xff]
    %v173 = vld [vmem:[#allocation2 + $0x1e0] sm:$0xff]
    %v174 = vld [vmem:[#allocation2 + $0x1e8] sm:$0xff]
    %v175 = vld [vmem:[#allocation2 + $0x1f0] sm:$0xff]
    %v176 = vld [vmem:[#allocation2 + $0x1f8] sm:$0xff]
    %v177 = vld [vmem:[#allocation2 + $0x200] sm:$0xff]
    %v178 = vld [vmem:[#allocation2 + $0x208] sm:$0xff]
    %v179 = vld [vmem:[#allocation2 + $0x210] sm:$0xff]
    %v180 = vld [vmem:[#allocation2 + $0x218] sm:$0xff]
    %v181 = vld [vmem:[#allocation2 + $0x220] sm:$0xff]
    %v182 = vld [vmem:[#allocation2 + $0x228] sm:$0xff]
    %v183 = vld [vmem:[#allocation2 + $0x230] sm:$0xff]
    %v184 = vld [vmem:[#allocation2 + $0x238] sm:$0xff]
    %v185 = vld [vmem:[#allocation2 + $0x240] sm:$0xff]
    %v186 = vld [vmem:[#allocation2 + $0x248] sm:$0xff]
    %v187 = vld [vmem:[#allocation2 + $0x250] sm:$0xff]
    %v188 = vld [vmem:[#allocation2 + $0x258] sm:$0xff]
    %v189 = vld [vmem:[#allocation2 + $0x260] sm:$0xff]
    %v190 = vld [vmem:[#allocation2 + $0x268] sm:$0xff]
    %v191 = vld [vmem:[#allocation2 + $0x270] sm:$0xff]
    %v192 = vld [vmem:[#allocation2 + $0x278] sm:$0xff]
    %v193 = vld [vmem:[#allocation2 + $0x280] sm:$0xff]
    %v194 = vld [vmem:[#allocation2 + $0x288] sm:$0xff]
    %v195 = vld [vmem:[#allocation2 + $0x290] sm:$0xff]
    %v196 = vld [vmem:[#allocation2 + $0x298] sm:$0xff]
    %v197 = vld [vmem:[#allocation2 + $0x2a0] sm:$0xff]
    %v198 = vld [vmem:[#allocation2 + $0x2a8] sm:$0xff]
    %v199 = vld [vmem:[#allocation2 + $0x2b0] sm:$0xff]
    %v200 = vld [vmem:[#allocation2 + $0x2b8] sm:$0xff]
    %v201 = vld [vmem:[#allocation2 + $0x2c0] sm:$0xff]
    %v202 = vld [vmem:[#allocation2 + $0x2c8] sm:$0xff]
    %v203 = vld [vmem:[#allocation2 + $0x2d0] sm:$0xff]
    %v204 = vld [vmem:[#allocation2 + $0x2d8] sm:$0xff]
    %v205 = vld [vmem:[#allocation2 + $0x2e0] sm:$0xff]
    %v206 = vld [vmem:[#allocation2 + $0x2e8] sm:$0xff]
    %v207 = vld [vmem:[#allocation2 + $0x2f0] sm:$0xff]
    %v208 = vld [vmem:[#allocation2 + $0x2f8] sm:$0xff]
    %v209 = vld [vmem:[#allocation2 + $0x300] sm:$0xff]
    %v210 = vld [vmem:[#allocation2 + $0x308] sm:$0xff]
    %v211 = vld [vmem:[#allocation2 + $0x310] sm:$0xff]
    %v212 = vld [vmem:[#allocation2 + $0x318] sm:$0xff]
    %v213 = vld [vmem:[#allocation2 + $0x320] sm:$0xff]
    %v214 = vld [vmem:[#allocation2 + $0x328] sm:$0xff]
    %v215 = vld [vmem:[#allocation2 + $0x330] sm:$0xff]
    %v216 = vld [vmem:[#allocation2 + $0x338] sm:$0xff]
    %v217 = vld [vmem:[#allocation2 + $0x340] sm:$0xff]
    %v218 = vld [vmem:[#allocation2 + $0x348] sm:$0xff]
    %v219 = vld [vmem:[#allocation2 + $0x350] sm:$0xff]
    %v220 = vld [vmem:[#allocation2 + $0x358] sm:$0xff]
    %v221 = vld [vmem:[#allocation2 + $0x360] sm:$0xff]
    %v222 = vld [vmem:[#allocation2 + $0x368] sm:$0xff]
    %v223 = vld [vmem:[#allocation2 + $0x370] sm:$0xff]
    %v224 = vld [vmem:[#allocation2 + $0x378] sm:$0xff]
    %v225 = vld [vmem:[#allocation2 + $0x380] sm:$0xff]
    %v226 = vld [vmem:[#allocation2 + $0x388] sm:$0xff]
    %v227 = vld [vmem:[#allocation2 + $0x390] sm:$0xff]
    %v228 = vld [vmem:[#allocation2 + $0x398] sm:$0xff]
    %v229 = vld [vmem:[#allocation2 + $0x3a0] sm:$0xff]
    %v230 = vld [vmem:[#allocation2 + $0x3a8] sm:$0xff]
    %v231 = vld [vmem:[#allocation2 + $0x3b0] sm:$0xff]
    %v232 = vld [vmem:[#allocation2 + $0x3b8] sm:$0xff]
    %v233 = vld [vmem:[#allocation2 + $0x3c0] sm:$0xff]
    %v234 = vld [vmem:[#allocation2 + $0x3c8] sm:$0xff]
    %v235 = vld [vmem:[#allocation2 + $0x3d0] sm:$0xff]
    %v236 = vld [vmem:[#allocation2 + $0x3d8] sm:$0xff]
    %v237 = vld [vmem:[#allocation2 + $0x3e0] sm:$0xff]
    %v238 = vld [vmem:[#allocation2 + $0x3e8] sm:$0xff]
    %v239 = vld [vmem:[#allocation2 + $0x3f0] sm:$0xff]
    %v240 = vld [vmem:[#allocation2 + $0x3f8] sm:$0xff]
    %v241 = vld [vmem:[#allocation2 + $0x400] sm:$0xff]
    %v242 = vld [vmem:[#allocation2 + $0x408] sm:$0xff]
    %v243 = vld [vmem:[#allocation2 + $0x410] sm:$0xff]
    %v244 = vld [vmem:[#allocation2 + $0x418] sm:$0xff]
    %v245 = vld [vmem:[#allocation2 + $0x420] sm:$0xff]
    %v246 = vld [vmem:[#allocation2 + $0x428] sm:$0xff]
    %v247 = vld [vmem:[#allocation2 + $0x430] sm:$0xff]
    %v248 = vld [vmem:[#allocation2 + $0x438] sm:$0xff]
    %v249 = vld [vmem:[#allocation2 + $0x440] sm:$0xff]
    %v250 = vld [vmem:[#allocation2 + $0x448] sm:$0xff]
    %v251 = vld [vmem:[#allocation2 + $0x450] sm:$0xff]
    %v252 = vld [vmem:[#allocation2 + $0x458] sm:$0xff]
    %v253 = vld [vmem:[#allocation2 + $0x460] sm:$0xff]
    %v254 = vld [vmem:[#allocation2 + $0x468] sm:$0xff]
    %v255 = vld [vmem:[#allocation2 + $0x470] sm:$0xff]
    %v256 = vld [vmem:[#allocation2 + $0x478] sm:$0xff]
    %v257 = vld [vmem:[#allocation2 + $0x480] sm:$0xff]
    %v258 = vld [vmem:[#allocation2 + $0x488] sm:$0xff]
    %v259 = vld [vmem:[#allocation2 + $0x490] sm:$0xff]
    %v260 = vld [vmem:[#allocation2 + $0x498] sm:$0xff]
    %v261 = vld [vmem:[#allocation2 + $0x4a0] sm:$0xff]
    %v262 = vld [vmem:[#allocation2 + $0x4a8] sm:$0xff]
    %v263 = vld [vmem:[#allocation2 + $0x4b0] sm:$0xff]
    %v264 = vld [vmem:[#allocation2 + $0x4b8] sm:$0xff]
    %v265 = vld [vmem:[#allocation2 + $0x4c0] sm:$0xff]
    %v266 = vld [vmem:[#allocation2 + $0x4c8] sm:$0xff]
    %v267 = vld [vmem:[#allocation2 + $0x4d0] sm:$0xff]
    %v268 = vld [vmem:[#allocation2 + $0x4d8] sm:$0xff]
    %v269 = vld [vmem:[#allocation2 + $0x4e0] sm:$0xff]
    %v270 = vld [vmem:[#allocation2 + $0x4e8] sm:$0xff]
    %v271 = vld [vmem:[#allocation2 + $0x4f0] sm:$0xff]
    %v272 = vld [vmem:[#allocation2 + $0x4f8] sm:$0xff]
    %v273 = vld [vmem:[#allocation2 + $0x500] sm:$0xff]
    %v274 = vld [vmem:[#allocation2 + $0x508] sm:$0xff]
    %v275 = vld [vmem:[#allocation2 + $0x510] sm:$0xff]
    %v276 = vld [vmem:[#allocation2 + $0x518] sm:$0xff]
    %v277 = vld [vmem:[#allocation2 + $0x520] sm:$0xff]
    %v278 = vld [vmem:[#allocation2 + $0x528] sm:$0xff]
    %v279 = vld [vmem:[#allocation2 + $0x530] sm:$0xff]
    %v280 = vld [vmem:[#allocation2 + $0x538] sm:$0xff]
    %v281 = vld [vmem:[#allocation2 + $0x540] sm:$0xff]
    %v282 = vld [vmem:[#allocation2 + $0x548] sm:$0xff]
    %v283 = vld [vmem:[#allocation2 + $0x550] sm:$0xff]
    %v284 = vld [vmem:[#allocation2 + $0x558] sm:$0xff]
    %v285 = vld [vmem:[#allocation2 + $0x560] sm:$0xff]
    %v286 = vld [vmem:[#allocation2 + $0x568] sm:$0xff]
    %v287 = vld [vmem:[#allocation2 + $0x570] sm:$0xff]
    %v288 = vld [vmem:[#allocation2 + $0x578] sm:$0xff]
    %v289 = vld [vmem:[#allocation2 + $0x580] sm:$0xff]
    %v290 = vld [vmem:[#allocation2 + $0x588] sm:$0xff]
    %v291 = vld [vmem:[#allocation2 + $0x590] sm:$0xff]
    %v292 = vld [vmem:[#allocation2 + $0x598] sm:$0xff]
    %v293 = vld [vmem:[#allocation2 + $0x5a0] sm:$0xff]
    %v294 = vld [vmem:[#allocation2 + $0x5a8] sm:$0xff]
    %v295 = vld [vmem:[#allocation2 + $0x5b0] sm:$0xff]
    %v296 = vld [vmem:[#allocation2 + $0x5b8] sm:$0xff]
    %v297 = vld [vmem:[#allocation2 + $0x5c0] sm:$0xff]
    %v298 = vld [vmem:[#allocation2 + $0x5c8] sm:$0xff]
    %v299 = vld [vmem:[#allocation2 + $0x5d0] sm:$0xff]
    %v300 = vld [vmem:[#allocation2 + $0x5d8] sm:$0xff]
    %v301 = vld [vmem:[#allocation2 + $0x5e0] sm:$0xff]
    %v302 = vld [vmem:[#allocation2 + $0x5e8] sm:$0xff]
    %v303 = vld [vmem:[#allocation2 + $0x5f0] sm:$0xff]
    %v304 = vld [vmem:[#allocation2 + $0x5f8] sm:$0xff]
    %v305 = vld [vmem:[#allocation2 + $0x600] sm:$0xff]
    %v306 = vld [vmem:[#allocation2 + $0x608] sm:$0xff]
    %v307 = vld [vmem:[#allocation2 + $0x610] sm:$0xff]
    %v308 = vld [vmem:[#allocation2 + $0x618] sm:$0xff]
    %v309 = vld [vmem:[#allocation2 + $0x620] sm:$0xff]
    %v310 = vld [vmem:[#allocation2 + $0x628] sm:$0xff]
    %v311 = vld [vmem:[#allocation2 + $0x630] sm:$0xff]
    %v312 = vld [vmem:[#allocation2 + $0x638] sm:$0xff]
    %v313 = vld [vmem:[#allocation2 + $0x640] sm:$0xff]
    %v314 = vld [vmem:[#allocation2 + $0x648] sm:$0xff]
    %v315 = vld [vmem:[#allocation2 + $0x650] sm:$0xff]
    %v316 = vld [vmem:[#allocation2 + $0x658] sm:$0xff]
    %v317 = vld [vmem:[#allocation2 + $0x660] sm:$0xff]
    %v318 = vld [vmem:[#allocation2 + $0x668] sm:$0xff]
    %v319 = vld [vmem:[#allocation2 + $0x670] sm:$0xff]
    %v320 = vld [vmem:[#allocation2 + $0x678] sm:$0xff]
    %v321 = vld [vmem:[#allocation2 + $0x680] sm:$0xff]
    %v322 = vld [vmem:[#allocation2 + $0x688] sm:$0xff]
    %v323 = vld [vmem:[#allocation2 + $0x690] sm:$0xff]
    %v324 = vld [vmem:[#allocation2 + $0x698] sm:$0xff]
    %v325 = vld [vmem:[#allocation2 + $0x6a0] sm:$0xff]
    %v326 = vld [vmem:[#allocation2 + $0x6a8] sm:$0xff]
    %v327 = vld [vmem:[#allocation2 + $0x6b0] sm:$0xff]
    %v328 = vld [vmem:[#allocation2 + $0x6b8] sm:$0xff]
    %v329 = vld [vmem:[#allocation2 + $0x6c0] sm:$0xff]
    %v330 = vld [vmem:[#allocation2 + $0x6c8] sm:$0xff]
    %v331 = vld [vmem:[#allocation2 + $0x6d0] sm:$0xff]
    %v332 = vld [vmem:[#allocation2 + $0x6d8] sm:$0xff]
    %v333 = vld [vmem:[#allocation2 + $0x6e0] sm:$0xff]
    %v334 = vld [vmem:[#allocation2 + $0x6e8] sm:$0xff]
    %v335 = vld [vmem:[#allocation2 + $0x6f0] sm:$0xff]
    %v336 = vld [vmem:[#allocation2 + $0x6f8] sm:$0xff]
    %v337 = vld [vmem:[#allocation2 + $0x700] sm:$0xff]
    %v338 = vld [vmem:[#allocation2 + $0x708] sm:$0xff]
    %v339 = vld [vmem:[#allocation2 + $0x710] sm:$0xff]
    %v340 = vld [vmem:[#allocation2 + $0x718] sm:$0xff]
    %v341 = vld [vmem:[#allocation2 + $0x720] sm:$0xff]
    %v342 = vld [vmem:[#allocation2 + $0x728] sm:$0xff]
    %v343 = vld [vmem:[#allocation2 + $0x730] sm:$0xff]
    %v344 = vld [vmem:[#allocation2 + $0x738] sm:$0xff]
    %v345 = vld [vmem:[#allocation2 + $0x740] sm:$0xff]
    %v346 = vld [vmem:[#allocation2 + $0x748] sm:$0xff]
    %v347 = vld [vmem:[#allocation2 + $0x750] sm:$0xff]
    %v348 = vld [vmem:[#allocation2 + $0x758] sm:$0xff]
    %v349 = vld [vmem:[#allocation2 + $0x760] sm:$0xff]
    %v350 = vld [vmem:[#allocation2 + $0x768] sm:$0xff]
    %v351 = vld [vmem:[#allocation2 + $0x770] sm:$0xff]
    %v352 = vld [vmem:[#allocation2 + $0x778] sm:$0xff]
    %v353 = vld [vmem:[#allocation2 + $0x780] sm:$0xff]
    %v354 = vld [vmem:[#allocation2 + $0x788] sm:$0xff]
    %v355 = vld [vmem:[#allocation2 + $0x790] sm:$0xff]
    %v356 = vld [vmem:[#allocation2 + $0x798] sm:$0xff]
    %v357 = vld [vmem:[#allocation2 + $0x7a0] sm:$0xff]
    %v358 = vld [vmem:[#allocation2 + $0x7a8] sm:$0xff]
    %v359 = vld [vmem:[#allocation2 + $0x7b0] sm:$0xff]
    %v360 = vld [vmem:[#allocation2 + $0x7b8] sm:$0xff]
    %v361 = vld [vmem:[#allocation2 + $0x7c0] sm:$0xff]
    %v362 = vld [vmem:[#allocation2 + $0x7c8] sm:$0xff]
    %v363 = vld [vmem:[#allocation2 + $0x7d0] sm:$0xff]
    %v364 = vld [vmem:[#allocation2 + $0x7d8] sm:$0xff]
    %v365 = vld [vmem:[#allocation2 + $0x7e0] sm:$0xff]
    %v366 = vld [vmem:[#allocation2 + $0x7e8] sm:$0xff]
    %v367 = vld [vmem:[#allocation2 + $0x7f0] sm:$0xff]
    %v368 = vld [vmem:[#allocation2 + $0x7f8] sm:$0xff]
    %v369 = vld [vmem:[#allocation2 + $0x800] sm:$0xff]
    %v370 = vld [vmem:[#allocation2 + $0x808] sm:$0xff]
    %v371 = vld [vmem:[#allocation2 + $0x810] sm:$0xff]
    %v372 = vld [vmem:[#allocation2 + $0x818] sm:$0xff]
    %v373 = vld [vmem:[#allocation2 + $0x820] sm:$0xff]
    %v374 = vld [vmem:[#allocation2 + $0x828] sm:$0xff]
    %v375 = vld [vmem:[#allocation2 + $0x830] sm:$0xff]
    %v376 = vld [vmem:[#allocation2 + $0x838] sm:$0xff]
    %v377 = vld [vmem:[#allocation2 + $0x840] sm:$0xff]
    %v378 = vld [vmem:[#allocation2 + $0x848] sm:$0xff]
    %v379 = vld [vmem:[#allocation2 + $0x850] sm:$0xff]
    %v380 = vld [vmem:[#allocation2 + $0x858] sm:$0xff]
    %v381 = vld [vmem:[#allocation2 + $0x860] sm:$0xff]
    %v382 = vld [vmem:[#allocation2 + $0x868] sm:$0xff]
    %v383 = vld [vmem:[#allocation2 + $0x870] sm:$0xff]
    %v384 = vld [vmem:[#allocation2 + $0x878] sm:$0xff]
    %v385 = vld [vmem:[#allocation2 + $0x880] sm:$0xff]
    %v386 = vld [vmem:[#allocation2 + $0x888] sm:$0xff]
    %v387 = vld [vmem:[#allocation2 + $0x890] sm:$0xff]
    %v388 = vld [vmem:[#allocation2 + $0x898] sm:$0xff]
    %v389 = vld [vmem:[#allocation2 + $0x8a0] sm:$0xff]
    %v390 = vld [vmem:[#allocation2 + $0x8a8] sm:$0xff]
    %v391 = vld [vmem:[#allocation2 + $0x8b0] sm:$0xff]
    %v392 = vld [vmem:[#allocation2 + $0x8b8] sm:$0xff]
    %v393 = vld [vmem:[#allocation2 + $0x8c0] sm:$0xff]
    %v394 = vld [vmem:[#allocation2 + $0x8c8] sm:$0xff]
    %v395 = vld [vmem:[#allocation2 + $0x8d0] sm:$0xff]
    %v396 = vld [vmem:[#allocation2 + $0x8d8] sm:$0xff]
    %v397 = vld [vmem:[#allocation2 + $0x8e0] sm:$0xff]
    %v398 = vld [vmem:[#allocation2 + $0x8e8] sm:$0xff]
    %v399 = vld [vmem:[#allocation2 + $0x8f0] sm:$0xff]
    %v400 = vld [vmem:[#allocation2 + $0x8f8] sm:$0xff]
    %v401 = vld [vmem:[#allocation2 + $0x900] sm:$0xff]
    %v402 = vld [vmem:[#allocation2 + $0x908] sm:$0xff]
    %v403 = vld [vmem:[#allocation2 + $0x910] sm:$0xff]
    %v404 = vld [vmem:[#allocation2 + $0x918] sm:$0xff]
    %v405 = vld [vmem:[#allocation2 + $0x920] sm:$0xff]
    %v406 = vld [vmem:[#allocation2 + $0x928] sm:$0xff]
    %v407 = vld [vmem:[#allocation2 + $0x930] sm:$0xff]
    %v408 = vld [vmem:[#allocation2 + $0x938] sm:$0xff]
    %v409 = vld [vmem:[#allocation2 + $0x940] sm:$0xff]
    %v410 = vld [vmem:[#allocation2 + $0x948] sm:$0xff]
    %v411 = vld [vmem:[#allocation2 + $0x950] sm:$0xff]
    %v412 = vld [vmem:[#allocation2 + $0x958] sm:$0xff]
    %v413 = vld [vmem:[#allocation2 + $0x960] sm:$0xff]
    %v414 = vld [vmem:[#allocation2 + $0x968] sm:$0xff]
    %v415 = vld [vmem:[#allocation2 + $0x970] sm:$0xff]
    %v416 = vld [vmem:[#allocation2 + $0x978] sm:$0xff]
    %v417 = vld [vmem:[#allocation2 + $0x980] sm:$0xff]
    %v418 = vld [vmem:[#allocation2 + $0x988] sm:$0xff]
    %v419 = vld [vmem:[#allocation2 + $0x990] sm:$0xff]
    %v420 = vld [vmem:[#allocation2 + $0x998] sm:$0xff]
    %v421 = vld [vmem:[#allocation2 + $0x9a0] sm:$0xff]
    %v422 = vld [vmem:[#allocation2 + $0x9a8] sm:$0xff]
    %v423 = vld [vmem:[#allocation2 + $0x9b0] sm:$0xff]
    %v424 = vld [vmem:[#allocation2 + $0x9b8] sm:$0xff]
    %v425 = vld [vmem:[#allocation2 + $0x9c0] sm:$0xff]
    %v426 = vld [vmem:[#allocation2 + $0x9c8] sm:$0xff]
    %v427 = vld [vmem:[#allocation2 + $0x9d0] sm:$0xff]
    %v428 = vld [vmem:[#allocation2 + $0x9d8] sm:$0xff]
    %v429 = vld [vmem:[#allocation2 + $0x9e0] sm:$0xff]
    %v430 = vld [vmem:[#allocation2 + $0x9e8] sm:$0xff]
    %v431 = vld [vmem:[#allocation2 + $0x9f0] sm:$0xff]
    %v432 = vld [vmem:[#allocation2 + $0x9f8] sm:$0xff]
    %v433 = vld [vmem:[#allocation2 + $0xa00] sm:$0xff]
    %v434 = vld [vmem:[#allocation2 + $0xa08] sm:$0xff]
    %v435 = vld [vmem:[#allocation2 + $0xa10] sm:$0xff]
    %v436 = vld [vmem:[#allocation2 + $0xa18] sm:$0xff]
    %v437 = vld [vmem:[#allocation2 + $0xa20] sm:$0xff]
    %v438 = vld [vmem:[#allocation2 + $0xa28] sm:$0xff]
    %v439 = vld [vmem:[#allocation2 + $0xa30] sm:$0xff]
    %v440 = vld [vmem:[#allocation2 + $0xa38] sm:$0xff]
    %v441 = vld [vmem:[#allocation2 + $0xa40] sm:$0xff]
    %v442 = vld [vmem:[#allocation2 + $0xa48] sm:$0xff]
    %v443 = vld [vmem:[#allocation2 + $0xa50] sm:$0xff]
    %v444 = vld [vmem:[#allocation2 + $0xa58] sm:$0xff]
    %v445 = vld [vmem:[#allocation2 + $0xa60] sm:$0xff]
    %v446 = vld [vmem:[#allocation2 + $0xa68] sm:$0xff]
    %v447 = vld [vmem:[#allocation2 + $0xa70] sm:$0xff]
    %v448 = vld [vmem:[#allocation2 + $0xa78] sm:$0xff]
    %v449 = vld [vmem:[#allocation2 + $0xa80] sm:$0xff]
    %v450 = vld [vmem:[#allocation2 + $0xa88] sm:$0xff]
    %v451 = vld [vmem:[#allocation2 + $0xa90] sm:$0xff]
    %v452 = vld [vmem:[#allocation2 + $0xa98] sm:$0xff]
    %v453 = vld [vmem:[#allocation2 + $0xaa0] sm:$0xff]
    %v454 = vld [vmem:[#allocation2 + $0xaa8] sm:$0xff]
    %v455 = vld [vmem:[#allocation2 + $0xab0] sm:$0xff]
    %v456 = vld [vmem:[#allocation2 + $0xab8] sm:$0xff]
    %v457 = vld [vmem:[#allocation2 + $0xac0] sm:$0xff]
    %v458 = vld [vmem:[#allocation2 + $0xac8] sm:$0xff]
    %v459 = vld [vmem:[#allocation2 + $0xad0] sm:$0xff]
    %v460 = vld [vmem:[#allocation2 + $0xad8] sm:$0xff]
    %v461 = vld [vmem:[#allocation2 + $0xae0] sm:$0xff]
    %v462 = vld [vmem:[#allocation2 + $0xae8] sm:$0xff]
    %v463 = vld [vmem:[#allocation2 + $0xaf0] sm:$0xff]
    %v464 = vld [vmem:[#allocation2 + $0xaf8] sm:$0xff]
    %v465 = vld [vmem:[#allocation2 + $0xb00] sm:$0xff]
    %v466 = vld [vmem:[#allocation2 + $0xb08] sm:$0xff]
    %v467 = vld [vmem:[#allocation2 + $0xb10] sm:$0xff]
    %v468 = vld [vmem:[#allocation2 + $0xb18] sm:$0xff]
    %v469 = vld [vmem:[#allocation2 + $0xb20] sm:$0xff]
    %v470 = vld [vmem:[#allocation2 + $0xb28] sm:$0xff]
    %v471 = vld [vmem:[#allocation2 + $0xb30] sm:$0xff]
    %v472 = vld [vmem:[#allocation2 + $0xb38] sm:$0xff]
    %v473 = vld [vmem:[#allocation2 + $0xb40] sm:$0xff]
    %v474 = vld [vmem:[#allocation2 + $0xb48] sm:$0xff]
    %v475 = vld [vmem:[#allocation2 + $0xb50] sm:$0xff]
    %v476 = vld [vmem:[#allocation2 + $0xb58] sm:$0xff]
    %v477 = vld [vmem:[#allocation2 + $0xb60] sm:$0xff]
    %v478 = vld [vmem:[#allocation2 + $0xb68] sm:$0xff]
    %v479 = vld [vmem:[#allocation2 + $0xb70] sm:$0xff]
    %v480 = vld [vmem:[#allocation2 + $0xb78] sm:$0xff]
    %v481 = vld [vmem:[#allocation2 + $0xb80] sm:$0xff]
    %v482 = vld [vmem:[#allocation2 + $0xb88] sm:$0xff]
    %v483 = vld [vmem:[#allocation2 + $0xb90] sm:$0xff]
    %v484 = vld [vmem:[#allocation2 + $0xb98] sm:$0xff]
    %v485 = vld [vmem:[#allocation2 + $0xba0] sm:$0xff]
    %v486 = vld [vmem:[#allocation2 + $0xba8] sm:$0xff]
    %v487 = vld [vmem:[#allocation2 + $0xbb0] sm:$0xff]
    %v488 = vld [vmem:[#allocation2 + $0xbb8] sm:$0xff]
    %v489 = vld [vmem:[#allocation2 + $0xbc0] sm:$0xff]
    %v490 = vld [vmem:[#allocation2 + $0xbc8] sm:$0xff]
    %v491 = vld [vmem:[#allocation2 + $0xbd0] sm:$0xff]
    %v492 = vld [vmem:[#allocation2 + $0xbd8] sm:$0xff]
    %v493 = vld [vmem:[#allocation2 + $0xbe0] sm:$0xff]
    %v494 = vld [vmem:[#allocation2 + $0xbe8] sm:$0xff]
    %v495 = vld [vmem:[#allocation2 + $0xbf0] sm:$0xff]
    %v496 = vld [vmem:[#allocation2 + $0xbf8] sm:$0xff]
    %v497 = vld [vmem:[#allocation2 + $0xc00] sm:$0xff]
    %v498 = vld [vmem:[#allocation2 + $0xc08] sm:$0xff]
    %v499 = vld [vmem:[#allocation2 + $0xc10] sm:$0xff]
    %v500 = vld [vmem:[#allocation2 + $0xc18] sm:$0xff]
    %v501 = vld [vmem:[#allocation2 + $0xc20] sm:$0xff]
    %v502 = vld [vmem:[#allocation2 + $0xc28] sm:$0xff]
    %v503 = vld [vmem:[#allocation2 + $0xc30] sm:$0xff]
    %v504 = vld [vmem:[#allocation2 + $0xc38] sm:$0xff]
    %v505 = vld [vmem:[#allocation2 + $0xc40] sm:$0xff]
    %v506 = vld [vmem:[#allocation2 + $0xc48] sm:$0xff]
    %v507 = vld [vmem:[#allocation2 + $0xc50] sm:$0xff]
    %v508 = vld [vmem:[#allocation2 + $0xc58] sm:$0xff]
    %v509 = vld [vmem:[#allocation2 + $0xc60] sm:$0xff]
    %v510 = vld [vmem:[#allocation2 + $0xc68] sm:$0xff]
    %v511 = vld [vmem:[#allocation2 + $0xc70] sm:$0xff]
    %v512 = vld [vmem:[#allocation2 + $0xc78] sm:$0xff]
    %v513 = vld [vmem:[#allocation2 + $0xc80] sm:$0xff]
    %v514 = vld [vmem:[#allocation2 + $0xc88] sm:$0xff]
    %v515 = vld [vmem:[#allocation2 + $0xc90] sm:$0xff]
    %v516 = vld [vmem:[#allocation2 + $0xc98] sm:$0xff]
    %v517 = vld [vmem:[#allocation2 + $0xca0] sm:$0xff]
    %v518 = vld [vmem:[#allocation2 + $0xca8] sm:$0xff]
    %v519 = vld [vmem:[#allocation2 + $0xcb0] sm:$0xff]
    %v520 = vld [vmem:[#allocation2 + $0xcb8] sm:$0xff]
    %v521 = vld [vmem:[#allocation2 + $0xcc0] sm:$0xff]
    %v522 = vld [vmem:[#allocation2 + $0xcc8] sm:$0xff]
    %v523 = vld [vmem:[#allocation2 + $0xcd0] sm:$0xff]
    %v524 = vld [vmem:[#allocation2 + $0xcd8] sm:$0xff]
    %v525 = vld [vmem:[#allocation2 + $0xce0] sm:$0xff]
    %v526 = vld [vmem:[#allocation2 + $0xce8] sm:$0xff]
    %v527 = vld [vmem:[#allocation2 + $0xcf0] sm:$0xff]
    %v528 = vld [vmem:[#allocation2 + $0xcf8] sm:$0xff]
    %v529 = vld [vmem:[#allocation2 + $0xd00] sm:$0xff]
    %v530 = vld [vmem:[#allocation2 + $0xd08] sm:$0xff]
    %v531 = vld [vmem:[#allocation2 + $0xd10] sm:$0xff]
    %v532 = vld [vmem:[#allocation2 + $0xd18] sm:$0xff]
    %v533 = vld [vmem:[#allocation2 + $0xd20] sm:$0xff]
    %v534 = vld [vmem:[#allocation2 + $0xd28] sm:$0xff]
    %v535 = vld [vmem:[#allocation2 + $0xd30] sm:$0xff]
    %v536 = vld [vmem:[#allocation2 + $0xd38] sm:$0xff]
    %v537 = vld [vmem:[#allocation2 + $0xd40] sm:$0xff]
    %v538 = vld [vmem:[#allocation2 + $0xd48] sm:$0xff]
    %v539 = vld [vmem:[#allocation2 + $0xd50] sm:$0xff]
    %v540 = vld [vmem:[#allocation2 + $0xd58] sm:$0xff]
    %v541 = vld [vmem:[#allocation2 + $0xd60] sm:$0xff]
    %v542 = vld [vmem:[#allocation2 + $0xd68] sm:$0xff]
    %v543 = vld [vmem:[#allocation2 + $0xd70] sm:$0xff]
    %v544 = vld [vmem:[#allocation2 + $0xd78] sm:$0xff]
    %v545 = vld [vmem:[#allocation2 + $0xd80] sm:$0xff]
    %v546 = vld [vmem:[#allocation2 + $0xd88] sm:$0xff]
    %v547 = vld [vmem:[#allocation2 + $0xd90] sm:$0xff]
    %v548 = vld [vmem:[#allocation2 + $0xd98] sm:$0xff]
    %v549 = vld [vmem:[#allocation2 + $0xda0] sm:$0xff]
    %v550 = vld [vmem:[#allocation2 + $0xda8] sm:$0xff]
    %v551 = vld [vmem:[#allocation2 + $0xdb0] sm:$0xff]
    %v552 = vld [vmem:[#allocation2 + $0xdb8] sm:$0xff]
    %v553 = vld [vmem:[#allocation2 + $0xdc0] sm:$0xff]
    %v554 = vld [vmem:[#allocation2 + $0xdc8] sm:$0xff]
    %v555 = vld [vmem:[#allocation2 + $0xdd0] sm:$0xff]
    %v556 = vld [vmem:[#allocation2 + $0xdd8] sm:$0xff]
    %v557 = vld [vmem:[#allocation2 + $0xde0] sm:$0xff]
    %v558 = vld [vmem:[#allocation2 + $0xde8] sm:$0xff]
    %v559 = vld [vmem:[#allocation2 + $0xdf0] sm:$0xff]
    %v560 = vld [vmem:[#allocation2 + $0xdf8] sm:$0xff]
    %v561 = vld [vmem:[#allocation2 + $0xe00] sm:$0xff]
    %v562 = vld [vmem:[#allocation2 + $0xe08] sm:$0xff]
    %v563 = vld [vmem:[#allocation2 + $0xe10] sm:$0xff]
    %v564 = vld [vmem:[#allocation2 + $0xe18] sm:$0xff]
    %v565 = vld [vmem:[#allocation2 + $0xe20] sm:$0xff]
    %v566 = vld [vmem:[#allocation2 + $0xe28] sm:$0xff]
    %v567 = vld [vmem:[#allocation2 + $0xe30] sm:$0xff]
    %v568 = vld [vmem:[#allocation2 + $0xe38] sm:$0xff]
    %v569 = vld [vmem:[#allocation2 + $0xe40] sm:$0xff]
    %v570 = vld [vmem:[#allocation2 + $0xe48] sm:$0xff]
    %v571 = vld [vmem:[#allocation2 + $0xe50] sm:$0xff]
    %v572 = vld [vmem:[#allocation2 + $0xe58] sm:$0xff]
    %v573 = vld [vmem:[#allocation2 + $0xe60] sm:$0xff]
    %v574 = vld [vmem:[#allocation2 + $0xe68] sm:$0xff]
    %v575 = vld [vmem:[#allocation2 + $0xe70] sm:$0xff]
    %v576 = vld [vmem:[#allocation2 + $0xe78] sm:$0xff]
    %v577 = vld [vmem:[#allocation2 + $0xe80] sm:$0xff]
    %v578 = vld [vmem:[#allocation2 + $0xe88] sm:$0xff]
    %v579 = vld [vmem:[#allocation2 + $0xe90] sm:$0xff]
    %v580 = vld [vmem:[#allocation2 + $0xe98] sm:$0xff]
    %v581 = vld [vmem:[#allocation2 + $0xea0] sm:$0xff]
    %v582 = vld [vmem:[#allocation2 + $0xea8] sm:$0xff]
    %v583 = vld [vmem:[#allocation2 + $0xeb0] sm:$0xff]
    %v584 = vld [vmem:[#allocation2 + $0xeb8] sm:$0xff]
    %v585 = vld [vmem:[#allocation2 + $0xec0] sm:$0xff]
    %v586 = vld [vmem:[#allocation2 + $0xec8] sm:$0xff]
    %v587 = vld [vmem:[#allocation2 + $0xed0] sm:$0xff]
    %v588 = vld [vmem:[#allocation2 + $0xed8] sm:$0xff]
    %v589 = vld [vmem:[#allocation2 + $0xee0] sm:$0xff]
    %v590 = vld [vmem:[#allocation2 + $0xee8] sm:$0xff]
    %v591 = vld [vmem:[#allocation2 + $0xef0] sm:$0xff]
    %v592 = vld [vmem:[#allocation2 + $0xef8] sm:$0xff]
    %v593 = vld [vmem:[#allocation2 + $0xf00] sm:$0xff]
    %v594 = vld [vmem:[#allocation2 + $0xf08] sm:$0xff]
    %v595 = vld [vmem:[#allocation2 + $0xf10] sm:$0xff]
    %v596 = vld [vmem:[#allocation2 + $0xf18] sm:$0xff]
    %v597 = vld [vmem:[#allocation2 + $0xf20] sm:$0xff]
    %v598 = vld [vmem:[#allocation2 + $0xf28] sm:$0xff]
    %v599 = vld [vmem:[#allocation2 + $0xf30] sm:$0xff]
    %v600 = vld [vmem:[#allocation2 + $0xf38] sm:$0xff]
    %v601 = vld [vmem:[#allocation2 + $0xf40] sm:$0xff]
    %v602 = vld [vmem:[#allocation2 + $0xf48] sm:$0xff]
    %v603 = vld [vmem:[#allocation2 + $0xf50] sm:$0xff]
    %v604 = vld [vmem:[#allocation2 + $0xf58] sm:$0xff]
    %v605 = vld [vmem:[#allocation2 + $0xf60] sm:$0xff]
    %v606 = vld [vmem:[#allocation2 + $0xf68] sm:$0xff]
    %v607 = vld [vmem:[#allocation2 + $0xf70] sm:$0xff]
    %v608 = vld [vmem:[#allocation2 + $0xf78] sm:$0xff]
    %v609 = vld [vmem:[#allocation2 + $0xf80] sm:$0xff]
    %v610 = vld [vmem:[#allocation2 + $0xf88] sm:$0xff]
    %v611 = vld [vmem:[#allocation2 + $0xf90] sm:$0xff]
    %v612 = vld [vmem:[#allocation2 + $0xf98] sm:$0xff]
    %v613 = vld [vmem:[#allocation2 + $0xfa0] sm:$0xff]
    %v614 = vld [vmem:[#allocation2 + $0xfa8] sm:$0xff]
    %v615 = vld [vmem:[#allocation2 + $0xfb0] sm:$0xff]
    %v616 = vld [vmem:[#allocation2 + $0xfb8] sm:$0xff]
    %v617 = vld [vmem:[#allocation2 + $0xfc0] sm:$0xff]
    %v618 = vld [vmem:[#allocation2 + $0xfc8] sm:$0xff]
    %v619 = vld [vmem:[#allocation2 + $0xfd0] sm:$0xff]
    %v620 = vld [vmem:[#allocation2 + $0xfd8] sm:$0xff]
    %v621 = vld [vmem:[#allocation2 + $0xfe0] sm:$0xff]
    %v622 = vld [vmem:[#allocation2 + $0xfe8] sm:$0xff]
    %v623 = vld [vmem:[#allocation2 + $0xff0] sm:$0xff]
    %v624 = vld [vmem:[#allocation2 + $0xff8] sm:$0xff]
    %v625 = vld [vmem:[#allocation2 + $0x1000] sm:$0xff]
    %v626 = vld [vmem:[#allocation2 + $0x1008] sm:$0xff]
    %v627 = vld [vmem:[#allocation2 + $0x1010] sm:$0xff]
    %v628 = vld [vmem:[#allocation2 + $0x1018] sm:$0xff]
    %v629 = vld [vmem:[#allocation2 + $0x1020] sm:$0xff]
    %v630 = vld [vmem:[#allocation2 + $0x1028] sm:$0xff]
    %v631 = vld [vmem:[#allocation2 + $0x1030] sm:$0xff]
    %v632 = vld [vmem:[#allocation2 + $0x1038] sm:$0xff]
    %v633 = vld [vmem:[#allocation2 + $0x1040] sm:$0xff]
    %v634 = vld [vmem:[#allocation2 + $0x1048] sm:$0xff]
    %v635 = vld [vmem:[#allocation2 + $0x1050] sm:$0xff]
    %v636 = vld [vmem:[#allocation2 + $0x1058] sm:$0xff]
    %v637 = vld [vmem:[#allocation2 + $0x1060] sm:$0xff]
    %v638 = vld [vmem:[#allocation2 + $0x1068] sm:$0xff]
    %v639 = vld [vmem:[#allocation2 + $0x1070] sm:$0xff]
    %v640 = vld [vmem:[#allocation2 + $0x1078] sm:$0xff]
    %v641 = vld [vmem:[#allocation2 + $0x1080] sm:$0xff]
    %v642 = vld [vmem:[#allocation2 + $0x1088] sm:$0xff]
    %v643 = vld [vmem:[#allocation2 + $0x1090] sm:$0xff]
    %v644 = vld [vmem:[#allocation2 + $0x1098] sm:$0xff]
    %v645 = vld [vmem:[#allocation2 + $0x10a0] sm:$0xff]
    %v646 = vld [vmem:[#allocation2 + $0x10a8] sm:$0xff]
    %v647 = vld [vmem:[#allocation2 + $0x10b0] sm:$0xff]
    %v648 = vld [vmem:[#allocation2 + $0x10b8] sm:$0xff]
    %v649 = vld [vmem:[#allocation2 + $0x10c0] sm:$0xff]
    %v650 = vld [vmem:[#allocation2 + $0x10c8] sm:$0xff]
    %v651 = vld [vmem:[#allocation2 + $0x10d0] sm:$0xff]
    %v652 = vld [vmem:[#allocation2 + $0x10d8] sm:$0xff]
    %v653 = vld [vmem:[#allocation2 + $0x10e0] sm:$0xff]
    %v654 = vld [vmem:[#allocation2 + $0x10e8] sm:$0xff]
    %v655 = vld [vmem:[#allocation2 + $0x10f0] sm:$0xff]
    %v656 = vld [vmem:[#allocation2 + $0x10f8] sm:$0xff]
    %v657 = vld [vmem:[#allocation2 + $0x1100] sm:$0xff]
    %v658 = vld [vmem:[#allocation2 + $0x1108] sm:$0xff]
    %v659 = vld [vmem:[#allocation2 + $0x1110] sm:$0xff]
    %v660 = vld [vmem:[#allocation2 + $0x1118] sm:$0xff]
    %v661 = vld [vmem:[#allocation2 + $0x1120] sm:$0xff]
    %v662 = vld [vmem:[#allocation2 + $0x1128] sm:$0xff]
    %v663 = vld [vmem:[#allocation2 + $0x1130] sm:$0xff]
    %v664 = vld [vmem:[#allocation2 + $0x1138] sm:$0xff]
    %v665 = vld [vmem:[#allocation2 + $0x1140] sm:$0xff]
    %v666 = vld [vmem:[#allocation2 + $0x1148] sm:$0xff]
    %v667 = vld [vmem:[#allocation2 + $0x1150] sm:$0xff]
    %v668 = vld [vmem:[#allocation2 + $0x1158] sm:$0xff]
    %v669 = vld [vmem:[#allocation2 + $0x1160] sm:$0xff]
    %v670 = vld [vmem:[#allocation2 + $0x1168] sm:$0xff]
    %v671 = vld [vmem:[#allocation2 + $0x1170] sm:$0xff]
    %v672 = vld [vmem:[#allocation2 + $0x1178] sm:$0xff]
    %v673 = vld [vmem:[#allocation2 + $0x1180] sm:$0xff]
    %v674 = vld [vmem:[#allocation2 + $0x1188] sm:$0xff]
    %v675 = vld [vmem:[#allocation2 + $0x1190] sm:$0xff]
    %v676 = vld [vmem:[#allocation2 + $0x1198] sm:$0xff]
    %v677 = vld [vmem:[#allocation2 + $0x11a0] sm:$0xff]
    %v678 = vld [vmem:[#allocation2 + $0x11a8] sm:$0xff]
    %v679 = vld [vmem:[#allocation2 + $0x11b0] sm:$0xff]
    %v680 = vld [vmem:[#allocation2 + $0x11b8] sm:$0xff]
    %v681 = vld [vmem:[#allocation2 + $0x11c0] sm:$0xff]
    %v682 = vld [vmem:[#allocation2 + $0x11c8] sm:$0xff]
    %v683 = vld [vmem:[#allocation2 + $0x11d0] sm:$0xff]
    %v684 = vld [vmem:[#allocation2 + $0x11d8] sm:$0xff]
    %v685 = vld [vmem:[#allocation2 + $0x11e0] sm:$0xff]
    %v686 = vld [vmem:[#allocation2 + $0x11e8] sm:$0xff]
    %v687 = vld [vmem:[#allocation2 + $0x11f0] sm:$0xff]
    %v688 = vld [vmem:[#allocation2 + $0x11f8] sm:$0xff]
    %v689 = vld [vmem:[#allocation5] sm:$0xf]
    %v691 = vlaneseq
    %v692 = vshrl.u32 %v691, 7
    %v693 = vsub.s32 0, %v692
    %v694 = vrot.slane %v689, %v693
    %v695 = vlaneseq
    %v696 = vshrl.u32 %v695, 7
    %v697 = vsub.s32 1, %v696
    %v698 = vrot.slane %v689, %v697
    %v699 = vlaneseq
    %v700 = vshrl.u32 %v699, 7
    %v701 = vsub.s32 2, %v700
    %v702 = vrot.slane %v689, %v701
    %v703 = vlaneseq
    %v704 = vshrl.u32 %v703, 7
    %v705 = vsub.s32 3, %v704
    %v706 = vrot.slane %v689, %v705
    %v720 = vunpack.c.l.b16 %v104
    %v721 = vunpack.c.h.b16 %v104
    %v722 = vunpack.c.l.b16 %v105
    %v723 = vunpack.c.h.b16 %v105
    %v724 = vunpack.c.l.b16 %v106
    %v725 = vunpack.c.h.b16 %v106
    %v726 = vunpack.c.l.b16 %v107
    %v727 = vunpack.c.h.b16 %v107
    %v728 = vunpack.c.l.b16 %v108
    %v729 = vunpack.c.h.b16 %v108
    %v730 = vunpack.c.l.b16 %v109
    %v731 = vunpack.c.h.b16 %v109
    %v732 = vunpack.c.l.b16 %v110
    %v733 = vunpack.c.h.b16 %v110
    %v734 = vunpack.c.l.b16 %v111
    %v735 = vunpack.c.h.b16 %v111
    %v736 = vunpack.c.l.b16 %v112
    %v737 = vunpack.c.h.b16 %v112
    %v738 = vpack.c.b16 %v720, %v720
    %v739 = vpack.c.b16 %v721, %v721
    %v740 = vpack.c.b16 %v722, %v722
    %v741 = vpack.c.b16 %v723, %v723
    %v742 = vpack.c.b16 %v724, %v724
    %v743 = vpack.c.b16 %v725, %v725
    %v744 = vpack.c.b16 %v726, %v726
    %v745 = vpack.c.b16 %v727, %v727
    %v746 = vpack.c.b16 %v728, %v728
    %v747 = vpack.c.b16 %v729, %v729
    %v748 = vpack.c.b16 %v730, %v730
    %v749 = vpack.c.b16 %v731, %v731
    %v750 = vpack.c.b16 %v732, %v732
    %v751 = vpack.c.b16 %v733, %v733
    %v752 = vpack.c.b16 %v734, %v734
    %v753 = vpack.c.b16 %v735, %v735
    %v754 = vpack.c.b16 %v736, %v736
    %v755 = vpack.c.b16 %v737, %v737
    %v1350 = vunpack.c.l.b16 %v113
    %v1351 = vunpack.c.h.b16 %v113
    %v1352 = vunpack.c.l.b16 %v114
    %v1353 = vunpack.c.h.b16 %v114
    %v1354 = vunpack.c.l.b16 %v115
    %v1355 = vunpack.c.h.b16 %v115
    %v1356 = vunpack.c.l.b16 %v116
    %v1357 = vunpack.c.h.b16 %v116
    %v1358 = vunpack.c.l.b16 %v117
    %v1359 = vunpack.c.h.b16 %v117
    %v1360 = vunpack.c.l.b16 %v118
    %v1361 = vunpack.c.h.b16 %v118
    %v1362 = vunpack.c.l.b16 %v119
    %v1363 = vunpack.c.h.b16 %v119
    %v1364 = vunpack.c.l.b16 %v120
    %v1365 = vunpack.c.h.b16 %v120
    %v1366 = vunpack.c.l.b16 %v121
    %v1367 = vunpack.c.h.b16 %v121
    %v1368 = vunpack.c.l.b16 %v122
    %v1369 = vunpack.c.h.b16 %v122
    %v1370 = vunpack.c.l.b16 %v123
    %v1371 = vunpack.c.h.b16 %v123
    %v1372 = vunpack.c.l.b16 %v124
    %v1373 = vunpack.c.h.b16 %v124
    %v1374 = vunpack.c.l.b16 %v125
    %v1375 = vunpack.c.h.b16 %v125
    %v1376 = vunpack.c.l.b16 %v126
    %v1377 = vunpack.c.h.b16 %v126
    %v1378 = vunpack.c.l.b16 %v127
    %v1379 = vunpack.c.h.b16 %v127
    %v1380 = vunpack.c.l.b16 %v128
    %v1381 = vunpack.c.h.b16 %v128
    %v1382 = vunpack.c.l.b16 %v129
    %v1383 = vunpack.c.h.b16 %v129
    %v1384 = vunpack.c.l.b16 %v130
    %v1385 = vunpack.c.h.b16 %v130
    %v1386 = vunpack.c.l.b16 %v131
    %v1387 = vunpack.c.h.b16 %v131
    %v1388 = vunpack.c.l.b16 %v132
    %v1389 = vunpack.c.h.b16 %v132
    %v1390 = vunpack.c.l.b16 %v133
    %v1391 = vunpack.c.h.b16 %v133
    %v1392 = vunpack.c.l.b16 %v134
    %v1393 = vunpack.c.h.b16 %v134
    %v1394 = vunpack.c.l.b16 %v135
    %v1395 = vunpack.c.h.b16 %v135
    %v1396 = vunpack.c.l.b16 %v136
    %v1397 = vunpack.c.h.b16 %v136
    %v1398 = vunpack.c.l.b16 %v137
    %v1399 = vunpack.c.h.b16 %v137
    %v1400 = vunpack.c.l.b16 %v138
    %v1401 = vunpack.c.h.b16 %v138
    %v1402 = vunpack.c.l.b16 %v139
    %v1403 = vunpack.c.h.b16 %v139
    %v1404 = vunpack.c.l.b16 %v140
    %v1405 = vunpack.c.h.b16 %v140
    %v1406 = vunpack.c.l.b16 %v141
    %v1407 = vunpack.c.h.b16 %v141
    %v1408 = vunpack.c.l.b16 %v142
    %v1409 = vunpack.c.h.b16 %v142
    %v1410 = vunpack.c.l.b16 %v143
    %v1411 = vunpack.c.h.b16 %v143
    %v1412 = vunpack.c.l.b16 %v144
    %v1413 = vunpack.c.h.b16 %v144
    %v1414 = vunpack.c.l.b16 %v145
    %v1415 = vunpack.c.h.b16 %v145
    %v1416 = vunpack.c.l.b16 %v146
    %v1417 = vunpack.c.h.b16 %v146
    %v1418 = vunpack.c.l.b16 %v147
    %v1419 = vunpack.c.h.b16 %v147
    %v1420 = vunpack.c.l.b16 %v148
    %v1421 = vunpack.c.h.b16 %v148
    %v1422 = vunpack.c.l.b16 %v149
    %v1423 = vunpack.c.h.b16 %v149
    %v1424 = vunpack.c.l.b16 %v150
    %v1425 = vunpack.c.h.b16 %v150
    %v1426 = vunpack.c.l.b16 %v151
    %v1427 = vunpack.c.h.b16 %v151
    %v1428 = vunpack.c.l.b16 %v152
    %v1429 = vunpack.c.h.b16 %v152
    %v1430 = vunpack.c.l.b16 %v153
    %v1431 = vunpack.c.h.b16 %v153
    %v1432 = vunpack.c.l.b16 %v154
    %v1433 = vunpack.c.h.b16 %v154
    %v1434 = vunpack.c.l.b16 %v155
    %v1435 = vunpack.c.h.b16 %v155
    %v1436 = vunpack.c.l.b16 %v156
    %v1437 = vunpack.c.h.b16 %v156
    %v1438 = vunpack.c.l.b16 %v157
    %v1439 = vunpack.c.h.b16 %v157
    %v1440 = vunpack.c.l.b16 %v158
    %v1441 = vunpack.c.h.b16 %v158
    %v1442 = vunpack.c.l.b16 %v159
    %v1443 = vunpack.c.h.b16 %v159
    %v1444 = vunpack.c.l.b16 %v160
    %v1445 = vunpack.c.h.b16 %v160
    %v1446 = vunpack.c.l.b16 %v161
    %v1447 = vunpack.c.h.b16 %v161
    %v1448 = vunpack.c.l.b16 %v162
    %v1449 = vunpack.c.h.b16 %v162
    %v1450 = vunpack.c.l.b16 %v163
    %v1451 = vunpack.c.h.b16 %v163
    %v1452 = vunpack.c.l.b16 %v164
    %v1453 = vunpack.c.h.b16 %v164
    %v1454 = vunpack.c.l.b16 %v165
    %v1455 = vunpack.c.h.b16 %v165
    %v1456 = vunpack.c.l.b16 %v166
    %v1457 = vunpack.c.h.b16 %v166
    %v1458 = vunpack.c.l.b16 %v167
    %v1459 = vunpack.c.h.b16 %v167
    %v1460 = vunpack.c.l.b16 %v168
    %v1461 = vunpack.c.h.b16 %v168
    %v1462 = vunpack.c.l.b16 %v169
    %v1463 = vunpack.c.h.b16 %v169
    %v1464 = vunpack.c.l.b16 %v170
    %v1465 = vunpack.c.h.b16 %v170
    %v1466 = vunpack.c.l.b16 %v171
    %v1467 = vunpack.c.h.b16 %v171
    %v1468 = vunpack.c.l.b16 %v172
    %v1469 = vunpack.c.h.b16 %v172
    %v1470 = vunpack.c.l.b16 %v173
    %v1471 = vunpack.c.h.b16 %v173
    %v1472 = vunpack.c.l.b16 %v174
    %v1473 = vunpack.c.h.b16 %v174
    %v1474 = vunpack.c.l.b16 %v175
    %v1475 = vunpack.c.h.b16 %v175
    %v1476 = vunpack.c.l.b16 %v176
    %v1477 = vunpack.c.h.b16 %v176
    %v1478 = vunpack.c.l.b16 %v177
    %v1479 = vunpack.c.h.b16 %v177
    %v1480 = vunpack.c.l.b16 %v178
    %v1481 = vunpack.c.h.b16 %v178
    %v1482 = vunpack.c.l.b16 %v179
    %v1483 = vunpack.c.h.b16 %v179
    %v1484 = vunpack.c.l.b16 %v180
    %v1485 = vunpack.c.h.b16 %v180
    %v1486 = vunpack.c.l.b16 %v181
    %v1487 = vunpack.c.h.b16 %v181
    %v1488 = vunpack.c.l.b16 %v182
    %v1489 = vunpack.c.h.b16 %v182
    %v1490 = vunpack.c.l.b16 %v183
    %v1491 = vunpack.c.h.b16 %v183
    %v1492 = vunpack.c.l.b16 %v184
    %v1493 = vunpack.c.h.b16 %v184
    %v1494 = vunpack.c.l.b16 %v185
    %v1495 = vunpack.c.h.b16 %v185
    %v1496 = vunpack.c.l.b16 %v186
    %v1497 = vunpack.c.h.b16 %v186
    %v1498 = vunpack.c.l.b16 %v187
    %v1499 = vunpack.c.h.b16 %v187
    %v1500 = vunpack.c.l.b16 %v188
    %v1501 = vunpack.c.h.b16 %v188
    %v1502 = vunpack.c.l.b16 %v189
    %v1503 = vunpack.c.h.b16 %v189
    %v1504 = vunpack.c.l.b16 %v190
    %v1505 = vunpack.c.h.b16 %v190
    %v1506 = vunpack.c.l.b16 %v191
    %v1507 = vunpack.c.h.b16 %v191
    %v1508 = vunpack.c.l.b16 %v192
    %v1509 = vunpack.c.h.b16 %v192
    %v1510 = vunpack.c.l.b16 %v193
    %v1511 = vunpack.c.h.b16 %v193
    %v1512 = vunpack.c.l.b16 %v194
    %v1513 = vunpack.c.h.b16 %v194
    %v1514 = vunpack.c.l.b16 %v195
    %v1515 = vunpack.c.h.b16 %v195
    %v1516 = vunpack.c.l.b16 %v196
    %v1517 = vunpack.c.h.b16 %v196
    %v1518 = vunpack.c.l.b16 %v197
    %v1519 = vunpack.c.h.b16 %v197
    %v1520 = vunpack.c.l.b16 %v198
    %v1521 = vunpack.c.h.b16 %v198
    %v1522 = vunpack.c.l.b16 %v199
    %v1523 = vunpack.c.h.b16 %v199
    %v1524 = vunpack.c.l.b16 %v200
    %v1525 = vunpack.c.h.b16 %v200
    %v1526 = vunpack.c.l.b16 %v201
    %v1527 = vunpack.c.h.b16 %v201
    %v1528 = vunpack.c.l.b16 %v202
    %v1529 = vunpack.c.h.b16 %v202
    %v1530 = vunpack.c.l.b16 %v203
    %v1531 = vunpack.c.h.b16 %v203
    %v1532 = vunpack.c.l.b16 %v204
    %v1533 = vunpack.c.h.b16 %v204
    %v1534 = vunpack.c.l.b16 %v205
    %v1535 = vunpack.c.h.b16 %v205
    %v1536 = vunpack.c.l.b16 %v206
    %v1537 = vunpack.c.h.b16 %v206
    %v1538 = vunpack.c.l.b16 %v207
    %v1539 = vunpack.c.h.b16 %v207
    %v1540 = vunpack.c.l.b16 %v208
    %v1541 = vunpack.c.h.b16 %v208
    %v1542 = vunpack.c.l.b16 %v209
    %v1543 = vunpack.c.h.b16 %v209
    %v1544 = vunpack.c.l.b16 %v210
    %v1545 = vunpack.c.h.b16 %v210
    %v1546 = vunpack.c.l.b16 %v211
    %v1547 = vunpack.c.h.b16 %v211
    %v1548 = vunpack.c.l.b16 %v212
    %v1549 = vunpack.c.h.b16 %v212
    %v1550 = vunpack.c.l.b16 %v213
    %v1551 = vunpack.c.h.b16 %v213
    %v1552 = vunpack.c.l.b16 %v214
    %v1553 = vunpack.c.h.b16 %v214
    %v1554 = vunpack.c.l.b16 %v215
    %v1555 = vunpack.c.h.b16 %v215
    %v1556 = vunpack.c.l.b16 %v216
    %v1557 = vunpack.c.h.b16 %v216
    %v1558 = vunpack.c.l.b16 %v217
    %v1559 = vunpack.c.h.b16 %v217
    %v1560 = vunpack.c.l.b16 %v218
    %v1561 = vunpack.c.h.b16 %v218
    %v1562 = vunpack.c.l.b16 %v219
    %v1563 = vunpack.c.h.b16 %v219
    %v1564 = vunpack.c.l.b16 %v220
    %v1565 = vunpack.c.h.b16 %v220
    %v1566 = vunpack.c.l.b16 %v221
    %v1567 = vunpack.c.h.b16 %v221
    %v1568 = vunpack.c.l.b16 %v222
    %v1569 = vunpack.c.h.b16 %v222
    %v1570 = vunpack.c.l.b16 %v223
    %v1571 = vunpack.c.h.b16 %v223
    %v1572 = vunpack.c.l.b16 %v224
    %v1573 = vunpack.c.h.b16 %v224
    %v1574 = vunpack.c.l.b16 %v225
    %v1575 = vunpack.c.h.b16 %v225
    %v1576 = vunpack.c.l.b16 %v226
    %v1577 = vunpack.c.h.b16 %v226
    %v1578 = vunpack.c.l.b16 %v227
    %v1579 = vunpack.c.h.b16 %v227
    %v1580 = vunpack.c.l.b16 %v228
    %v1581 = vunpack.c.h.b16 %v228
    %v1582 = vunpack.c.l.b16 %v229
    %v1583 = vunpack.c.h.b16 %v229
    %v1584 = vunpack.c.l.b16 %v230
    %v1585 = vunpack.c.h.b16 %v230
    %v1586 = vunpack.c.l.b16 %v231
    %v1587 = vunpack.c.h.b16 %v231
    %v1588 = vunpack.c.l.b16 %v232
    %v1589 = vunpack.c.h.b16 %v232
    %v1590 = vunpack.c.l.b16 %v233
    %v1591 = vunpack.c.h.b16 %v233
    %v1592 = vunpack.c.l.b16 %v234
    %v1593 = vunpack.c.h.b16 %v234
    %v1594 = vunpack.c.l.b16 %v235
    %v1595 = vunpack.c.h.b16 %v235
    %v1596 = vunpack.c.l.b16 %v236
    %v1597 = vunpack.c.h.b16 %v236
    %v1598 = vunpack.c.l.b16 %v237
    %v1599 = vunpack.c.h.b16 %v237
    %v1600 = vunpack.c.l.b16 %v238
    %v1601 = vunpack.c.h.b16 %v238
    %v1602 = vunpack.c.l.b16 %v239
    %v1603 = vunpack.c.h.b16 %v239
    %v1604 = vunpack.c.l.b16 %v240
    %v1605 = vunpack.c.h.b16 %v240
    %v1606 = vunpack.c.l.b16 %v241
    %v1607 = vunpack.c.h.b16 %v241
    %v1608 = vunpack.c.l.b16 %v242
    %v1609 = vunpack.c.h.b16 %v242
    %v1610 = vunpack.c.l.b16 %v243
    %v1611 = vunpack.c.h.b16 %v243
    %v1612 = vunpack.c.l.b16 %v244
    %v1613 = vunpack.c.h.b16 %v244
    %v1614 = vunpack.c.l.b16 %v245
    %v1615 = vunpack.c.h.b16 %v245
    %v1616 = vunpack.c.l.b16 %v246
    %v1617 = vunpack.c.h.b16 %v246
    %v1618 = vunpack.c.l.b16 %v247
    %v1619 = vunpack.c.h.b16 %v247
    %v1620 = vunpack.c.l.b16 %v248
    %v1621 = vunpack.c.h.b16 %v248
    %v1622 = vunpack.c.l.b16 %v249
    %v1623 = vunpack.c.h.b16 %v249
    %v1624 = vunpack.c.l.b16 %v250
    %v1625 = vunpack.c.h.b16 %v250
    %v1626 = vunpack.c.l.b16 %v251
    %v1627 = vunpack.c.h.b16 %v251
    %v1628 = vunpack.c.l.b16 %v252
    %v1629 = vunpack.c.h.b16 %v252
    %v1630 = vunpack.c.l.b16 %v253
    %v1631 = vunpack.c.h.b16 %v253
    %v1632 = vunpack.c.l.b16 %v254
    %v1633 = vunpack.c.h.b16 %v254
    %v1634 = vunpack.c.l.b16 %v255
    %v1635 = vunpack.c.h.b16 %v255
    %v1636 = vunpack.c.l.b16 %v256
    %v1637 = vunpack.c.h.b16 %v256
    %v1638 = vunpack.c.l.b16 %v257
    %v1639 = vunpack.c.h.b16 %v257
    %v1640 = vunpack.c.l.b16 %v258
    %v1641 = vunpack.c.h.b16 %v258
    %v1642 = vunpack.c.l.b16 %v259
    %v1643 = vunpack.c.h.b16 %v259
    %v1644 = vunpack.c.l.b16 %v260
    %v1645 = vunpack.c.h.b16 %v260
    %v1646 = vunpack.c.l.b16 %v261
    %v1647 = vunpack.c.h.b16 %v261
    %v1648 = vunpack.c.l.b16 %v262
    %v1649 = vunpack.c.h.b16 %v262
    %v1650 = vunpack.c.l.b16 %v263
    %v1651 = vunpack.c.h.b16 %v263
    %v1652 = vunpack.c.l.b16 %v264
    %v1653 = vunpack.c.h.b16 %v264
    %v1654 = vunpack.c.l.b16 %v265
    %v1655 = vunpack.c.h.b16 %v265
    %v1656 = vunpack.c.l.b16 %v266
    %v1657 = vunpack.c.h.b16 %v266
    %v1658 = vunpack.c.l.b16 %v267
    %v1659 = vunpack.c.h.b16 %v267
    %v1660 = vunpack.c.l.b16 %v268
    %v1661 = vunpack.c.h.b16 %v268
    %v1662 = vunpack.c.l.b16 %v269
    %v1663 = vunpack.c.h.b16 %v269
    %v1664 = vunpack.c.l.b16 %v270
    %v1665 = vunpack.c.h.b16 %v270
    %v1666 = vunpack.c.l.b16 %v271
    %v1667 = vunpack.c.h.b16 %v271
    %v1668 = vunpack.c.l.b16 %v272
    %v1669 = vunpack.c.h.b16 %v272
    %v1670 = vunpack.c.l.b16 %v273
    %v1671 = vunpack.c.h.b16 %v273
    %v1672 = vunpack.c.l.b16 %v274
    %v1673 = vunpack.c.h.b16 %v274
    %v1674 = vunpack.c.l.b16 %v275
    %v1675 = vunpack.c.h.b16 %v275
    %v1676 = vunpack.c.l.b16 %v276
    %v1677 = vunpack.c.h.b16 %v276
    %v1678 = vunpack.c.l.b16 %v277
    %v1679 = vunpack.c.h.b16 %v277
    %v1680 = vunpack.c.l.b16 %v278
    %v1681 = vunpack.c.h.b16 %v278
    %v1682 = vunpack.c.l.b16 %v279
    %v1683 = vunpack.c.h.b16 %v279
    %v1684 = vunpack.c.l.b16 %v280
    %v1685 = vunpack.c.h.b16 %v280
    %v1686 = vunpack.c.l.b16 %v281
    %v1687 = vunpack.c.h.b16 %v281
    %v1688 = vunpack.c.l.b16 %v282
    %v1689 = vunpack.c.h.b16 %v282
    %v1690 = vunpack.c.l.b16 %v283
    %v1691 = vunpack.c.h.b16 %v283
    %v1692 = vunpack.c.l.b16 %v284
    %v1693 = vunpack.c.h.b16 %v284
    %v1694 = vunpack.c.l.b16 %v285
    %v1695 = vunpack.c.h.b16 %v285
    %v1696 = vunpack.c.l.b16 %v286
    %v1697 = vunpack.c.h.b16 %v286
    %v1698 = vunpack.c.l.b16 %v287
    %v1699 = vunpack.c.h.b16 %v287
    %v1700 = vunpack.c.l.b16 %v288
    %v1701 = vunpack.c.h.b16 %v288
    %v1702 = vunpack.c.l.b16 %v289
    %v1703 = vunpack.c.h.b16 %v289
    %v1704 = vunpack.c.l.b16 %v290
    %v1705 = vunpack.c.h.b16 %v290
    %v1706 = vunpack.c.l.b16 %v291
    %v1707 = vunpack.c.h.b16 %v291
    %v1708 = vunpack.c.l.b16 %v292
    %v1709 = vunpack.c.h.b16 %v292
    %v1710 = vunpack.c.l.b16 %v293
    %v1711 = vunpack.c.h.b16 %v293
    %v1712 = vunpack.c.l.b16 %v294
    %v1713 = vunpack.c.h.b16 %v294
    %v1714 = vunpack.c.l.b16 %v295
    %v1715 = vunpack.c.h.b16 %v295
    %v1716 = vunpack.c.l.b16 %v296
    %v1717 = vunpack.c.h.b16 %v296
    %v1718 = vunpack.c.l.b16 %v297
    %v1719 = vunpack.c.h.b16 %v297
    %v1720 = vunpack.c.l.b16 %v298
    %v1721 = vunpack.c.h.b16 %v298
    %v1722 = vunpack.c.l.b16 %v299
    %v1723 = vunpack.c.h.b16 %v299
    %v1724 = vunpack.c.l.b16 %v300
    %v1725 = vunpack.c.h.b16 %v300
    %v1726 = vunpack.c.l.b16 %v301
    %v1727 = vunpack.c.h.b16 %v301
    %v1728 = vunpack.c.l.b16 %v302
    %v1729 = vunpack.c.h.b16 %v302
    %v1730 = vunpack.c.l.b16 %v303
    %v1731 = vunpack.c.h.b16 %v303
    %v1732 = vunpack.c.l.b16 %v304
    %v1733 = vunpack.c.h.b16 %v304
    %v1734 = vunpack.c.l.b16 %v305
    %v1735 = vunpack.c.h.b16 %v305
    %v1736 = vunpack.c.l.b16 %v306
    %v1737 = vunpack.c.h.b16 %v306
    %v1738 = vunpack.c.l.b16 %v307
    %v1739 = vunpack.c.h.b16 %v307
    %v1740 = vunpack.c.l.b16 %v308
    %v1741 = vunpack.c.h.b16 %v308
    %v1742 = vunpack.c.l.b16 %v309
    %v1743 = vunpack.c.h.b16 %v309
    %v1744 = vunpack.c.l.b16 %v310
    %v1745 = vunpack.c.h.b16 %v310
    %v1746 = vunpack.c.l.b16 %v311
    %v1747 = vunpack.c.h.b16 %v311
    %v1748 = vunpack.c.l.b16 %v312
    %v1749 = vunpack.c.h.b16 %v312
    %v1750 = vunpack.c.l.b16 %v313
    %v1751 = vunpack.c.h.b16 %v313
    %v1752 = vunpack.c.l.b16 %v314
    %v1753 = vunpack.c.h.b16 %v314
    %v1754 = vunpack.c.l.b16 %v315
    %v1755 = vunpack.c.h.b16 %v315
    %v1756 = vunpack.c.l.b16 %v316
    %v1757 = vunpack.c.h.b16 %v316
    %v1758 = vunpack.c.l.b16 %v317
    %v1759 = vunpack.c.h.b16 %v317
    %v1760 = vunpack.c.l.b16 %v318
    %v1761 = vunpack.c.h.b16 %v318
    %v1762 = vunpack.c.l.b16 %v319
    %v1763 = vunpack.c.h.b16 %v319
    %v1764 = vunpack.c.l.b16 %v320
    %v1765 = vunpack.c.h.b16 %v320
    %v1766 = vunpack.c.l.b16 %v321
    %v1767 = vunpack.c.h.b16 %v321
    %v1768 = vunpack.c.l.b16 %v322
    %v1769 = vunpack.c.h.b16 %v322
    %v1770 = vunpack.c.l.b16 %v323
    %v1771 = vunpack.c.h.b16 %v323
    %v1772 = vunpack.c.l.b16 %v324
    %v1773 = vunpack.c.h.b16 %v324
    %v1774 = vunpack.c.l.b16 %v325
    %v1775 = vunpack.c.h.b16 %v325
    %v1776 = vunpack.c.l.b16 %v326
    %v1777 = vunpack.c.h.b16 %v326
    %v1778 = vunpack.c.l.b16 %v327
    %v1779 = vunpack.c.h.b16 %v327
    %v1780 = vunpack.c.l.b16 %v328
    %v1781 = vunpack.c.h.b16 %v328
    %v1782 = vunpack.c.l.b16 %v329
    %v1783 = vunpack.c.h.b16 %v329
    %v1784 = vunpack.c.l.b16 %v330
    %v1785 = vunpack.c.h.b16 %v330
    %v1786 = vunpack.c.l.b16 %v331
    %v1787 = vunpack.c.h.b16 %v331
    %v1788 = vunpack.c.l.b16 %v332
    %v1789 = vunpack.c.h.b16 %v332
    %v1790 = vunpack.c.l.b16 %v333
    %v1791 = vunpack.c.h.b16 %v333
    %v1792 = vunpack.c.l.b16 %v334
    %v1793 = vunpack.c.h.b16 %v334
    %v1794 = vunpack.c.l.b16 %v335
    %v1795 = vunpack.c.h.b16 %v335
    %v1796 = vunpack.c.l.b16 %v336
    %v1797 = vunpack.c.h.b16 %v336
    %v1798 = vunpack.c.l.b16 %v337
    %v1799 = vunpack.c.h.b16 %v337
    %v1800 = vunpack.c.l.b16 %v338
    %v1801 = vunpack.c.h.b16 %v338
    %v1802 = vunpack.c.l.b16 %v339
    %v1803 = vunpack.c.h.b16 %v339
    %v1804 = vunpack.c.l.b16 %v340
    %v1805 = vunpack.c.h.b16 %v340
    %v1806 = vunpack.c.l.b16 %v341
    %v1807 = vunpack.c.h.b16 %v341
    %v1808 = vunpack.c.l.b16 %v342
    %v1809 = vunpack.c.h.b16 %v342
    %v1810 = vunpack.c.l.b16 %v343
    %v1811 = vunpack.c.h.b16 %v343
    %v1812 = vunpack.c.l.b16 %v344
    %v1813 = vunpack.c.h.b16 %v344
    %v1814 = vunpack.c.l.b16 %v345
    %v1815 = vunpack.c.h.b16 %v345
    %v1816 = vunpack.c.l.b16 %v346
    %v1817 = vunpack.c.h.b16 %v346
    %v1818 = vunpack.c.l.b16 %v347
    %v1819 = vunpack.c.h.b16 %v347
    %v1820 = vunpack.c.l.b16 %v348
    %v1821 = vunpack.c.h.b16 %v348
    %v1822 = vunpack.c.l.b16 %v349
    %v1823 = vunpack.c.h.b16 %v349
    %v1824 = vunpack.c.l.b16 %v350
    %v1825 = vunpack.c.h.b16 %v350
    %v1826 = vunpack.c.l.b16 %v351
    %v1827 = vunpack.c.h.b16 %v351
    %v1828 = vunpack.c.l.b16 %v352
    %v1829 = vunpack.c.h.b16 %v352
    %v1830 = vunpack.c.l.b16 %v353
    %v1831 = vunpack.c.h.b16 %v353
    %v1832 = vunpack.c.l.b16 %v354
    %v1833 = vunpack.c.h.b16 %v354
    %v1834 = vunpack.c.l.b16 %v355
    %v1835 = vunpack.c.h.b16 %v355
    %v1836 = vunpack.c.l.b16 %v356
    %v1837 = vunpack.c.h.b16 %v356
    %v1838 = vunpack.c.l.b16 %v357
    %v1839 = vunpack.c.h.b16 %v357
    %v1840 = vunpack.c.l.b16 %v358
    %v1841 = vunpack.c.h.b16 %v358
    %v1842 = vunpack.c.l.b16 %v359
    %v1843 = vunpack.c.h.b16 %v359
    %v1844 = vunpack.c.l.b16 %v360
    %v1845 = vunpack.c.h.b16 %v360
    %v1846 = vunpack.c.l.b16 %v361
    %v1847 = vunpack.c.h.b16 %v361
    %v1848 = vunpack.c.l.b16 %v362
    %v1849 = vunpack.c.h.b16 %v362
    %v1850 = vunpack.c.l.b16 %v363
    %v1851 = vunpack.c.h.b16 %v363
    %v1852 = vunpack.c.l.b16 %v364
    %v1853 = vunpack.c.h.b16 %v364
    %v1854 = vunpack.c.l.b16 %v365
    %v1855 = vunpack.c.h.b16 %v365
    %v1856 = vunpack.c.l.b16 %v366
    %v1857 = vunpack.c.h.b16 %v366
    %v1858 = vunpack.c.l.b16 %v367
    %v1859 = vunpack.c.h.b16 %v367
    %v1860 = vunpack.c.l.b16 %v368
    %v1861 = vunpack.c.h.b16 %v368
    %v1862 = vunpack.c.l.b16 %v369
    %v1863 = vunpack.c.h.b16 %v369
    %v1864 = vunpack.c.l.b16 %v370
    %v1865 = vunpack.c.h.b16 %v370
    %v1866 = vunpack.c.l.b16 %v371
    %v1867 = vunpack.c.h.b16 %v371
    %v1868 = vunpack.c.l.b16 %v372
    %v1869 = vunpack.c.h.b16 %v372
    %v1870 = vunpack.c.l.b16 %v373
    %v1871 = vunpack.c.h.b16 %v373
    %v1872 = vunpack.c.l.b16 %v374
    %v1873 = vunpack.c.h.b16 %v374
    %v1874 = vunpack.c.l.b16 %v375
    %v1875 = vunpack.c.h.b16 %v375
    %v1876 = vunpack.c.l.b16 %v376
    %v1877 = vunpack.c.h.b16 %v376
    %v1878 = vunpack.c.l.b16 %v377
    %v1879 = vunpack.c.h.b16 %v377
    %v1880 = vunpack.c.l.b16 %v378
    %v1881 = vunpack.c.h.b16 %v378
    %v1882 = vunpack.c.l.b16 %v379
    %v1883 = vunpack.c.h.b16 %v379
    %v1884 = vunpack.c.l.b16 %v380
    %v1885 = vunpack.c.h.b16 %v380
    %v1886 = vunpack.c.l.b16 %v381
    %v1887 = vunpack.c.h.b16 %v381
    %v1888 = vunpack.c.l.b16 %v382
    %v1889 = vunpack.c.h.b16 %v382
    %v1890 = vunpack.c.l.b16 %v383
    %v1891 = vunpack.c.h.b16 %v383
    %v1892 = vunpack.c.l.b16 %v384
    %v1893 = vunpack.c.h.b16 %v384
    %v1894 = vunpack.c.l.b16 %v385
    %v1895 = vunpack.c.h.b16 %v385
    %v1896 = vunpack.c.l.b16 %v386
    %v1897 = vunpack.c.h.b16 %v386
    %v1898 = vunpack.c.l.b16 %v387
    %v1899 = vunpack.c.h.b16 %v387
    %v1900 = vunpack.c.l.b16 %v388
    %v1901 = vunpack.c.h.b16 %v388
    %v1902 = vunpack.c.l.b16 %v389
    %v1903 = vunpack.c.h.b16 %v389
    %v1904 = vunpack.c.l.b16 %v390
    %v1905 = vunpack.c.h.b16 %v390
    %v1906 = vunpack.c.l.b16 %v391
    %v1907 = vunpack.c.h.b16 %v391
    %v1908 = vunpack.c.l.b16 %v392
    %v1909 = vunpack.c.h.b16 %v392
    %v1910 = vunpack.c.l.b16 %v393
    %v1911 = vunpack.c.h.b16 %v393
    %v1912 = vunpack.c.l.b16 %v394
    %v1913 = vunpack.c.h.b16 %v394
    %v1914 = vunpack.c.l.b16 %v395
    %v1915 = vunpack.c.h.b16 %v395
    %v1916 = vunpack.c.l.b16 %v396
    %v1917 = vunpack.c.h.b16 %v396
    %v1918 = vunpack.c.l.b16 %v397
    %v1919 = vunpack.c.h.b16 %v397
    %v1920 = vunpack.c.l.b16 %v398
    %v1921 = vunpack.c.h.b16 %v398
    %v1922 = vunpack.c.l.b16 %v399
    %v1923 = vunpack.c.h.b16 %v399
    %v1924 = vunpack.c.l.b16 %v400
    %v1925 = vunpack.c.h.b16 %v400
    %v1926 = vunpack.c.l.b16 %v401
    %v1927 = vunpack.c.h.b16 %v401
    %v1928 = vunpack.c.l.b16 %v402
    %v1929 = vunpack.c.h.b16 %v402
    %v1930 = vunpack.c.l.b16 %v403
    %v1931 = vunpack.c.h.b16 %v403
    %v1932 = vunpack.c.l.b16 %v404
    %v1933 = vunpack.c.h.b16 %v404
    %v1934 = vunpack.c.l.b16 %v405
    %v1935 = vunpack.c.h.b16 %v405
    %v1936 = vunpack.c.l.b16 %v406
    %v1937 = vunpack.c.h.b16 %v406
    %v1938 = vunpack.c.l.b16 %v407
    %v1939 = vunpack.c.h.b16 %v407
    %v1940 = vunpack.c.l.b16 %v408
    %v1941 = vunpack.c.h.b16 %v408
    %v1942 = vunpack.c.l.b16 %v409
    %v1943 = vunpack.c.h.b16 %v409
    %v1944 = vunpack.c.l.b16 %v410
    %v1945 = vunpack.c.h.b16 %v410
    %v1946 = vunpack.c.l.b16 %v411
    %v1947 = vunpack.c.h.b16 %v411
    %v1948 = vunpack.c.l.b16 %v412
    %v1949 = vunpack.c.h.b16 %v412
    %v1950 = vunpack.c.l.b16 %v413
    %v1951 = vunpack.c.h.b16 %v413
    %v1952 = vunpack.c.l.b16 %v414
    %v1953 = vunpack.c.h.b16 %v414
    %v1954 = vunpack.c.l.b16 %v415
    %v1955 = vunpack.c.h.b16 %v415
    %v1956 = vunpack.c.l.b16 %v416
    %v1957 = vunpack.c.h.b16 %v416
    %v1958 = vunpack.c.l.b16 %v417
    %v1959 = vunpack.c.h.b16 %v417
    %v1960 = vunpack.c.l.b16 %v418
    %v1961 = vunpack.c.h.b16 %v418
    %v1962 = vunpack.c.l.b16 %v419
    %v1963 = vunpack.c.h.b16 %v419
    %v1964 = vunpack.c.l.b16 %v420
    %v1965 = vunpack.c.h.b16 %v420
    %v1966 = vunpack.c.l.b16 %v421
    %v1967 = vunpack.c.h.b16 %v421
    %v1968 = vunpack.c.l.b16 %v422
    %v1969 = vunpack.c.h.b16 %v422
    %v1970 = vunpack.c.l.b16 %v423
    %v1971 = vunpack.c.h.b16 %v423
    %v1972 = vunpack.c.l.b16 %v424
    %v1973 = vunpack.c.h.b16 %v424
    %v1974 = vunpack.c.l.b16 %v425
    %v1975 = vunpack.c.h.b16 %v425
    %v1976 = vunpack.c.l.b16 %v426
    %v1977 = vunpack.c.h.b16 %v426
    %v1978 = vunpack.c.l.b16 %v427
    %v1979 = vunpack.c.h.b16 %v427
    %v1980 = vunpack.c.l.b16 %v428
    %v1981 = vunpack.c.h.b16 %v428
    %v1982 = vunpack.c.l.b16 %v429
    %v1983 = vunpack.c.h.b16 %v429
    %v1984 = vunpack.c.l.b16 %v430
    %v1985 = vunpack.c.h.b16 %v430
    %v1986 = vunpack.c.l.b16 %v431
    %v1987 = vunpack.c.h.b16 %v431
    %v1988 = vunpack.c.l.b16 %v432
    %v1989 = vunpack.c.h.b16 %v432
    %v1990 = vunpack.c.l.b16 %v433
    %v1991 = vunpack.c.h.b16 %v433
    %v1992 = vunpack.c.l.b16 %v434
    %v1993 = vunpack.c.h.b16 %v434
    %v1994 = vunpack.c.l.b16 %v435
    %v1995 = vunpack.c.h.b16 %v435
    %v1996 = vunpack.c.l.b16 %v436
    %v1997 = vunpack.c.h.b16 %v436
    %v1998 = vunpack.c.l.b16 %v437
    %v1999 = vunpack.c.h.b16 %v437
    %v2000 = vunpack.c.l.b16 %v438
    %v2001 = vunpack.c.h.b16 %v438
    %v2002 = vunpack.c.l.b16 %v439
    %v2003 = vunpack.c.h.b16 %v439
    %v2004 = vunpack.c.l.b16 %v440
    %v2005 = vunpack.c.h.b16 %v440
    %v2006 = vunpack.c.l.b16 %v441
    %v2007 = vunpack.c.h.b16 %v441
    %v2008 = vunpack.c.l.b16 %v442
    %v2009 = vunpack.c.h.b16 %v442
    %v2010 = vunpack.c.l.b16 %v443
    %v2011 = vunpack.c.h.b16 %v443
    %v2012 = vunpack.c.l.b16 %v444
    %v2013 = vunpack.c.h.b16 %v444
    %v2014 = vunpack.c.l.b16 %v445
    %v2015 = vunpack.c.h.b16 %v445
    %v2016 = vunpack.c.l.b16 %v446
    %v2017 = vunpack.c.h.b16 %v446
    %v2018 = vunpack.c.l.b16 %v447
    %v2019 = vunpack.c.h.b16 %v447
    %v2020 = vunpack.c.l.b16 %v448
    %v2021 = vunpack.c.h.b16 %v448
    %v2022 = vunpack.c.l.b16 %v449
    %v2023 = vunpack.c.h.b16 %v449
    %v2024 = vunpack.c.l.b16 %v450
    %v2025 = vunpack.c.h.b16 %v450
    %v2026 = vunpack.c.l.b16 %v451
    %v2027 = vunpack.c.h.b16 %v451
    %v2028 = vunpack.c.l.b16 %v452
    %v2029 = vunpack.c.h.b16 %v452
    %v2030 = vunpack.c.l.b16 %v453
    %v2031 = vunpack.c.h.b16 %v453
    %v2032 = vunpack.c.l.b16 %v454
    %v2033 = vunpack.c.h.b16 %v454
    %v2034 = vunpack.c.l.b16 %v455
    %v2035 = vunpack.c.h.b16 %v455
    %v2036 = vunpack.c.l.b16 %v456
    %v2037 = vunpack.c.h.b16 %v456
    %v2038 = vunpack.c.l.b16 %v457
    %v2039 = vunpack.c.h.b16 %v457
    %v2040 = vunpack.c.l.b16 %v458
    %v2041 = vunpack.c.h.b16 %v458
    %v2042 = vunpack.c.l.b16 %v459
    %v2043 = vunpack.c.h.b16 %v459
    %v2044 = vunpack.c.l.b16 %v460
    %v2045 = vunpack.c.h.b16 %v460
    %v2046 = vunpack.c.l.b16 %v461
    %v2047 = vunpack.c.h.b16 %v461
    %v2048 = vunpack.c.l.b16 %v462
    %v2049 = vunpack.c.h.b16 %v462
    %v2050 = vunpack.c.l.b16 %v463
    %v2051 = vunpack.c.h.b16 %v463
    %v2052 = vunpack.c.l.b16 %v464
    %v2053 = vunpack.c.h.b16 %v464
    %v2054 = vunpack.c.l.b16 %v465
    %v2055 = vunpack.c.h.b16 %v465
    %v2056 = vunpack.c.l.b16 %v466
    %v2057 = vunpack.c.h.b16 %v466
    %v2058 = vunpack.c.l.b16 %v467
    %v2059 = vunpack.c.h.b16 %v467
    %v2060 = vunpack.c.l.b16 %v468
    %v2061 = vunpack.c.h.b16 %v468
    %v2062 = vunpack.c.l.b16 %v469
    %v2063 = vunpack.c.h.b16 %v469
    %v2064 = vunpack.c.l.b16 %v470
    %v2065 = vunpack.c.h.b16 %v470
    %v2066 = vunpack.c.l.b16 %v471
    %v2067 = vunpack.c.h.b16 %v471
    %v2068 = vunpack.c.l.b16 %v472
    %v2069 = vunpack.c.h.b16 %v472
    %v2070 = vunpack.c.l.b16 %v473
    %v2071 = vunpack.c.h.b16 %v473
    %v2072 = vunpack.c.l.b16 %v474
    %v2073 = vunpack.c.h.b16 %v474
    %v2074 = vunpack.c.l.b16 %v475
    %v2075 = vunpack.c.h.b16 %v475
    %v2076 = vunpack.c.l.b16 %v476
    %v2077 = vunpack.c.h.b16 %v476
    %v2078 = vunpack.c.l.b16 %v477
    %v2079 = vunpack.c.h.b16 %v477
    %v2080 = vunpack.c.l.b16 %v478
    %v2081 = vunpack.c.h.b16 %v478
    %v2082 = vunpack.c.l.b16 %v479
    %v2083 = vunpack.c.h.b16 %v479
    %v2084 = vunpack.c.l.b16 %v480
    %v2085 = vunpack.c.h.b16 %v480
    %v2086 = vunpack.c.l.b16 %v481
    %v2087 = vunpack.c.h.b16 %v481
    %v2088 = vunpack.c.l.b16 %v482
    %v2089 = vunpack.c.h.b16 %v482
    %v2090 = vunpack.c.l.b16 %v483
    %v2091 = vunpack.c.h.b16 %v483
    %v2092 = vunpack.c.l.b16 %v484
    %v2093 = vunpack.c.h.b16 %v484
    %v2094 = vunpack.c.l.b16 %v485
    %v2095 = vunpack.c.h.b16 %v485
    %v2096 = vunpack.c.l.b16 %v486
    %v2097 = vunpack.c.h.b16 %v486
    %v2098 = vunpack.c.l.b16 %v487
    %v2099 = vunpack.c.h.b16 %v487
    %v2100 = vunpack.c.l.b16 %v488
    %v2101 = vunpack.c.h.b16 %v488
    %v2102 = vunpack.c.l.b16 %v489
    %v2103 = vunpack.c.h.b16 %v489
    %v2104 = vunpack.c.l.b16 %v490
    %v2105 = vunpack.c.h.b16 %v490
    %v2106 = vunpack.c.l.b16 %v491
    %v2107 = vunpack.c.h.b16 %v491
    %v2108 = vunpack.c.l.b16 %v492
    %v2109 = vunpack.c.h.b16 %v492
    %v2110 = vunpack.c.l.b16 %v493
    %v2111 = vunpack.c.h.b16 %v493
    %v2112 = vunpack.c.l.b16 %v494
    %v2113 = vunpack.c.h.b16 %v494
    %v2114 = vunpack.c.l.b16 %v495
    %v2115 = vunpack.c.h.b16 %v495
    %v2116 = vunpack.c.l.b16 %v496
    %v2117 = vunpack.c.h.b16 %v496
    %v2118 = vunpack.c.l.b16 %v497
    %v2119 = vunpack.c.h.b16 %v497
    %v2120 = vunpack.c.l.b16 %v498
    %v2121 = vunpack.c.h.b16 %v498
    %v2122 = vunpack.c.l.b16 %v499
    %v2123 = vunpack.c.h.b16 %v499
    %v2124 = vunpack.c.l.b16 %v500
    %v2125 = vunpack.c.h.b16 %v500
    %v2126 = vunpack.c.l.b16 %v501
    %v2127 = vunpack.c.h.b16 %v501
    %v2128 = vunpack.c.l.b16 %v502
    %v2129 = vunpack.c.h.b16 %v502
    %v2130 = vunpack.c.l.b16 %v503
    %v2131 = vunpack.c.h.b16 %v503
    %v2132 = vunpack.c.l.b16 %v504
    %v2133 = vunpack.c.h.b16 %v504
    %v2134 = vunpack.c.l.b16 %v505
    %v2135 = vunpack.c.h.b16 %v505
    %v2136 = vunpack.c.l.b16 %v506
    %v2137 = vunpack.c.h.b16 %v506
    %v2138 = vunpack.c.l.b16 %v507
    %v2139 = vunpack.c.h.b16 %v507
    %v2140 = vunpack.c.l.b16 %v508
    %v2141 = vunpack.c.h.b16 %v508
    %v2142 = vunpack.c.l.b16 %v509
    %v2143 = vunpack.c.h.b16 %v509
    %v2144 = vunpack.c.l.b16 %v510
    %v2145 = vunpack.c.h.b16 %v510
    %v2146 = vunpack.c.l.b16 %v511
    %v2147 = vunpack.c.h.b16 %v511
    %v2148 = vunpack.c.l.b16 %v512
    %v2149 = vunpack.c.h.b16 %v512
    %v2150 = vunpack.c.l.b16 %v513
    %v2151 = vunpack.c.h.b16 %v513
    %v2152 = vunpack.c.l.b16 %v514
    %v2153 = vunpack.c.h.b16 %v514
    %v2154 = vunpack.c.l.b16 %v515
    %v2155 = vunpack.c.h.b16 %v515
    %v2156 = vunpack.c.l.b16 %v516
    %v2157 = vunpack.c.h.b16 %v516
    %v2158 = vunpack.c.l.b16 %v517
    %v2159 = vunpack.c.h.b16 %v517
    %v2160 = vunpack.c.l.b16 %v518
    %v2161 = vunpack.c.h.b16 %v518
    %v2162 = vunpack.c.l.b16 %v519
    %v2163 = vunpack.c.h.b16 %v519
    %v2164 = vunpack.c.l.b16 %v520
    %v2165 = vunpack.c.h.b16 %v520
    %v2166 = vunpack.c.l.b16 %v521
    %v2167 = vunpack.c.h.b16 %v521
    %v2168 = vunpack.c.l.b16 %v522
    %v2169 = vunpack.c.h.b16 %v522
    %v2170 = vunpack.c.l.b16 %v523
    %v2171 = vunpack.c.h.b16 %v523
    %v2172 = vunpack.c.l.b16 %v524
    %v2173 = vunpack.c.h.b16 %v524
    %v2174 = vunpack.c.l.b16 %v525
    %v2175 = vunpack.c.h.b16 %v525
    %v2176 = vunpack.c.l.b16 %v526
    %v2177 = vunpack.c.h.b16 %v526
    %v2178 = vunpack.c.l.b16 %v527
    %v2179 = vunpack.c.h.b16 %v527
    %v2180 = vunpack.c.l.b16 %v528
    %v2181 = vunpack.c.h.b16 %v528
    %v2182 = vunpack.c.l.b16 %v529
    %v2183 = vunpack.c.h.b16 %v529
    %v2184 = vunpack.c.l.b16 %v530
    %v2185 = vunpack.c.h.b16 %v530
    %v2186 = vunpack.c.l.b16 %v531
    %v2187 = vunpack.c.h.b16 %v531
    %v2188 = vunpack.c.l.b16 %v532
    %v2189 = vunpack.c.h.b16 %v532
    %v2190 = vunpack.c.l.b16 %v533
    %v2191 = vunpack.c.h.b16 %v533
    %v2192 = vunpack.c.l.b16 %v534
    %v2193 = vunpack.c.h.b16 %v534
    %v2194 = vunpack.c.l.b16 %v535
    %v2195 = vunpack.c.h.b16 %v535
    %v2196 = vunpack.c.l.b16 %v536
    %v2197 = vunpack.c.h.b16 %v536
    %v2198 = vunpack.c.l.b16 %v537
    %v2199 = vunpack.c.h.b16 %v537
    %v2200 = vunpack.c.l.b16 %v538
    %v2201 = vunpack.c.h.b16 %v538
    %v2202 = vunpack.c.l.b16 %v539
    %v2203 = vunpack.c.h.b16 %v539
    %v2204 = vunpack.c.l.b16 %v540
    %v2205 = vunpack.c.h.b16 %v540
    %v2206 = vunpack.c.l.b16 %v541
    %v2207 = vunpack.c.h.b16 %v541
    %v2208 = vunpack.c.l.b16 %v542
    %v2209 = vunpack.c.h.b16 %v542
    %v2210 = vunpack.c.l.b16 %v543
    %v2211 = vunpack.c.h.b16 %v543
    %v2212 = vunpack.c.l.b16 %v544
    %v2213 = vunpack.c.h.b16 %v544
    %v2214 = vunpack.c.l.b16 %v545
    %v2215 = vunpack.c.h.b16 %v545
    %v2216 = vunpack.c.l.b16 %v546
    %v2217 = vunpack.c.h.b16 %v546
    %v2218 = vunpack.c.l.b16 %v547
    %v2219 = vunpack.c.h.b16 %v547
    %v2220 = vunpack.c.l.b16 %v548
    %v2221 = vunpack.c.h.b16 %v548
    %v2222 = vunpack.c.l.b16 %v549
    %v2223 = vunpack.c.h.b16 %v549
    %v2224 = vunpack.c.l.b16 %v550
    %v2225 = vunpack.c.h.b16 %v550
    %v2226 = vunpack.c.l.b16 %v551
    %v2227 = vunpack.c.h.b16 %v551
    %v2228 = vunpack.c.l.b16 %v552
    %v2229 = vunpack.c.h.b16 %v552
    %v2230 = vunpack.c.l.b16 %v553
    %v2231 = vunpack.c.h.b16 %v553
    %v2232 = vunpack.c.l.b16 %v554
    %v2233 = vunpack.c.h.b16 %v554
    %v2234 = vunpack.c.l.b16 %v555
    %v2235 = vunpack.c.h.b16 %v555
    %v2236 = vunpack.c.l.b16 %v556
    %v2237 = vunpack.c.h.b16 %v556
    %v2238 = vunpack.c.l.b16 %v557
    %v2239 = vunpack.c.h.b16 %v557
    %v2240 = vunpack.c.l.b16 %v558
    %v2241 = vunpack.c.h.b16 %v558
    %v2242 = vunpack.c.l.b16 %v559
    %v2243 = vunpack.c.h.b16 %v559
    %v2244 = vunpack.c.l.b16 %v560
    %v2245 = vunpack.c.h.b16 %v560
    %v2246 = vunpack.c.l.b16 %v561
    %v2247 = vunpack.c.h.b16 %v561
    %v2248 = vunpack.c.l.b16 %v562
    %v2249 = vunpack.c.h.b16 %v562
    %v2250 = vunpack.c.l.b16 %v563
    %v2251 = vunpack.c.h.b16 %v563
    %v2252 = vunpack.c.l.b16 %v564
    %v2253 = vunpack.c.h.b16 %v564
    %v2254 = vunpack.c.l.b16 %v565
    %v2255 = vunpack.c.h.b16 %v565
    %v2256 = vunpack.c.l.b16 %v566
    %v2257 = vunpack.c.h.b16 %v566
    %v2258 = vunpack.c.l.b16 %v567
    %v2259 = vunpack.c.h.b16 %v567
    %v2260 = vunpack.c.l.b16 %v568
    %v2261 = vunpack.c.h.b16 %v568
    %v2262 = vunpack.c.l.b16 %v569
    %v2263 = vunpack.c.h.b16 %v569
    %v2264 = vunpack.c.l.b16 %v570
    %v2265 = vunpack.c.h.b16 %v570
    %v2266 = vunpack.c.l.b16 %v571
    %v2267 = vunpack.c.h.b16 %v571
    %v2268 = vunpack.c.l.b16 %v572
    %v2269 = vunpack.c.h.b16 %v572
    %v2270 = vunpack.c.l.b16 %v573
    %v2271 = vunpack.c.h.b16 %v573
    %v2272 = vunpack.c.l.b16 %v574
    %v2273 = vunpack.c.h.b16 %v574
    %v2274 = vunpack.c.l.b16 %v575
    %v2275 = vunpack.c.h.b16 %v575
    %v2276 = vunpack.c.l.b16 %v576
    %v2277 = vunpack.c.h.b16 %v576
    %v2278 = vunpack.c.l.b16 %v577
    %v2279 = vunpack.c.h.b16 %v577
    %v2280 = vunpack.c.l.b16 %v578
    %v2281 = vunpack.c.h.b16 %v578
    %v2282 = vunpack.c.l.b16 %v579
    %v2283 = vunpack.c.h.b16 %v579
    %v2284 = vunpack.c.l.b16 %v580
    %v2285 = vunpack.c.h.b16 %v580
    %v2286 = vunpack.c.l.b16 %v581
    %v2287 = vunpack.c.h.b16 %v581
    %v2288 = vunpack.c.l.b16 %v582
    %v2289 = vunpack.c.h.b16 %v582
    %v2290 = vunpack.c.l.b16 %v583
    %v2291 = vunpack.c.h.b16 %v583
    %v2292 = vunpack.c.l.b16 %v584
    %v2293 = vunpack.c.h.b16 %v584
    %v2294 = vunpack.c.l.b16 %v585
    %v2295 = vunpack.c.h.b16 %v585
    %v2296 = vunpack.c.l.b16 %v586
    %v2297 = vunpack.c.h.b16 %v586
    %v2298 = vunpack.c.l.b16 %v587
    %v2299 = vunpack.c.h.b16 %v587
    %v2300 = vunpack.c.l.b16 %v588
    %v2301 = vunpack.c.h.b16 %v588
    %v2302 = vunpack.c.l.b16 %v589
    %v2303 = vunpack.c.h.b16 %v589
    %v2304 = vunpack.c.l.b16 %v590
    %v2305 = vunpack.c.h.b16 %v590
    %v2306 = vunpack.c.l.b16 %v591
    %v2307 = vunpack.c.h.b16 %v591
    %v2308 = vunpack.c.l.b16 %v592
    %v2309 = vunpack.c.h.b16 %v592
    %v2310 = vunpack.c.l.b16 %v593
    %v2311 = vunpack.c.h.b16 %v593
    %v2312 = vunpack.c.l.b16 %v594
    %v2313 = vunpack.c.h.b16 %v594
    %v2314 = vunpack.c.l.b16 %v595
    %v2315 = vunpack.c.h.b16 %v595
    %v2316 = vunpack.c.l.b16 %v596
    %v2317 = vunpack.c.h.b16 %v596
    %v2318 = vunpack.c.l.b16 %v597
    %v2319 = vunpack.c.h.b16 %v597
    %v2320 = vunpack.c.l.b16 %v598
    %v2321 = vunpack.c.h.b16 %v598
    %v2322 = vunpack.c.l.b16 %v599
    %v2323 = vunpack.c.h.b16 %v599
    %v2324 = vunpack.c.l.b16 %v600
    %v2325 = vunpack.c.h.b16 %v600
    %v2326 = vunpack.c.l.b16 %v601
    %v2327 = vunpack.c.h.b16 %v601
    %v2328 = vunpack.c.l.b16 %v602
    %v2329 = vunpack.c.h.b16 %v602
    %v2330 = vunpack.c.l.b16 %v603
    %v2331 = vunpack.c.h.b16 %v603
    %v2332 = vunpack.c.l.b16 %v604
    %v2333 = vunpack.c.h.b16 %v604
    %v2334 = vunpack.c.l.b16 %v605
    %v2335 = vunpack.c.h.b16 %v605
    %v2336 = vunpack.c.l.b16 %v606
    %v2337 = vunpack.c.h.b16 %v606
    %v2338 = vunpack.c.l.b16 %v607
    %v2339 = vunpack.c.h.b16 %v607
    %v2340 = vunpack.c.l.b16 %v608
    %v2341 = vunpack.c.h.b16 %v608
    %v2342 = vunpack.c.l.b16 %v609
    %v2343 = vunpack.c.h.b16 %v609
    %v2344 = vunpack.c.l.b16 %v610
    %v2345 = vunpack.c.h.b16 %v610
    %v2346 = vunpack.c.l.b16 %v611
    %v2347 = vunpack.c.h.b16 %v611
    %v2348 = vunpack.c.l.b16 %v612
    %v2349 = vunpack.c.h.b16 %v612
    %v2350 = vunpack.c.l.b16 %v613
    %v2351 = vunpack.c.h.b16 %v613
    %v2352 = vunpack.c.l.b16 %v614
    %v2353 = vunpack.c.h.b16 %v614
    %v2354 = vunpack.c.l.b16 %v615
    %v2355 = vunpack.c.h.b16 %v615
    %v2356 = vunpack.c.l.b16 %v616
    %v2357 = vunpack.c.h.b16 %v616
    %v2358 = vunpack.c.l.b16 %v617
    %v2359 = vunpack.c.h.b16 %v617
    %v2360 = vunpack.c.l.b16 %v618
    %v2361 = vunpack.c.h.b16 %v618
    %v2362 = vunpack.c.l.b16 %v619
    %v2363 = vunpack.c.h.b16 %v619
    %v2364 = vunpack.c.l.b16 %v620
    %v2365 = vunpack.c.h.b16 %v620
    %v2366 = vunpack.c.l.b16 %v621
    %v2367 = vunpack.c.h.b16 %v621
    %v2368 = vunpack.c.l.b16 %v622
    %v2369 = vunpack.c.h.b16 %v622
    %v2370 = vunpack.c.l.b16 %v623
    %v2371 = vunpack.c.h.b16 %v623
    %v2372 = vunpack.c.l.b16 %v624
    %v2373 = vunpack.c.h.b16 %v624
    %v2374 = vunpack.c.l.b16 %v625
    %v2375 = vunpack.c.h.b16 %v625
    %v2376 = vunpack.c.l.b16 %v626
    %v2377 = vunpack.c.h.b16 %v626
    %v2378 = vunpack.c.l.b16 %v627
    %v2379 = vunpack.c.h.b16 %v627
    %v2380 = vunpack.c.l.b16 %v628
    %v2381 = vunpack.c.h.b16 %v628
    %v2382 = vunpack.c.l.b16 %v629
    %v2383 = vunpack.c.h.b16 %v629
    %v2384 = vunpack.c.l.b16 %v630
    %v2385 = vunpack.c.h.b16 %v630
    %v2386 = vunpack.c.l.b16 %v631
    %v2387 = vunpack.c.h.b16 %v631
    %v2388 = vunpack.c.l.b16 %v632
    %v2389 = vunpack.c.h.b16 %v632
    %v2390 = vunpack.c.l.b16 %v633
    %v2391 = vunpack.c.h.b16 %v633
    %v2392 = vunpack.c.l.b16 %v634
    %v2393 = vunpack.c.h.b16 %v634
    %v2394 = vunpack.c.l.b16 %v635
    %v2395 = vunpack.c.h.b16 %v635
    %v2396 = vunpack.c.l.b16 %v636
    %v2397 = vunpack.c.h.b16 %v636
    %v2398 = vunpack.c.l.b16 %v637
    %v2399 = vunpack.c.h.b16 %v637
    %v2400 = vunpack.c.l.b16 %v638
    %v2401 = vunpack.c.h.b16 %v638
    %v2402 = vunpack.c.l.b16 %v639
    %v2403 = vunpack.c.h.b16 %v639
    %v2404 = vunpack.c.l.b16 %v640
    %v2405 = vunpack.c.h.b16 %v640
    %v2406 = vunpack.c.l.b16 %v641
    %v2407 = vunpack.c.h.b16 %v641
    %v2408 = vunpack.c.l.b16 %v642
    %v2409 = vunpack.c.h.b16 %v642
    %v2410 = vunpack.c.l.b16 %v643
    %v2411 = vunpack.c.h.b16 %v643
    %v2412 = vunpack.c.l.b16 %v644
    %v2413 = vunpack.c.h.b16 %v644
    %v2414 = vunpack.c.l.b16 %v645
    %v2415 = vunpack.c.h.b16 %v645
    %v2416 = vunpack.c.l.b16 %v646
    %v2417 = vunpack.c.h.b16 %v646
    %v2418 = vunpack.c.l.b16 %v647
    %v2419 = vunpack.c.h.b16 %v647
    %v2420 = vunpack.c.l.b16 %v648
    %v2421 = vunpack.c.h.b16 %v648
    %v2422 = vunpack.c.l.b16 %v649
    %v2423 = vunpack.c.h.b16 %v649
    %v2424 = vunpack.c.l.b16 %v650
    %v2425 = vunpack.c.h.b16 %v650
    %v2426 = vunpack.c.l.b16 %v651
    %v2427 = vunpack.c.h.b16 %v651
    %v2428 = vunpack.c.l.b16 %v652
    %v2429 = vunpack.c.h.b16 %v652
    %v2430 = vunpack.c.l.b16 %v653
    %v2431 = vunpack.c.h.b16 %v653
    %v2432 = vunpack.c.l.b16 %v654
    %v2433 = vunpack.c.h.b16 %v654
    %v2434 = vunpack.c.l.b16 %v655
    %v2435 = vunpack.c.h.b16 %v655
    %v2436 = vunpack.c.l.b16 %v656
    %v2437 = vunpack.c.h.b16 %v656
    %v2438 = vunpack.c.l.b16 %v657
    %v2439 = vunpack.c.h.b16 %v657
    %v2440 = vunpack.c.l.b16 %v658
    %v2441 = vunpack.c.h.b16 %v658
    %v2442 = vunpack.c.l.b16 %v659
    %v2443 = vunpack.c.h.b16 %v659
    %v2444 = vunpack.c.l.b16 %v660
    %v2445 = vunpack.c.h.b16 %v660
    %v2446 = vunpack.c.l.b16 %v661
    %v2447 = vunpack.c.h.b16 %v661
    %v2448 = vunpack.c.l.b16 %v662
    %v2449 = vunpack.c.h.b16 %v662
    %v2450 = vunpack.c.l.b16 %v663
    %v2451 = vunpack.c.h.b16 %v663
    %v2452 = vunpack.c.l.b16 %v664
    %v2453 = vunpack.c.h.b16 %v664
    %v2454 = vunpack.c.l.b16 %v665
    %v2455 = vunpack.c.h.b16 %v665
    %v2456 = vunpack.c.l.b16 %v666
    %v2457 = vunpack.c.h.b16 %v666
    %v2458 = vunpack.c.l.b16 %v667
    %v2459 = vunpack.c.h.b16 %v667
    %v2460 = vunpack.c.l.b16 %v668
    %v2461 = vunpack.c.h.b16 %v668
    %v2462 = vunpack.c.l.b16 %v669
    %v2463 = vunpack.c.h.b16 %v669
    %v2464 = vunpack.c.l.b16 %v670
    %v2465 = vunpack.c.h.b16 %v670
    %v2466 = vunpack.c.l.b16 %v671
    %v2467 = vunpack.c.h.b16 %v671
    %v2468 = vunpack.c.l.b16 %v672
    %v2469 = vunpack.c.h.b16 %v672
    %v2470 = vunpack.c.l.b16 %v673
    %v2471 = vunpack.c.h.b16 %v673
    %v2472 = vunpack.c.l.b16 %v674
    %v2473 = vunpack.c.h.b16 %v674
    %v2474 = vunpack.c.l.b16 %v675
    %v2475 = vunpack.c.h.b16 %v675
    %v2476 = vunpack.c.l.b16 %v676
    %v2477 = vunpack.c.h.b16 %v676
    %v2478 = vunpack.c.l.b16 %v677
    %v2479 = vunpack.c.h.b16 %v677
    %v2480 = vunpack.c.l.b16 %v678
    %v2481 = vunpack.c.h.b16 %v678
    %v2482 = vunpack.c.l.b16 %v679
    %v2483 = vunpack.c.h.b16 %v679
    %v2484 = vunpack.c.l.b16 %v680
    %v2485 = vunpack.c.h.b16 %v680
    %v2486 = vunpack.c.l.b16 %v681
    %v2487 = vunpack.c.h.b16 %v681
    %v2488 = vunpack.c.l.b16 %v682
    %v2489 = vunpack.c.h.b16 %v682
    %v2490 = vunpack.c.l.b16 %v683
    %v2491 = vunpack.c.h.b16 %v683
    %v2492 = vunpack.c.l.b16 %v684
    %v2493 = vunpack.c.h.b16 %v684
    %v2494 = vunpack.c.l.b16 %v685
    %v2495 = vunpack.c.h.b16 %v685
    %v2496 = vunpack.c.l.b16 %v686
    %v2497 = vunpack.c.h.b16 %v686
    %v2498 = vunpack.c.l.b16 %v687
    %v2499 = vunpack.c.h.b16 %v687
    %v2500 = vunpack.c.l.b16 %v688
    %v2501 = vunpack.c.h.b16 %v688
    %v2502 = vpack.c.b16 %v1354, %v1350
    %v2503 = vpack.c.b16 %v1355, %v1351
    %v2504 = vpack.c.b16 %v1356, %v1352
    %v2505 = vpack.c.b16 %v1357, %v1353
    %v2506 = vpack.c.b16 %v1362, %v1358
    %v2507 = vpack.c.b16 %v1363, %v1359
    %v2508 = vpack.c.b16 %v1364, %v1360
    %v2509 = vpack.c.b16 %v1365, %v1361
    %v2510 = vpack.c.b16 %v1370, %v1366
    %v2511 = vpack.c.b16 %v1371, %v1367
    %v2512 = vpack.c.b16 %v1372, %v1368
    %v2513 = vpack.c.b16 %v1373, %v1369
    %v2514 = vpack.c.b16 %v1378, %v1374
    %v2515 = vpack.c.b16 %v1379, %v1375
    %v2516 = vpack.c.b16 %v1380, %v1376
    %v2517 = vpack.c.b16 %v1381, %v1377
    %v2518 = vpack.c.b16 %v1386, %v1382
    %v2519 = vpack.c.b16 %v1387, %v1383
    %v2520 = vpack.c.b16 %v1388, %v1384
    %v2521 = vpack.c.b16 %v1389, %v1385
    %v2522 = vpack.c.b16 %v1394, %v1390
    %v2523 = vpack.c.b16 %v1395, %v1391
    %v2524 = vpack.c.b16 %v1396, %v1392
    %v2525 = vpack.c.b16 %v1397, %v1393
    %v2526 = vpack.c.b16 %v1402, %v1398
    %v2527 = vpack.c.b16 %v1403, %v1399
    %v2528 = vpack.c.b16 %v1404, %v1400
    %v2529 = vpack.c.b16 %v1405, %v1401
    %v2530 = vpack.c.b16 %v1410, %v1406
    %v2531 = vpack.c.b16 %v1411, %v1407
    %v2532 = vpack.c.b16 %v1412, %v1408
    %v2533 = vpack.c.b16 %v1413, %v1409
    %v2534 = vpack.c.b16 %v1418, %v1414
    %v2535 = vpack.c.b16 %v1419, %v1415
    %v2536 = vpack.c.b16 %v1420, %v1416
    %v2537 = vpack.c.b16 %v1421, %v1417
    %v2538 = vpack.c.b16 %v1426, %v1422
    %v2539 = vpack.c.b16 %v1427, %v1423
    %v2540 = vpack.c.b16 %v1428, %v1424
    %v2541 = vpack.c.b16 %v1429, %v1425
    %v2542 = vpack.c.b16 %v1434, %v1430
    %v2543 = vpack.c.b16 %v1435, %v1431
    %v2544 = vpack.c.b16 %v1436, %v1432
    %v2545 = vpack.c.b16 %v1437, %v1433
    %v2546 = vpack.c.b16 %v1442, %v1438
    %v2547 = vpack.c.b16 %v1443, %v1439
    %v2548 = vpack.c.b16 %v1444, %v1440
    %v2549 = vpack.c.b16 %v1445, %v1441
    %v2550 = vpack.c.b16 %v1450, %v1446
    %v2551 = vpack.c.b16 %v1451, %v1447
    %v2552 = vpack.c.b16 %v1452, %v1448
    %v2553 = vpack.c.b16 %v1453, %v1449
    %v2554 = vpack.c.b16 %v1458, %v1454
    %v2555 = vpack.c.b16 %v1459, %v1455
    %v2556 = vpack.c.b16 %v1460, %v1456
    %v2557 = vpack.c.b16 %v1461, %v1457
    %v2558 = vpack.c.b16 %v1466, %v1462
    %v2559 = vpack.c.b16 %v1467, %v1463
    %v2560 = vpack.c.b16 %v1468, %v1464
    %v2561 = vpack.c.b16 %v1469, %v1465
    %v2562 = vpack.c.b16 %v1474, %v1470
    %v2563 = vpack.c.b16 %v1475, %v1471
    %v2564 = vpack.c.b16 %v1476, %v1472
    %v2565 = vpack.c.b16 %v1477, %v1473
    %v2566 = vpack.c.b16 %v1482, %v1478
    %v2567 = vpack.c.b16 %v1483, %v1479
    %v2568 = vpack.c.b16 %v1484, %v1480
    %v2569 = vpack.c.b16 %v1485, %v1481
    %v2570 = vpack.c.b16 %v1490, %v1486
    %v2571 = vpack.c.b16 %v1491, %v1487
    %v2572 = vpack.c.b16 %v1492, %v1488
    %v2573 = vpack.c.b16 %v1493, %v1489
    %v2574 = vpack.c.b16 %v1498, %v1494
    %v2575 = vpack.c.b16 %v1499, %v1495
    %v2576 = vpack.c.b16 %v1500, %v1496
    %v2577 = vpack.c.b16 %v1501, %v1497
    %v2578 = vpack.c.b16 %v1506, %v1502
    %v2579 = vpack.c.b16 %v1507, %v1503
    %v2580 = vpack.c.b16 %v1508, %v1504
    %v2581 = vpack.c.b16 %v1509, %v1505
    %v2582 = vpack.c.b16 %v1514, %v1510
    %v2583 = vpack.c.b16 %v1515, %v1511
    %v2584 = vpack.c.b16 %v1516, %v1512
    %v2585 = vpack.c.b16 %v1517, %v1513
    %v2586 = vpack.c.b16 %v1522, %v1518
    %v2587 = vpack.c.b16 %v1523, %v1519
    %v2588 = vpack.c.b16 %v1524, %v1520
    %v2589 = vpack.c.b16 %v1525, %v1521
    %v2590 = vpack.c.b16 %v1530, %v1526
    %v2591 = vpack.c.b16 %v1531, %v1527
    %v2592 = vpack.c.b16 %v1532, %v1528
    %v2593 = vpack.c.b16 %v1533, %v1529
    %v2594 = vpack.c.b16 %v1538, %v1534
    %v2595 = vpack.c.b16 %v1539, %v1535
    %v2596 = vpack.c.b16 %v1540, %v1536
    %v2597 = vpack.c.b16 %v1541, %v1537
    %v2598 = vpack.c.b16 %v1546, %v1542
    %v2599 = vpack.c.b16 %v1547, %v1543
    %v2600 = vpack.c.b16 %v1548, %v1544
    %v2601 = vpack.c.b16 %v1549, %v1545
    %v2602 = vpack.c.b16 %v1554, %v1550
    %v2603 = vpack.c.b16 %v1555, %v1551
    %v2604 = vpack.c.b16 %v1556, %v1552
    %v2605 = vpack.c.b16 %v1557, %v1553
    %v2606 = vpack.c.b16 %v1562, %v1558
    %v2607 = vpack.c.b16 %v1563, %v1559
    %v2608 = vpack.c.b16 %v1564, %v1560
    %v2609 = vpack.c.b16 %v1565, %v1561
    %v2610 = vpack.c.b16 %v1570, %v1566
    %v2611 = vpack.c.b16 %v1571, %v1567
    %v2612 = vpack.c.b16 %v1572, %v1568
    %v2613 = vpack.c.b16 %v1573, %v1569
    %v2614 = vpack.c.b16 %v1578, %v1574
    %v2615 = vpack.c.b16 %v1579, %v1575
    %v2616 = vpack.c.b16 %v1580, %v1576
    %v2617 = vpack.c.b16 %v1581, %v1577
    %v2618 = vpack.c.b16 %v1586, %v1582
    %v2619 = vpack.c.b16 %v1587, %v1583
    %v2620 = vpack.c.b16 %v1588, %v1584
    %v2621 = vpack.c.b16 %v1589, %v1585
    %v2622 = vpack.c.b16 %v1594, %v1590
    %v2623 = vpack.c.b16 %v1595, %v1591
    %v2624 = vpack.c.b16 %v1596, %v1592
    %v2625 = vpack.c.b16 %v1597, %v1593
    %v2626 = vpack.c.b16 %v1602, %v1598
    %v2627 = vpack.c.b16 %v1603, %v1599
    %v2628 = vpack.c.b16 %v1604, %v1600
    %v2629 = vpack.c.b16 %v1605, %v1601
    %v2630 = vpack.c.b16 %v1610, %v1606
    %v2631 = vpack.c.b16 %v1611, %v1607
    %v2632 = vpack.c.b16 %v1612, %v1608
    %v2633 = vpack.c.b16 %v1613, %v1609
    %v2634 = vpack.c.b16 %v1618, %v1614
    %v2635 = vpack.c.b16 %v1619, %v1615
    %v2636 = vpack.c.b16 %v1620, %v1616
    %v2637 = vpack.c.b16 %v1621, %v1617
    %v2638 = vpack.c.b16 %v1626, %v1622
    %v2639 = vpack.c.b16 %v1627, %v1623
    %v2640 = vpack.c.b16 %v1628, %v1624
    %v2641 = vpack.c.b16 %v1629, %v1625
    %v2642 = vpack.c.b16 %v1634, %v1630
    %v2643 = vpack.c.b16 %v1635, %v1631
    %v2644 = vpack.c.b16 %v1636, %v1632
    %v2645 = vpack.c.b16 %v1637, %v1633
    %v2646 = vpack.c.b16 %v1642, %v1638
    %v2647 = vpack.c.b16 %v1643, %v1639
    %v2648 = vpack.c.b16 %v1644, %v1640
    %v2649 = vpack.c.b16 %v1645, %v1641
    %v2650 = vpack.c.b16 %v1650, %v1646
    %v2651 = vpack.c.b16 %v1651, %v1647
    %v2652 = vpack.c.b16 %v1652, %v1648
    %v2653 = vpack.c.b16 %v1653, %v1649
    %v2654 = vpack.c.b16 %v1658, %v1654
    %v2655 = vpack.c.b16 %v1659, %v1655
    %v2656 = vpack.c.b16 %v1660, %v1656
    %v2657 = vpack.c.b16 %v1661, %v1657
    %v2658 = vpack.c.b16 %v1666, %v1662
    %v2659 = vpack.c.b16 %v1667, %v1663
    %v2660 = vpack.c.b16 %v1668, %v1664
    %v2661 = vpack.c.b16 %v1669, %v1665
    %v2662 = vpack.c.b16 %v1674, %v1670
    %v2663 = vpack.c.b16 %v1675, %v1671
    %v2664 = vpack.c.b16 %v1676, %v1672
    %v2665 = vpack.c.b16 %v1677, %v1673
    %v2666 = vpack.c.b16 %v1682, %v1678
    %v2667 = vpack.c.b16 %v1683, %v1679
    %v2668 = vpack.c.b16 %v1684, %v1680
    %v2669 = vpack.c.b16 %v1685, %v1681
    %v2670 = vpack.c.b16 %v1690, %v1686
    %v2671 = vpack.c.b16 %v1691, %v1687
    %v2672 = vpack.c.b16 %v1692, %v1688
    %v2673 = vpack.c.b16 %v1693, %v1689
    %v2674 = vpack.c.b16 %v1698, %v1694
    %v2675 = vpack.c.b16 %v1699, %v1695
    %v2676 = vpack.c.b16 %v1700, %v1696
    %v2677 = vpack.c.b16 %v1701, %v1697
    %v2678 = vpack.c.b16 %v1706, %v1702
    %v2679 = vpack.c.b16 %v1707, %v1703
    %v2680 = vpack.c.b16 %v1708, %v1704
    %v2681 = vpack.c.b16 %v1709, %v1705
    %v2682 = vpack.c.b16 %v1714, %v1710
    %v2683 = vpack.c.b16 %v1715, %v1711
    %v2684 = vpack.c.b16 %v1716, %v1712
    %v2685 = vpack.c.b16 %v1717, %v1713
    %v2686 = vpack.c.b16 %v1722, %v1718
    %v2687 = vpack.c.b16 %v1723, %v1719
    %v2688 = vpack.c.b16 %v1724, %v1720
    %v2689 = vpack.c.b16 %v1725, %v1721
    %v2690 = vpack.c.b16 %v1730, %v1726
    %v2691 = vpack.c.b16 %v1731, %v1727
    %v2692 = vpack.c.b16 %v1732, %v1728
    %v2693 = vpack.c.b16 %v1733, %v1729
    %v2694 = vpack.c.b16 %v1738, %v1734
    %v2695 = vpack.c.b16 %v1739, %v1735
    %v2696 = vpack.c.b16 %v1740, %v1736
    %v2697 = vpack.c.b16 %v1741, %v1737
    %v2698 = vpack.c.b16 %v1746, %v1742
    %v2699 = vpack.c.b16 %v1747, %v1743
    %v2700 = vpack.c.b16 %v1748, %v1744
    %v2701 = vpack.c.b16 %v1749, %v1745
    %v2702 = vpack.c.b16 %v1754, %v1750
    %v2703 = vpack.c.b16 %v1755, %v1751
    %v2704 = vpack.c.b16 %v1756, %v1752
    %v2705 = vpack.c.b16 %v1757, %v1753
    %v2706 = vpack.c.b16 %v1762, %v1758
    %v2707 = vpack.c.b16 %v1763, %v1759
    %v2708 = vpack.c.b16 %v1764, %v1760
    %v2709 = vpack.c.b16 %v1765, %v1761
    %v2710 = vpack.c.b16 %v1770, %v1766
    %v2711 = vpack.c.b16 %v1771, %v1767
    %v2712 = vpack.c.b16 %v1772, %v1768
    %v2713 = vpack.c.b16 %v1773, %v1769
    %v2714 = vpack.c.b16 %v1778, %v1774
    %v2715 = vpack.c.b16 %v1779, %v1775
    %v2716 = vpack.c.b16 %v1780, %v1776
    %v2717 = vpack.c.b16 %v1781, %v1777
    %v2718 = vpack.c.b16 %v1786, %v1782
    %v2719 = vpack.c.b16 %v1787, %v1783
    %v2720 = vpack.c.b16 %v1788, %v1784
    %v2721 = vpack.c.b16 %v1789, %v1785
    %v2722 = vpack.c.b16 %v1794, %v1790
    %v2723 = vpack.c.b16 %v1795, %v1791
    %v2724 = vpack.c.b16 %v1796, %v1792
    %v2725 = vpack.c.b16 %v1797, %v1793
    %v2726 = vpack.c.b16 %v1802, %v1798
    %v2727 = vpack.c.b16 %v1803, %v1799
    %v2728 = vpack.c.b16 %v1804, %v1800
    %v2729 = vpack.c.b16 %v1805, %v1801
    %v2730 = vpack.c.b16 %v1810, %v1806
    %v2731 = vpack.c.b16 %v1811, %v1807
    %v2732 = vpack.c.b16 %v1812, %v1808
    %v2733 = vpack.c.b16 %v1813, %v1809
    %v2734 = vpack.c.b16 %v1818, %v1814
    %v2735 = vpack.c.b16 %v1819, %v1815
    %v2736 = vpack.c.b16 %v1820, %v1816
    %v2737 = vpack.c.b16 %v1821, %v1817
    %v2738 = vpack.c.b16 %v1826, %v1822
    %v2739 = vpack.c.b16 %v1827, %v1823
    %v2740 = vpack.c.b16 %v1828, %v1824
    %v2741 = vpack.c.b16 %v1829, %v1825
    %v2742 = vpack.c.b16 %v1834, %v1830
    %v2743 = vpack.c.b16 %v1835, %v1831
    %v2744 = vpack.c.b16 %v1836, %v1832
    %v2745 = vpack.c.b16 %v1837, %v1833
    %v2746 = vpack.c.b16 %v1842, %v1838
    %v2747 = vpack.c.b16 %v1843, %v1839
    %v2748 = vpack.c.b16 %v1844, %v1840
    %v2749 = vpack.c.b16 %v1845, %v1841
    %v2750 = vpack.c.b16 %v1850, %v1846
    %v2751 = vpack.c.b16 %v1851, %v1847
    %v2752 = vpack.c.b16 %v1852, %v1848
    %v2753 = vpack.c.b16 %v1853, %v1849
    %v2754 = vpack.c.b16 %v1858, %v1854
    %v2755 = vpack.c.b16 %v1859, %v1855
    %v2756 = vpack.c.b16 %v1860, %v1856
    %v2757 = vpack.c.b16 %v1861, %v1857
    %v2758 = vpack.c.b16 %v1866, %v1862
    %v2759 = vpack.c.b16 %v1867, %v1863
    %v2760 = vpack.c.b16 %v1868, %v1864
    %v2761 = vpack.c.b16 %v1869, %v1865
    %v2762 = vpack.c.b16 %v1874, %v1870
    %v2763 = vpack.c.b16 %v1875, %v1871
    %v2764 = vpack.c.b16 %v1876, %v1872
    %v2765 = vpack.c.b16 %v1877, %v1873
    %v2766 = vpack.c.b16 %v1882, %v1878
    %v2767 = vpack.c.b16 %v1883, %v1879
    %v2768 = vpack.c.b16 %v1884, %v1880
    %v2769 = vpack.c.b16 %v1885, %v1881
    %v2770 = vpack.c.b16 %v1890, %v1886
    %v2771 = vpack.c.b16 %v1891, %v1887
    %v2772 = vpack.c.b16 %v1892, %v1888
    %v2773 = vpack.c.b16 %v1893, %v1889
    %v2774 = vpack.c.b16 %v1898, %v1894
    %v2775 = vpack.c.b16 %v1899, %v1895
    %v2776 = vpack.c.b16 %v1900, %v1896
    %v2777 = vpack.c.b16 %v1901, %v1897
    %v2778 = vpack.c.b16 %v1906, %v1902
    %v2779 = vpack.c.b16 %v1907, %v1903
    %v2780 = vpack.c.b16 %v1908, %v1904
    %v2781 = vpack.c.b16 %v1909, %v1905
    %v2782 = vpack.c.b16 %v1914, %v1910
    %v2783 = vpack.c.b16 %v1915, %v1911
    %v2784 = vpack.c.b16 %v1916, %v1912
    %v2785 = vpack.c.b16 %v1917, %v1913
    %v2786 = vpack.c.b16 %v1922, %v1918
    %v2787 = vpack.c.b16 %v1923, %v1919
    %v2788 = vpack.c.b16 %v1924, %v1920
    %v2789 = vpack.c.b16 %v1925, %v1921
    %v2790 = vpack.c.b16 %v1930, %v1926
    %v2791 = vpack.c.b16 %v1931, %v1927
    %v2792 = vpack.c.b16 %v1932, %v1928
    %v2793 = vpack.c.b16 %v1933, %v1929
    %v2794 = vpack.c.b16 %v1938, %v1934
    %v2795 = vpack.c.b16 %v1939, %v1935
    %v2796 = vpack.c.b16 %v1940, %v1936
    %v2797 = vpack.c.b16 %v1941, %v1937
    %v2798 = vpack.c.b16 %v1946, %v1942
    %v2799 = vpack.c.b16 %v1947, %v1943
    %v2800 = vpack.c.b16 %v1948, %v1944
    %v2801 = vpack.c.b16 %v1949, %v1945
    %v2802 = vpack.c.b16 %v1954, %v1950
    %v2803 = vpack.c.b16 %v1955, %v1951
    %v2804 = vpack.c.b16 %v1956, %v1952
    %v2805 = vpack.c.b16 %v1957, %v1953
    %v2806 = vpack.c.b16 %v1962, %v1958
    %v2807 = vpack.c.b16 %v1963, %v1959
    %v2808 = vpack.c.b16 %v1964, %v1960
    %v2809 = vpack.c.b16 %v1965, %v1961
    %v2810 = vpack.c.b16 %v1970, %v1966
    %v2811 = vpack.c.b16 %v1971, %v1967
    %v2812 = vpack.c.b16 %v1972, %v1968
    %v2813 = vpack.c.b16 %v1973, %v1969
    %v2814 = vpack.c.b16 %v1978, %v1974
    %v2815 = vpack.c.b16 %v1979, %v1975
    %v2816 = vpack.c.b16 %v1980, %v1976
    %v2817 = vpack.c.b16 %v1981, %v1977
    %v2818 = vpack.c.b16 %v1986, %v1982
    %v2819 = vpack.c.b16 %v1987, %v1983
    %v2820 = vpack.c.b16 %v1988, %v1984
    %v2821 = vpack.c.b16 %v1989, %v1985
    %v2822 = vpack.c.b16 %v1994, %v1990
    %v2823 = vpack.c.b16 %v1995, %v1991
    %v2824 = vpack.c.b16 %v1996, %v1992
    %v2825 = vpack.c.b16 %v1997, %v1993
    %v2826 = vpack.c.b16 %v2002, %v1998
    %v2827 = vpack.c.b16 %v2003, %v1999
    %v2828 = vpack.c.b16 %v2004, %v2000
    %v2829 = vpack.c.b16 %v2005, %v2001
    %v2830 = vpack.c.b16 %v2010, %v2006
    %v2831 = vpack.c.b16 %v2011, %v2007
    %v2832 = vpack.c.b16 %v2012, %v2008
    %v2833 = vpack.c.b16 %v2013, %v2009
    %v2834 = vpack.c.b16 %v2018, %v2014
    %v2835 = vpack.c.b16 %v2019, %v2015
    %v2836 = vpack.c.b16 %v2020, %v2016
    %v2837 = vpack.c.b16 %v2021, %v2017
    %v2838 = vpack.c.b16 %v2026, %v2022
    %v2839 = vpack.c.b16 %v2027, %v2023
    %v2840 = vpack.c.b16 %v2028, %v2024
    %v2841 = vpack.c.b16 %v2029, %v2025
    %v2842 = vpack.c.b16 %v2034, %v2030
    %v2843 = vpack.c.b16 %v2035, %v2031
    %v2844 = vpack.c.b16 %v2036, %v2032
    %v2845 = vpack.c.b16 %v2037, %v2033
    %v2846 = vpack.c.b16 %v2042, %v2038
    %v2847 = vpack.c.b16 %v2043, %v2039
    %v2848 = vpack.c.b16 %v2044, %v2040
    %v2849 = vpack.c.b16 %v2045, %v2041
    %v2850 = vpack.c.b16 %v2050, %v2046
    %v2851 = vpack.c.b16 %v2051, %v2047
    %v2852 = vpack.c.b16 %v2052, %v2048
    %v2853 = vpack.c.b16 %v2053, %v2049
    %v2854 = vpack.c.b16 %v2058, %v2054
    %v2855 = vpack.c.b16 %v2059, %v2055
    %v2856 = vpack.c.b16 %v2060, %v2056
    %v2857 = vpack.c.b16 %v2061, %v2057
    %v2858 = vpack.c.b16 %v2066, %v2062
    %v2859 = vpack.c.b16 %v2067, %v2063
    %v2860 = vpack.c.b16 %v2068, %v2064
    %v2861 = vpack.c.b16 %v2069, %v2065
    %v2862 = vpack.c.b16 %v2074, %v2070
    %v2863 = vpack.c.b16 %v2075, %v2071
    %v2864 = vpack.c.b16 %v2076, %v2072
    %v2865 = vpack.c.b16 %v2077, %v2073
    %v2866 = vpack.c.b16 %v2082, %v2078
    %v2867 = vpack.c.b16 %v2083, %v2079
    %v2868 = vpack.c.b16 %v2084, %v2080
    %v2869 = vpack.c.b16 %v2085, %v2081
    %v2870 = vpack.c.b16 %v2090, %v2086
    %v2871 = vpack.c.b16 %v2091, %v2087
    %v2872 = vpack.c.b16 %v2092, %v2088
    %v2873 = vpack.c.b16 %v2093, %v2089
    %v2874 = vpack.c.b16 %v2098, %v2094
    %v2875 = vpack.c.b16 %v2099, %v2095
    %v2876 = vpack.c.b16 %v2100, %v2096
    %v2877 = vpack.c.b16 %v2101, %v2097
    %v2878 = vpack.c.b16 %v2106, %v2102
    %v2879 = vpack.c.b16 %v2107, %v2103
    %v2880 = vpack.c.b16 %v2108, %v2104
    %v2881 = vpack.c.b16 %v2109, %v2105
    %v2882 = vpack.c.b16 %v2114, %v2110
    %v2883 = vpack.c.b16 %v2115, %v2111
    %v2884 = vpack.c.b16 %v2116, %v2112
    %v2885 = vpack.c.b16 %v2117, %v2113
    %v2886 = vpack.c.b16 %v2122, %v2118
    %v2887 = vpack.c.b16 %v2123, %v2119
    %v2888 = vpack.c.b16 %v2124, %v2120
    %v2889 = vpack.c.b16 %v2125, %v2121
    %v2890 = vpack.c.b16 %v2130, %v2126
    %v2891 = vpack.c.b16 %v2131, %v2127
    %v2892 = vpack.c.b16 %v2132, %v2128
    %v2893 = vpack.c.b16 %v2133, %v2129
    %v2894 = vpack.c.b16 %v2138, %v2134
    %v2895 = vpack.c.b16 %v2139, %v2135
    %v2896 = vpack.c.b16 %v2140, %v2136
    %v2897 = vpack.c.b16 %v2141, %v2137
    %v2898 = vpack.c.b16 %v2146, %v2142
    %v2899 = vpack.c.b16 %v2147, %v2143
    %v2900 = vpack.c.b16 %v2148, %v2144
    %v2901 = vpack.c.b16 %v2149, %v2145
    %v2902 = vpack.c.b16 %v2154, %v2150
    %v2903 = vpack.c.b16 %v2155, %v2151
    %v2904 = vpack.c.b16 %v2156, %v2152
    %v2905 = vpack.c.b16 %v2157, %v2153
    %v2906 = vpack.c.b16 %v2162, %v2158
    %v2907 = vpack.c.b16 %v2163, %v2159
    %v2908 = vpack.c.b16 %v2164, %v2160
    %v2909 = vpack.c.b16 %v2165, %v2161
    %v2910 = vpack.c.b16 %v2170, %v2166
    %v2911 = vpack.c.b16 %v2171, %v2167
    %v2912 = vpack.c.b16 %v2172, %v2168
    %v2913 = vpack.c.b16 %v2173, %v2169
    %v2914 = vpack.c.b16 %v2178, %v2174
    %v2915 = vpack.c.b16 %v2179, %v2175
    %v2916 = vpack.c.b16 %v2180, %v2176
    %v2917 = vpack.c.b16 %v2181, %v2177
    %v2918 = vpack.c.b16 %v2186, %v2182
    %v2919 = vpack.c.b16 %v2187, %v2183
    %v2920 = vpack.c.b16 %v2188, %v2184
    %v2921 = vpack.c.b16 %v2189, %v2185
    %v2922 = vpack.c.b16 %v2194, %v2190
    %v2923 = vpack.c.b16 %v2195, %v2191
    %v2924 = vpack.c.b16 %v2196, %v2192
    %v2925 = vpack.c.b16 %v2197, %v2193
    %v2926 = vpack.c.b16 %v2202, %v2198
    %v2927 = vpack.c.b16 %v2203, %v2199
    %v2928 = vpack.c.b16 %v2204, %v2200
    %v2929 = vpack.c.b16 %v2205, %v2201
    %v2930 = vpack.c.b16 %v2210, %v2206
    %v2931 = vpack.c.b16 %v2211, %v2207
    %v2932 = vpack.c.b16 %v2212, %v2208
    %v2933 = vpack.c.b16 %v2213, %v2209
    %v2934 = vpack.c.b16 %v2218, %v2214
    %v2935 = vpack.c.b16 %v2219, %v2215
    %v2936 = vpack.c.b16 %v2220, %v2216
    %v2937 = vpack.c.b16 %v2221, %v2217
    %v2938 = vpack.c.b16 %v2226, %v2222
    %v2939 = vpack.c.b16 %v2227, %v2223
    %v2940 = vpack.c.b16 %v2228, %v2224
    %v2941 = vpack.c.b16 %v2229, %v2225
    %v2942 = vpack.c.b16 %v2234, %v2230
    %v2943 = vpack.c.b16 %v2235, %v2231
    %v2944 = vpack.c.b16 %v2236, %v2232
    %v2945 = vpack.c.b16 %v2237, %v2233
    %v2946 = vpack.c.b16 %v2242, %v2238
    %v2947 = vpack.c.b16 %v2243, %v2239
    %v2948 = vpack.c.b16 %v2244, %v2240
    %v2949 = vpack.c.b16 %v2245, %v2241
    %v2950 = vpack.c.b16 %v2250, %v2246
    %v2951 = vpack.c.b16 %v2251, %v2247
    %v2952 = vpack.c.b16 %v2252, %v2248
    %v2953 = vpack.c.b16 %v2253, %v2249
    %v2954 = vpack.c.b16 %v2258, %v2254
    %v2955 = vpack.c.b16 %v2259, %v2255
    %v2956 = vpack.c.b16 %v2260, %v2256
    %v2957 = vpack.c.b16 %v2261, %v2257
    %v2958 = vpack.c.b16 %v2266, %v2262
    %v2959 = vpack.c.b16 %v2267, %v2263
    %v2960 = vpack.c.b16 %v2268, %v2264
    %v2961 = vpack.c.b16 %v2269, %v2265
    %v2962 = vpack.c.b16 %v2274, %v2270
    %v2963 = vpack.c.b16 %v2275, %v2271
    %v2964 = vpack.c.b16 %v2276, %v2272
    %v2965 = vpack.c.b16 %v2277, %v2273
    %v2966 = vpack.c.b16 %v2282, %v2278
    %v2967 = vpack.c.b16 %v2283, %v2279
    %v2968 = vpack.c.b16 %v2284, %v2280
    %v2969 = vpack.c.b16 %v2285, %v2281
    %v2970 = vpack.c.b16 %v2290, %v2286
    %v2971 = vpack.c.b16 %v2291, %v2287
    %v2972 = vpack.c.b16 %v2292, %v2288
    %v2973 = vpack.c.b16 %v2293, %v2289
    %v2974 = vpack.c.b16 %v2298, %v2294
    %v2975 = vpack.c.b16 %v2299, %v2295
    %v2976 = vpack.c.b16 %v2300, %v2296
    %v2977 = vpack.c.b16 %v2301, %v2297
    %v2978 = vpack.c.b16 %v2306, %v2302
    %v2979 = vpack.c.b16 %v2307, %v2303
    %v2980 = vpack.c.b16 %v2308, %v2304
    %v2981 = vpack.c.b16 %v2309, %v2305
    %v2982 = vpack.c.b16 %v2314, %v2310
    %v2983 = vpack.c.b16 %v2315, %v2311
    %v2984 = vpack.c.b16 %v2316, %v2312
    %v2985 = vpack.c.b16 %v2317, %v2313
    %v2986 = vpack.c.b16 %v2322, %v2318
    %v2987 = vpack.c.b16 %v2323, %v2319
    %v2988 = vpack.c.b16 %v2324, %v2320
    %v2989 = vpack.c.b16 %v2325, %v2321
    %v2990 = vpack.c.b16 %v2330, %v2326
    %v2991 = vpack.c.b16 %v2331, %v2327
    %v2992 = vpack.c.b16 %v2332, %v2328
    %v2993 = vpack.c.b16 %v2333, %v2329
    %v2994 = vpack.c.b16 %v2338, %v2334
    %v2995 = vpack.c.b16 %v2339, %v2335
    %v2996 = vpack.c.b16 %v2340, %v2336
    %v2997 = vpack.c.b16 %v2341, %v2337
    %v2998 = vpack.c.b16 %v2346, %v2342
    %v2999 = vpack.c.b16 %v2347, %v2343
    %v3000 = vpack.c.b16 %v2348, %v2344
    %v3001 = vpack.c.b16 %v2349, %v2345
    %v3002 = vpack.c.b16 %v2354, %v2350
    %v3003 = vpack.c.b16 %v2355, %v2351
    %v3004 = vpack.c.b16 %v2356, %v2352
    %v3005 = vpack.c.b16 %v2357, %v2353
    %v3006 = vpack.c.b16 %v2362, %v2358
    %v3007 = vpack.c.b16 %v2363, %v2359
    %v3008 = vpack.c.b16 %v2364, %v2360
    %v3009 = vpack.c.b16 %v2365, %v2361
    %v3010 = vpack.c.b16 %v2370, %v2366
    %v3011 = vpack.c.b16 %v2371, %v2367
    %v3012 = vpack.c.b16 %v2372, %v2368
    %v3013 = vpack.c.b16 %v2373, %v2369
    %v3014 = vpack.c.b16 %v2378, %v2374
    %v3015 = vpack.c.b16 %v2379, %v2375
    %v3016 = vpack.c.b16 %v2380, %v2376
    %v3017 = vpack.c.b16 %v2381, %v2377
    %v3018 = vpack.c.b16 %v2386, %v2382
    %v3019 = vpack.c.b16 %v2387, %v2383
    %v3020 = vpack.c.b16 %v2388, %v2384
    %v3021 = vpack.c.b16 %v2389, %v2385
    %v3022 = vpack.c.b16 %v2394, %v2390
    %v3023 = vpack.c.b16 %v2395, %v2391
    %v3024 = vpack.c.b16 %v2396, %v2392
    %v3025 = vpack.c.b16 %v2397, %v2393
    %v3026 = vpack.c.b16 %v2402, %v2398
    %v3027 = vpack.c.b16 %v2403, %v2399
    %v3028 = vpack.c.b16 %v2404, %v2400
    %v3029 = vpack.c.b16 %v2405, %v2401
    %v3030 = vpack.c.b16 %v2410, %v2406
    %v3031 = vpack.c.b16 %v2411, %v2407
    %v3032 = vpack.c.b16 %v2412, %v2408
    %v3033 = vpack.c.b16 %v2413, %v2409
    %v3034 = vpack.c.b16 %v2418, %v2414
    %v3035 = vpack.c.b16 %v2419, %v2415
    %v3036 = vpack.c.b16 %v2420, %v2416
    %v3037 = vpack.c.b16 %v2421, %v2417
    %v3038 = vpack.c.b16 %v2426, %v2422
    %v3039 = vpack.c.b16 %v2427, %v2423
    %v3040 = vpack.c.b16 %v2428, %v2424
    %v3041 = vpack.c.b16 %v2429, %v2425
    %v3042 = vpack.c.b16 %v2434, %v2430
    %v3043 = vpack.c.b16 %v2435, %v2431
    %v3044 = vpack.c.b16 %v2436, %v2432
    %v3045 = vpack.c.b16 %v2437, %v2433
    %v3046 = vpack.c.b16 %v2442, %v2438
    %v3047 = vpack.c.b16 %v2443, %v2439
    %v3048 = vpack.c.b16 %v2444, %v2440
    %v3049 = vpack.c.b16 %v2445, %v2441
    %v3050 = vpack.c.b16 %v2450, %v2446
    %v3051 = vpack.c.b16 %v2451, %v2447
    %v3052 = vpack.c.b16 %v2452, %v2448
    %v3053 = vpack.c.b16 %v2453, %v2449
    %v3054 = vpack.c.b16 %v2458, %v2454
    %v3055 = vpack.c.b16 %v2459, %v2455
    %v3056 = vpack.c.b16 %v2460, %v2456
    %v3057 = vpack.c.b16 %v2461, %v2457
    %v3058 = vpack.c.b16 %v2466, %v2462
    %v3059 = vpack.c.b16 %v2467, %v2463
    %v3060 = vpack.c.b16 %v2468, %v2464
    %v3061 = vpack.c.b16 %v2469, %v2465
    %v3062 = vpack.c.b16 %v2474, %v2470
    %v3063 = vpack.c.b16 %v2475, %v2471
    %v3064 = vpack.c.b16 %v2476, %v2472
    %v3065 = vpack.c.b16 %v2477, %v2473
    %v3066 = vpack.c.b16 %v2482, %v2478
    %v3067 = vpack.c.b16 %v2483, %v2479
    %v3068 = vpack.c.b16 %v2484, %v2480
    %v3069 = vpack.c.b16 %v2485, %v2481
    %v3070 = vpack.c.b16 %v2490, %v2486
    %v3071 = vpack.c.b16 %v2491, %v2487
    %v3072 = vpack.c.b16 %v2492, %v2488
    %v3073 = vpack.c.b16 %v2493, %v2489
    %v3074 = vpack.c.b16 %v2498, %v2494
    %v3075 = vpack.c.b16 %v2499, %v2495
    %v3076 = vpack.c.b16 %v2500, %v2496
    %v3077 = vpack.c.b16 %v2501, %v2497
    %3654 = vmatprep.subr.bf16.mxu0 %v2531
    %3655 = vmatpush1.bf16.msra.mxu0 %v2530
    %3656 = vmatprep.subr.bf16.mxu0 %v2527
    %3657 = vmatpush1.bf16.msra.mxu0 %v2526
    %3658 = vmatprep.subr.bf16.mxu0 %v2523
    %3659 = vmatpush1.bf16.msra.mxu0 %v2522
    %3660 = vmatprep.subr.bf16.mxu0 %v2519
    %3661 = vmatpush1.bf16.msra.mxu0 %v2518
    %3662 = vmatprep.subr.bf16.mxu0 %v2515
    %3663 = vmatpush1.bf16.msra.mxu0 %v2514
    %3664 = vmatprep.subr.bf16.mxu0 %v2511
    %3665 = vmatpush1.bf16.msra.mxu0 %v2510
    %3666 = vmatprep.subr.bf16.mxu0 %v2507
    %3667 = vmatpush1.bf16.msra.mxu0 %v2506
    %3668 = vmatprep.subr.bf16.mxu0 %v2503
    %3669 = vmatpush1.bf16.msra.mxu0 %v2502
    %3670 = vmatprep.subr.bf16.mxu0 %v2563
    %3671 = vmatpush2.bf16.msra.mxu0 %v2562
    %3672 = vmatprep.subr.bf16.mxu0 %v2559
    %3673 = vmatpush2.bf16.msra.mxu0 %v2558
    %3674 = vmatprep.subr.bf16.mxu0 %v2555
    %3675 = vmatpush2.bf16.msra.mxu0 %v2554
    %3676 = vmatprep.subr.bf16.mxu0 %v2551
    %3677 = vmatpush2.bf16.msra.mxu0 %v2550
    %3678 = vmatprep.subr.bf16.mxu0 %v2547
    %3679 = vmatpush2.bf16.msra.mxu0 %v2546
    %3680 = vmatprep.subr.bf16.mxu0 %v2543
    %3681 = vmatpush2.bf16.msra.mxu0 %v2542
    %3682 = vmatprep.subr.bf16.mxu0 %v2539
    %3683 = vmatpush2.bf16.msra.mxu0 %v2538
    %3684 = vmatprep.subr.bf16.mxu0 %v2535
    %3685 = vmatpush2.bf16.msra.mxu0 %v2534
    %3686 = vmatprep.mubr.bf16.mxu0 %v739
    %3687 = vmatmul.mubr.bf16.gmra.mxu0 %v738
    %v3688 = vpop.f32.mrf.mxu0
    %v3689 = vadd.f32 %v694, %v3688
    %v3690 = vpop.f32.mrf.mxu0
    %v3691 = vadd.f32 %v698, %v3690
    %v3692 = vpop.f32.mrf.mxu0
    %v3693 = vpop.f32.mrf.mxu0
    %3694 = vdwg.mxu0
    %3695 = vmatprep.subr.bf16.mxu0 %v2595
    %3696 = vmatpush1.bf16.msra.mxu0 %v2594
    %3697 = vmatprep.subr.bf16.mxu0 %v2591
    %3698 = vmatpush1.bf16.msra.mxu0 %v2590
    %3699 = vmatprep.subr.bf16.mxu0 %v2587
    %3700 = vmatpush1.bf16.msra.mxu0 %v2586
    %3701 = vmatprep.subr.bf16.mxu0 %v2583
    %3702 = vmatpush1.bf16.msra.mxu0 %v2582
    %3703 = vmatprep.subr.bf16.mxu0 %v2579
    %3704 = vmatpush1.bf16.msra.mxu0 %v2578
    %3705 = vmatprep.subr.bf16.mxu0 %v2575
    %3706 = vmatpush1.bf16.msra.mxu0 %v2574
    %3707 = vmatprep.subr.bf16.mxu0 %v2571
    %3708 = vmatpush1.bf16.msra.mxu0 %v2570
    %3709 = vmatprep.subr.bf16.mxu0 %v2567
    %3710 = vmatpush1.bf16.msra.mxu0 %v2566
    %3711 = vmatprep.subr.bf16.mxu0 %v2627
    %3712 = vmatpush2.bf16.msra.mxu0 %v2626
    %3713 = vmatprep.subr.bf16.mxu0 %v2623
    %3714 = vmatpush2.bf16.msra.mxu0 %v2622
    %3715 = vmatprep.subr.bf16.mxu0 %v2619
    %3716 = vmatpush2.bf16.msra.mxu0 %v2618
    %3717 = vmatprep.subr.bf16.mxu0 %v2615
    %3718 = vmatpush2.bf16.msra.mxu0 %v2614
    %3719 = vmatprep.subr.bf16.mxu0 %v2611
    %3720 = vmatpush2.bf16.msra.mxu0 %v2610
    %3721 = vmatprep.subr.bf16.mxu0 %v2607
    %3722 = vmatpush2.bf16.msra.mxu0 %v2606
    %3723 = vmatprep.subr.bf16.mxu0 %v2603
    %3724 = vmatpush2.bf16.msra.mxu0 %v2602
    %3725 = vmatprep.subr.bf16.mxu0 %v2599
    %3726 = vmatpush2.bf16.msra.mxu0 %v2598
    %3727 = vmatprep.mubr.bf16.mxu0 %v741
    %3728 = vmatmul.mubr.bf16.gmra.mxu0 %v740
    %v3729 = vpop.f32.mrf.mxu0
    %v3730 = vadd.f32 %v3689, %v3729
    %v3731 = vpop.f32.mrf.mxu0
    %v3732 = vadd.f32 %v3691, %v3731
    %v3733 = vpop.f32.mrf.mxu0
    %v3734 = vpop.f32.mrf.mxu0
    %3735 = vdwg.mxu0
    %3736 = vmatprep.subr.bf16.mxu0 %v2659
    %3737 = vmatpush1.bf16.msra.mxu0 %v2658
    %3738 = vmatprep.subr.bf16.mxu0 %v2655
    %3739 = vmatpush1.bf16.msra.mxu0 %v2654
    %3740 = vmatprep.subr.bf16.mxu0 %v2651
    %3741 = vmatpush1.bf16.msra.mxu0 %v2650
    %3742 = vmatprep.subr.bf16.mxu0 %v2647
    %3743 = vmatpush1.bf16.msra.mxu0 %v2646
    %3744 = vmatprep.subr.bf16.mxu0 %v2643
    %3745 = vmatpush1.bf16.msra.mxu0 %v2642
    %3746 = vmatprep.subr.bf16.mxu0 %v2639
    %3747 = vmatpush1.bf16.msra.mxu0 %v2638
    %3748 = vmatprep.subr.bf16.mxu0 %v2635
    %3749 = vmatpush1.bf16.msra.mxu0 %v2634
    %3750 = vmatprep.subr.bf16.mxu0 %v2631
    %3751 = vmatpush1.bf16.msra.mxu0 %v2630
    %3752 = vmatprep.subr.bf16.mxu0 %v2691
    %3753 = vmatpush2.bf16.msra.mxu0 %v2690
    %3754 = vmatprep.subr.bf16.mxu0 %v2687
    %3755 = vmatpush2.bf16.msra.mxu0 %v2686
    %3756 = vmatprep.subr.bf16.mxu0 %v2683
    %3757 = vmatpush2.bf16.msra.mxu0 %v2682
    %3758 = vmatprep.subr.bf16.mxu0 %v2679
    %3759 = vmatpush2.bf16.msra.mxu0 %v2678
    %3760 = vmatprep.subr.bf16.mxu0 %v2675
    %3761 = vmatpush2.bf16.msra.mxu0 %v2674
    %3762 = vmatprep.subr.bf16.mxu0 %v2671
    %3763 = vmatpush2.bf16.msra.mxu0 %v2670
    %3764 = vmatprep.subr.bf16.mxu0 %v2667
    %3765 = vmatpush2.bf16.msra.mxu0 %v2666
    %3766 = vmatprep.subr.bf16.mxu0 %v2663
    %3767 = vmatpush2.bf16.msra.mxu0 %v2662
    %3768 = vmatprep.mubr.bf16.mxu0 %v743
    %3769 = vmatmul.mubr.bf16.gmra.mxu0 %v742
    %v3770 = vpop.f32.mrf.mxu0
    %v3771 = vadd.f32 %v3730, %v3770
    %v3772 = vpop.f32.mrf.mxu0
    %v3773 = vadd.f32 %v3732, %v3772
    %v3774 = vpop.f32.mrf.mxu0
    %v3775 = vpop.f32.mrf.mxu0
    %3776 = vdwg.mxu0
    %3777 = vmatprep.subr.bf16.mxu0 %v2723
    %3778 = vmatpush1.bf16.msra.mxu0 %v2722
    %3779 = vmatprep.subr.bf16.mxu0 %v2719
    %3780 = vmatpush1.bf16.msra.mxu0 %v2718
    %3781 = vmatprep.subr.bf16.mxu0 %v2715
    %3782 = vmatpush1.bf16.msra.mxu0 %v2714
    %3783 = vmatprep.subr.bf16.mxu0 %v2711
    %3784 = vmatpush1.bf16.msra.mxu0 %v2710
    %3785 = vmatprep.subr.bf16.mxu0 %v2707
    %3786 = vmatpush1.bf16.msra.mxu0 %v2706
    %3787 = vmatprep.subr.bf16.mxu0 %v2703
    %3788 = vmatpush1.bf16.msra.mxu0 %v2702
    %3789 = vmatprep.subr.bf16.mxu0 %v2699
    %3790 = vmatpush1.bf16.msra.mxu0 %v2698
    %3791 = vmatprep.subr.bf16.mxu0 %v2695
    %3792 = vmatpush1.bf16.msra.mxu0 %v2694
    %3793 = vmatprep.subr.bf16.mxu0 %v2755
    %3794 = vmatpush2.bf16.msra.mxu0 %v2754
    %3795 = vmatprep.subr.bf16.mxu0 %v2751
    %3796 = vmatpush2.bf16.msra.mxu0 %v2750
    %3797 = vmatprep.subr.bf16.mxu0 %v2747
    %3798 = vmatpush2.bf16.msra.mxu0 %v2746
    %3799 = vmatprep.subr.bf16.mxu0 %v2743
    %3800 = vmatpush2.bf16.msra.mxu0 %v2742
    %3801 = vmatprep.subr.bf16.mxu0 %v2739
    %3802 = vmatpush2.bf16.msra.mxu0 %v2738
    %3803 = vmatprep.subr.bf16.mxu0 %v2735
    %3804 = vmatpush2.bf16.msra.mxu0 %v2734
    %3805 = vmatprep.subr.bf16.mxu0 %v2731
    %3806 = vmatpush2.bf16.msra.mxu0 %v2730
    %3807 = vmatprep.subr.bf16.mxu0 %v2727
    %3808 = vmatpush2.bf16.msra.mxu0 %v2726
    %3809 = vmatprep.mubr.bf16.mxu0 %v745
    %3810 = vmatmul.mubr.bf16.gmra.mxu0 %v744
    %v3811 = vpop.f32.mrf.mxu0
    %v3812 = vadd.f32 %v3771, %v3811
    %v3813 = vpop.f32.mrf.mxu0
    %v3814 = vadd.f32 %v3773, %v3813
    %v3815 = vpop.f32.mrf.mxu0
    %v3816 = vpop.f32.mrf.mxu0
    %3817 = vdwg.mxu0
    %3818 = vmatprep.subr.bf16.mxu0 %v2787
    %3819 = vmatpush1.bf16.msra.mxu0 %v2786
    %3820 = vmatprep.subr.bf16.mxu0 %v2783
    %3821 = vmatpush1.bf16.msra.mxu0 %v2782
    %3822 = vmatprep.subr.bf16.mxu0 %v2779
    %3823 = vmatpush1.bf16.msra.mxu0 %v2778
    %3824 = vmatprep.subr.bf16.mxu0 %v2775
    %3825 = vmatpush1.bf16.msra.mxu0 %v2774
    %3826 = vmatprep.subr.bf16.mxu0 %v2771
    %3827 = vmatpush1.bf16.msra.mxu0 %v2770
    %3828 = vmatprep.subr.bf16.mxu0 %v2767
    %3829 = vmatpush1.bf16.msra.mxu0 %v2766
    %3830 = vmatprep.subr.bf16.mxu0 %v2763
    %3831 = vmatpush1.bf16.msra.mxu0 %v2762
    %3832 = vmatprep.subr.bf16.mxu0 %v2759
    %3833 = vmatpush1.bf16.msra.mxu0 %v2758
    %3834 = vmatprep.subr.bf16.mxu0 %v2819
    %3835 = vmatpush2.bf16.msra.mxu0 %v2818
    %3836 = vmatprep.subr.bf16.mxu0 %v2815
    %3837 = vmatpush2.bf16.msra.mxu0 %v2814
    %3838 = vmatprep.subr.bf16.mxu0 %v2811
    %3839 = vmatpush2.bf16.msra.mxu0 %v2810
    %3840 = vmatprep.subr.bf16.mxu0 %v2807
    %3841 = vmatpush2.bf16.msra.mxu0 %v2806
    %3842 = vmatprep.subr.bf16.mxu0 %v2803
    %3843 = vmatpush2.bf16.msra.mxu0 %v2802
    %3844 = vmatprep.subr.bf16.mxu0 %v2799
    %3845 = vmatpush2.bf16.msra.mxu0 %v2798
    %3846 = vmatprep.subr.bf16.mxu0 %v2795
    %3847 = vmatpush2.bf16.msra.mxu0 %v2794
    %3848 = vmatprep.subr.bf16.mxu0 %v2791
    %3849 = vmatpush2.bf16.msra.mxu0 %v2790
    %3850 = vmatprep.mubr.bf16.mxu0 %v747
    %3851 = vmatmul.mubr.bf16.gmra.mxu0 %v746
    %v3852 = vpop.f32.mrf.mxu0
    %v3853 = vadd.f32 %v3812, %v3852
    %v3854 = vpop.f32.mrf.mxu0
    %v3855 = vadd.f32 %v3814, %v3854
    %v3856 = vpop.f32.mrf.mxu0
    %v3857 = vpop.f32.mrf.mxu0
    %3858 = vdwg.mxu0
    %3859 = vmatprep.subr.bf16.mxu0 %v2851
    %3860 = vmatpush1.bf16.msra.mxu0 %v2850
    %3861 = vmatprep.subr.bf16.mxu0 %v2847
    %3862 = vmatpush1.bf16.msra.mxu0 %v2846
    %3863 = vmatprep.subr.bf16.mxu0 %v2843
    %3864 = vmatpush1.bf16.msra.mxu0 %v2842
    %3865 = vmatprep.subr.bf16.mxu0 %v2839
    %3866 = vmatpush1.bf16.msra.mxu0 %v2838
    %3867 = vmatprep.subr.bf16.mxu0 %v2835
    %3868 = vmatpush1.bf16.msra.mxu0 %v2834
    %3869 = vmatprep.subr.bf16.mxu0 %v2831
    %3870 = vmatpush1.bf16.msra.mxu0 %v2830
    %3871 = vmatprep.subr.bf16.mxu0 %v2827
    %3872 = vmatpush1.bf16.msra.mxu0 %v2826
    %3873 = vmatprep.subr.bf16.mxu0 %v2823
    %3874 = vmatpush1.bf16.msra.mxu0 %v2822
    %3875 = vmatprep.subr.bf16.mxu0 %v2883
    %3876 = vmatpush2.bf16.msra.mxu0 %v2882
    %3877 = vmatprep.subr.bf16.mxu0 %v2879
    %3878 = vmatpush2.bf16.msra.mxu0 %v2878
    %3879 = vmatprep.subr.bf16.mxu0 %v2875
    %3880 = vmatpush2.bf16.msra.mxu0 %v2874
    %3881 = vmatprep.subr.bf16.mxu0 %v2871
    %3882 = vmatpush2.bf16.msra.mxu0 %v2870
    %3883 = vmatprep.subr.bf16.mxu0 %v2867
    %3884 = vmatpush2.bf16.msra.mxu0 %v2866
    %3885 = vmatprep.subr.bf16.mxu0 %v2863
    %3886 = vmatpush2.bf16.msra.mxu0 %v2862
    %3887 = vmatprep.subr.bf16.mxu0 %v2859
    %3888 = vmatpush2.bf16.msra.mxu0 %v2858
    %3889 = vmatprep.subr.bf16.mxu0 %v2855
    %3890 = vmatpush2.bf16.msra.mxu0 %v2854
    %3891 = vmatprep.mubr.bf16.mxu0 %v749
    %3892 = vmatmul.mubr.bf16.gmra.mxu0 %v748
    %v3893 = vpop.f32.mrf.mxu0
    %v3894 = vadd.f32 %v3853, %v3893
    %v3895 = vpop.f32.mrf.mxu0
    %v3896 = vadd.f32 %v3855, %v3895
    %v3897 = vpop.f32.mrf.mxu0
    %v3898 = vpop.f32.mrf.mxu0
    %3899 = vdwg.mxu0
    %3900 = vmatprep.subr.bf16.mxu0 %v2915
    %3901 = vmatpush1.bf16.msra.mxu0 %v2914
    %3902 = vmatprep.subr.bf16.mxu0 %v2911
    %3903 = vmatpush1.bf16.msra.mxu0 %v2910
    %3904 = vmatprep.subr.bf16.mxu0 %v2907
    %3905 = vmatpush1.bf16.msra.mxu0 %v2906
    %3906 = vmatprep.subr.bf16.mxu0 %v2903
    %3907 = vmatpush1.bf16.msra.mxu0 %v2902
    %3908 = vmatprep.subr.bf16.mxu0 %v2899
    %3909 = vmatpush1.bf16.msra.mxu0 %v2898
    %3910 = vmatprep.subr.bf16.mxu0 %v2895
    %3911 = vmatpush1.bf16.msra.mxu0 %v2894
    %3912 = vmatprep.subr.bf16.mxu0 %v2891
    %3913 = vmatpush1.bf16.msra.mxu0 %v2890
    %3914 = vmatprep.subr.bf16.mxu0 %v2887
    %3915 = vmatpush1.bf16.msra.mxu0 %v2886
    %3916 = vmatprep.subr.bf16.mxu0 %v2947
    %3917 = vmatpush2.bf16.msra.mxu0 %v2946
    %3918 = vmatprep.subr.bf16.mxu0 %v2943
    %3919 = vmatpush2.bf16.msra.mxu0 %v2942
    %3920 = vmatprep.subr.bf16.mxu0 %v2939
    %3921 = vmatpush2.bf16.msra.mxu0 %v2938
    %3922 = vmatprep.subr.bf16.mxu0 %v2935
    %3923 = vmatpush2.bf16.msra.mxu0 %v2934
    %3924 = vmatprep.subr.bf16.mxu0 %v2931
    %3925 = vmatpush2.bf16.msra.mxu0 %v2930
    %3926 = vmatprep.subr.bf16.mxu0 %v2927
    %3927 = vmatpush2.bf16.msra.mxu0 %v2926
    %3928 = vmatprep.subr.bf16.mxu0 %v2923
    %3929 = vmatpush2.bf16.msra.mxu0 %v2922
    %3930 = vmatprep.subr.bf16.mxu0 %v2919
    %3931 = vmatpush2.bf16.msra.mxu0 %v2918
    %3932 = vmatprep.mubr.bf16.mxu0 %v751
    %3933 = vmatmul.mubr.bf16.gmra.mxu0 %v750
    %v3934 = vpop.f32.mrf.mxu0
    %v3935 = vadd.f32 %v3894, %v3934
    %v3936 = vpop.f32.mrf.mxu0
    %v3937 = vadd.f32 %v3896, %v3936
    %v3938 = vpop.f32.mrf.mxu0
    %v3939 = vpop.f32.mrf.mxu0
    %3940 = vdwg.mxu0
    %3941 = vmatprep.subr.bf16.mxu0 %v2979
    %3942 = vmatpush1.bf16.msra.mxu0 %v2978
    %3943 = vmatprep.subr.bf16.mxu0 %v2975
    %3944 = vmatpush1.bf16.msra.mxu0 %v2974
    %3945 = vmatprep.subr.bf16.mxu0 %v2971
    %3946 = vmatpush1.bf16.msra.mxu0 %v2970
    %3947 = vmatprep.subr.bf16.mxu0 %v2967
    %3948 = vmatpush1.bf16.msra.mxu0 %v2966
    %3949 = vmatprep.subr.bf16.mxu0 %v2963
    %3950 = vmatpush1.bf16.msra.mxu0 %v2962
    %3951 = vmatprep.subr.bf16.mxu0 %v2959
    %3952 = vmatpush1.bf16.msra.mxu0 %v2958
    %3953 = vmatprep.subr.bf16.mxu0 %v2955
    %3954 = vmatpush1.bf16.msra.mxu0 %v2954
    %3955 = vmatprep.subr.bf16.mxu0 %v2951
    %3956 = vmatpush1.bf16.msra.mxu0 %v2950
    %3957 = vmatprep.subr.bf16.mxu0 %v3011
    %3958 = vmatpush2.bf16.msra.mxu0 %v3010
    %3959 = vmatprep.subr.bf16.mxu0 %v3007
    %3960 = vmatpush2.bf16.msra.mxu0 %v3006
    %3961 = vmatprep.subr.bf16.mxu0 %v3003
    %3962 = vmatpush2.bf16.msra.mxu0 %v3002
    %3963 = vmatprep.subr.bf16.mxu0 %v2999
    %3964 = vmatpush2.bf16.msra.mxu0 %v2998
    %3965 = vmatprep.subr.bf16.mxu0 %v2995
    %3966 = vmatpush2.bf16.msra.mxu0 %v2994
    %3967 = vmatprep.subr.bf16.mxu0 %v2991
    %3968 = vmatpush2.bf16.msra.mxu0 %v2990
    %3969 = vmatprep.subr.bf16.mxu0 %v2987
    %3970 = vmatpush2.bf16.msra.mxu0 %v2986
    %3971 = vmatprep.subr.bf16.mxu0 %v2983
    %3972 = vmatpush2.bf16.msra.mxu0 %v2982
    %3973 = vmatprep.mubr.bf16.mxu0 %v753
    %3974 = vmatmul.mubr.bf16.gmra.mxu0 %v752
    %v3975 = vpop.f32.mrf.mxu0
    %v3976 = vadd.f32 %v3935, %v3975
    %v3977 = vpop.f32.mrf.mxu0
    %v3978 = vadd.f32 %v3937, %v3977
    %v3979 = vpop.f32.mrf.mxu0
    %v3980 = vpop.f32.mrf.mxu0
    %3981 = vdwg.mxu0
    %3982 = vmatprep.subr.bf16.mxu0 %v3043
    %3983 = vmatpush1.bf16.msra.mxu0 %v3042
    %3984 = vmatprep.subr.bf16.mxu0 %v3039
    %3985 = vmatpush1.bf16.msra.mxu0 %v3038
    %3986 = vmatprep.subr.bf16.mxu0 %v3035
    %3987 = vmatpush1.bf16.msra.mxu0 %v3034
    %3988 = vmatprep.subr.bf16.mxu0 %v3031
    %3989 = vmatpush1.bf16.msra.mxu0 %v3030
    %3990 = vmatprep.subr.bf16.mxu0 %v3027
    %3991 = vmatpush1.bf16.msra.mxu0 %v3026
    %3992 = vmatprep.subr.bf16.mxu0 %v3023
    %3993 = vmatpush1.bf16.msra.mxu0 %v3022
    %3994 = vmatprep.subr.bf16.mxu0 %v3019
    %3995 = vmatpush1.bf16.msra.mxu0 %v3018
    %3996 = vmatprep.subr.bf16.mxu0 %v3015
    %3997 = vmatpush1.bf16.msra.mxu0 %v3014
    %3998 = vmatprep.subr.bf16.mxu0 %v3075
    %3999 = vmatpush2.bf16.msra.mxu0 %v3074
    %4000 = vmatprep.subr.bf16.mxu0 %v3071
    %4001 = vmatpush2.bf16.msra.mxu0 %v3070
    %4002 = vmatprep.subr.bf16.mxu0 %v3067
    %4003 = vmatpush2.bf16.msra.mxu0 %v3066
    %4004 = vmatprep.subr.bf16.mxu0 %v3063
    %4005 = vmatpush2.bf16.msra.mxu0 %v3062
    %4006 = vmatprep.subr.bf16.mxu0 %v3059
    %4007 = vmatpush2.bf16.msra.mxu0 %v3058
    %4008 = vmatprep.subr.bf16.mxu0 %v3055
    %4009 = vmatpush2.bf16.msra.mxu0 %v3054
    %4010 = vmatprep.subr.bf16.mxu0 %v3051
    %4011 = vmatpush2.bf16.msra.mxu0 %v3050
    %4012 = vmatprep.subr.bf16.mxu0 %v3047
    %4013 = vmatpush2.bf16.msra.mxu0 %v3046
    %4014 = vmatprep.mubr.bf16.mxu0 %v755
    %4015 = vmatmul.mubr.bf16.gmra.mxu0 %v754
    %v4016 = vpop.f32.mrf.mxu0
    %v4017 = vadd.f32 %v3976, %v4016
    %v4018 = vpop.f32.mrf.mxu0
    %v4019 = vadd.f32 %v3978, %v4018
    %v4020 = vpop.f32.mrf.mxu0
    %v4021 = vpop.f32.mrf.mxu0
    %4022 = vdwg.mxu0
    %4023 = vmatprep.subr.bf16.mxu0 %v2533
    %4024 = vmatpush1.bf16.msra.mxu0 %v2532
    %4025 = vmatprep.subr.bf16.mxu0 %v2529
    %4026 = vmatpush1.bf16.msra.mxu0 %v2528
    %4027 = vmatprep.subr.bf16.mxu0 %v2525
    %4028 = vmatpush1.bf16.msra.mxu0 %v2524
    %4029 = vmatprep.subr.bf16.mxu0 %v2521
    %4030 = vmatpush1.bf16.msra.mxu0 %v2520
    %4031 = vmatprep.subr.bf16.mxu0 %v2517
    %4032 = vmatpush1.bf16.msra.mxu0 %v2516
    %4033 = vmatprep.subr.bf16.mxu0 %v2513
    %4034 = vmatpush1.bf16.msra.mxu0 %v2512
    %4035 = vmatprep.subr.bf16.mxu0 %v2509
    %4036 = vmatpush1.bf16.msra.mxu0 %v2508
    %4037 = vmatprep.subr.bf16.mxu0 %v2505
    %4038 = vmatpush1.bf16.msra.mxu0 %v2504
    %4039 = vmatprep.subr.bf16.mxu0 %v2565
    %4040 = vmatpush2.bf16.msra.mxu0 %v2564
    %4041 = vmatprep.subr.bf16.mxu0 %v2561
    %4042 = vmatpush2.bf16.msra.mxu0 %v2560
    %4043 = vmatprep.subr.bf16.mxu0 %v2557
    %4044 = vmatpush2.bf16.msra.mxu0 %v2556
    %4045 = vmatprep.subr.bf16.mxu0 %v2553
    %4046 = vmatpush2.bf16.msra.mxu0 %v2552
    %4047 = vmatprep.subr.bf16.mxu0 %v2549
    %4048 = vmatpush2.bf16.msra.mxu0 %v2548
    %4049 = vmatprep.subr.bf16.mxu0 %v2545
    %4050 = vmatpush2.bf16.msra.mxu0 %v2544
    %4051 = vmatprep.subr.bf16.mxu0 %v2541
    %4052 = vmatpush2.bf16.msra.mxu0 %v2540
    %4053 = vmatprep.subr.bf16.mxu0 %v2537
    %4054 = vmatpush2.bf16.msra.mxu0 %v2536
    %4055 = vmatprep.mubr.bf16.mxu0 %v739
    %4056 = vmatmul.mubr.bf16.gmra.mxu0 %v738
    %v4057 = vpop.f32.mrf.mxu0
    %v4058 = vadd.f32 %v702, %v4057
    %v4059 = vpop.f32.mrf.mxu0
    %v4060 = vadd.f32 %v706, %v4059
    %v4061 = vpop.f32.mrf.mxu0
    %v4062 = vpop.f32.mrf.mxu0
    %4063 = vdwg.mxu0
    %4064 = vmatprep.subr.bf16.mxu0 %v2597
    %4065 = vmatpush1.bf16.msra.mxu0 %v2596
    %4066 = vmatprep.subr.bf16.mxu0 %v2593
    %4067 = vmatpush1.bf16.msra.mxu0 %v2592
    %4068 = vmatprep.subr.bf16.mxu0 %v2589
    %4069 = vmatpush1.bf16.msra.mxu0 %v2588
    %4070 = vmatprep.subr.bf16.mxu0 %v2585
    %4071 = vmatpush1.bf16.msra.mxu0 %v2584
    %4072 = vmatprep.subr.bf16.mxu0 %v2581
    %4073 = vmatpush1.bf16.msra.mxu0 %v2580
    %4074 = vmatprep.subr.bf16.mxu0 %v2577
    %4075 = vmatpush1.bf16.msra.mxu0 %v2576
    %4076 = vmatprep.subr.bf16.mxu0 %v2573
    %4077 = vmatpush1.bf16.msra.mxu0 %v2572
    %4078 = vmatprep.subr.bf16.mxu0 %v2569
    %4079 = vmatpush1.bf16.msra.mxu0 %v2568
    %4080 = vmatprep.subr.bf16.mxu0 %v2629
    %4081 = vmatpush2.bf16.msra.mxu0 %v2628
    %4082 = vmatprep.subr.bf16.mxu0 %v2625
    %4083 = vmatpush2.bf16.msra.mxu0 %v2624
    %4084 = vmatprep.subr.bf16.mxu0 %v2621
    %4085 = vmatpush2.bf16.msra.mxu0 %v2620
    %4086 = vmatprep.subr.bf16.mxu0 %v2617
    %4087 = vmatpush2.bf16.msra.mxu0 %v2616
    %4088 = vmatprep.subr.bf16.mxu0 %v2613
    %4089 = vmatpush2.bf16.msra.mxu0 %v2612
    %4090 = vmatprep.subr.bf16.mxu0 %v2609
    %4091 = vmatpush2.bf16.msra.mxu0 %v2608
    %4092 = vmatprep.subr.bf16.mxu0 %v2605
    %4093 = vmatpush2.bf16.msra.mxu0 %v2604
    %4094 = vmatprep.subr.bf16.mxu0 %v2601
    %4095 = vmatpush2.bf16.msra.mxu0 %v2600
    %4096 = vmatprep.mubr.bf16.mxu0 %v741
    %4097 = vmatmul.mubr.bf16.gmra.mxu0 %v740
    %v4098 = vpop.f32.mrf.mxu0
    %v4099 = vadd.f32 %v4058, %v4098
    %v4100 = vpop.f32.mrf.mxu0
    %v4101 = vadd.f32 %v4060, %v4100
    %v4102 = vpop.f32.mrf.mxu0
    %v4103 = vpop.f32.mrf.mxu0
    %4104 = vdwg.mxu0
    %4105 = vmatprep.subr.bf16.mxu0 %v2661
    %4106 = vmatpush1.bf16.msra.mxu0 %v2660
    %4107 = vmatprep.subr.bf16.mxu0 %v2657
    %4108 = vmatpush1.bf16.msra.mxu0 %v2656
    %4109 = vmatprep.subr.bf16.mxu0 %v2653
    %4110 = vmatpush1.bf16.msra.mxu0 %v2652
    %4111 = vmatprep.subr.bf16.mxu0 %v2649
    %4112 = vmatpush1.bf16.msra.mxu0 %v2648
    %4113 = vmatprep.subr.bf16.mxu0 %v2645
    %4114 = vmatpush1.bf16.msra.mxu0 %v2644
    %4115 = vmatprep.subr.bf16.mxu0 %v2641
    %4116 = vmatpush1.bf16.msra.mxu0 %v2640
    %4117 = vmatprep.subr.bf16.mxu0 %v2637
    %4118 = vmatpush1.bf16.msra.mxu0 %v2636
    %4119 = vmatprep.subr.bf16.mxu0 %v2633
    %4120 = vmatpush1.bf16.msra.mxu0 %v2632
    %4121 = vmatprep.subr.bf16.mxu0 %v2693
    %4122 = vmatpush2.bf16.msra.mxu0 %v2692
    %4123 = vmatprep.subr.bf16.mxu0 %v2689
    %4124 = vmatpush2.bf16.msra.mxu0 %v2688
    %4125 = vmatprep.subr.bf16.mxu0 %v2685
    %4126 = vmatpush2.bf16.msra.mxu0 %v2684
    %4127 = vmatprep.subr.bf16.mxu0 %v2681
    %4128 = vmatpush2.bf16.msra.mxu0 %v2680
    %4129 = vmatprep.subr.bf16.mxu0 %v2677
    %4130 = vmatpush2.bf16.msra.mxu0 %v2676
    %4131 = vmatprep.subr.bf16.mxu0 %v2673
    %4132 = vmatpush2.bf16.msra.mxu0 %v2672
    %4133 = vmatprep.subr.bf16.mxu0 %v2669
    %4134 = vmatpush2.bf16.msra.mxu0 %v2668
    %4135 = vmatprep.subr.bf16.mxu0 %v2665
    %4136 = vmatpush2.bf16.msra.mxu0 %v2664
    %4137 = vmatprep.mubr.bf16.mxu0 %v743
    %4138 = vmatmul.mubr.bf16.gmra.mxu0 %v742
    %v4139 = vpop.f32.mrf.mxu0
    %v4140 = vadd.f32 %v4099, %v4139
    %v4141 = vpop.f32.mrf.mxu0
    %v4142 = vadd.f32 %v4101, %v4141
    %v4143 = vpop.f32.mrf.mxu0
    %v4144 = vpop.f32.mrf.mxu0
    %4145 = vdwg.mxu0
    %4146 = vmatprep.subr.bf16.mxu0 %v2725
    %4147 = vmatpush1.bf16.msra.mxu0 %v2724
    %4148 = vmatprep.subr.bf16.mxu0 %v2721
    %4149 = vmatpush1.bf16.msra.mxu0 %v2720
    %4150 = vmatprep.subr.bf16.mxu0 %v2717
    %4151 = vmatpush1.bf16.msra.mxu0 %v2716
    %4152 = vmatprep.subr.bf16.mxu0 %v2713
    %4153 = vmatpush1.bf16.msra.mxu0 %v2712
    %4154 = vmatprep.subr.bf16.mxu0 %v2709
    %4155 = vmatpush1.bf16.msra.mxu0 %v2708
    %4156 = vmatprep.subr.bf16.mxu0 %v2705
    %4157 = vmatpush1.bf16.msra.mxu0 %v2704
    %4158 = vmatprep.subr.bf16.mxu0 %v2701
    %4159 = vmatpush1.bf16.msra.mxu0 %v2700
    %4160 = vmatprep.subr.bf16.mxu0 %v2697
    %4161 = vmatpush1.bf16.msra.mxu0 %v2696
    %4162 = vmatprep.subr.bf16.mxu0 %v2757
    %4163 = vmatpush2.bf16.msra.mxu0 %v2756
    %4164 = vmatprep.subr.bf16.mxu0 %v2753
    %4165 = vmatpush2.bf16.msra.mxu0 %v2752
    %4166 = vmatprep.subr.bf16.mxu0 %v2749
    %4167 = vmatpush2.bf16.msra.mxu0 %v2748
    %4168 = vmatprep.subr.bf16.mxu0 %v2745
    %4169 = vmatpush2.bf16.msra.mxu0 %v2744
    %4170 = vmatprep.subr.bf16.mxu0 %v2741
    %4171 = vmatpush2.bf16.msra.mxu0 %v2740
    %4172 = vmatprep.subr.bf16.mxu0 %v2737
    %4173 = vmatpush2.bf16.msra.mxu0 %v2736
    %4174 = vmatprep.subr.bf16.mxu0 %v2733
    %4175 = vmatpush2.bf16.msra.mxu0 %v2732
    %4176 = vmatprep.subr.bf16.mxu0 %v2729
    %4177 = vmatpush2.bf16.msra.mxu0 %v2728
    %4178 = vmatprep.mubr.bf16.mxu0 %v745
    %4179 = vmatmul.mubr.bf16.gmra.mxu0 %v744
    %v4180 = vpop.f32.mrf.mxu0
    %v4181 = vadd.f32 %v4140, %v4180
    %v4182 = vpop.f32.mrf.mxu0
    %v4183 = vadd.f32 %v4142, %v4182
    %v4184 = vpop.f32.mrf.mxu0
    %v4185 = vpop.f32.mrf.mxu0
    %4186 = vdwg.mxu0
    %4187 = vmatprep.subr.bf16.mxu0 %v2789
    %4188 = vmatpush1.bf16.msra.mxu0 %v2788
    %4189 = vmatprep.subr.bf16.mxu0 %v2785
    %4190 = vmatpush1.bf16.msra.mxu0 %v2784
    %4191 = vmatprep.subr.bf16.mxu0 %v2781
    %4192 = vmatpush1.bf16.msra.mxu0 %v2780
    %4193 = vmatprep.subr.bf16.mxu0 %v2777
    %4194 = vmatpush1.bf16.msra.mxu0 %v2776
    %4195 = vmatprep.subr.bf16.mxu0 %v2773
    %4196 = vmatpush1.bf16.msra.mxu0 %v2772
    %4197 = vmatprep.subr.bf16.mxu0 %v2769
    %4198 = vmatpush1.bf16.msra.mxu0 %v2768
    %4199 = vmatprep.subr.bf16.mxu0 %v2765
    %4200 = vmatpush1.bf16.msra.mxu0 %v2764
    %4201 = vmatprep.subr.bf16.mxu0 %v2761
    %4202 = vmatpush1.bf16.msra.mxu0 %v2760
    %4203 = vmatprep.subr.bf16.mxu0 %v2821
    %4204 = vmatpush2.bf16.msra.mxu0 %v2820
    %4205 = vmatprep.subr.bf16.mxu0 %v2817
    %4206 = vmatpush2.bf16.msra.mxu0 %v2816
    %4207 = vmatprep.subr.bf16.mxu0 %v2813
    %4208 = vmatpush2.bf16.msra.mxu0 %v2812
    %4209 = vmatprep.subr.bf16.mxu0 %v2809
    %4210 = vmatpush2.bf16.msra.mxu0 %v2808
    %4211 = vmatprep.subr.bf16.mxu0 %v2805
    %4212 = vmatpush2.bf16.msra.mxu0 %v2804
    %4213 = vmatprep.subr.bf16.mxu0 %v2801
    %4214 = vmatpush2.bf16.msra.mxu0 %v2800
    %4215 = vmatprep.subr.bf16.mxu0 %v2797
    %4216 = vmatpush2.bf16.msra.mxu0 %v2796
    %4217 = vmatprep.subr.bf16.mxu0 %v2793
    %4218 = vmatpush2.bf16.msra.mxu0 %v2792
    %4219 = vmatprep.mubr.bf16.mxu0 %v747
    %4220 = vmatmul.mubr.bf16.gmra.mxu0 %v746
    %v4221 = vpop.f32.mrf.mxu0
    %v4222 = vadd.f32 %v4181, %v4221
    %v4223 = vpop.f32.mrf.mxu0
    %v4224 = vadd.f32 %v4183, %v4223
    %v4225 = vpop.f32.mrf.mxu0
    %v4226 = vpop.f32.mrf.mxu0
    %4227 = vdwg.mxu0
    %4228 = vmatprep.subr.bf16.mxu0 %v2853
    %4229 = vmatpush1.bf16.msra.mxu0 %v2852
    %4230 = vmatprep.subr.bf16.mxu0 %v2849
    %4231 = vmatpush1.bf16.msra.mxu0 %v2848
    %4232 = vmatprep.subr.bf16.mxu0 %v2845
    %4233 = vmatpush1.bf16.msra.mxu0 %v2844
    %4234 = vmatprep.subr.bf16.mxu0 %v2841
    %4235 = vmatpush1.bf16.msra.mxu0 %v2840
    %4236 = vmatprep.subr.bf16.mxu0 %v2837
    %4237 = vmatpush1.bf16.msra.mxu0 %v2836
    %4238 = vmatprep.subr.bf16.mxu0 %v2833
    %4239 = vmatpush1.bf16.msra.mxu0 %v2832
    %4240 = vmatprep.subr.bf16.mxu0 %v2829
    %4241 = vmatpush1.bf16.msra.mxu0 %v2828
    %4242 = vmatprep.subr.bf16.mxu0 %v2825
    %4243 = vmatpush1.bf16.msra.mxu0 %v2824
    %4244 = vmatprep.subr.bf16.mxu0 %v2885
    %4245 = vmatpush2.bf16.msra.mxu0 %v2884
    %4246 = vmatprep.subr.bf16.mxu0 %v2881
    %4247 = vmatpush2.bf16.msra.mxu0 %v2880
    %4248 = vmatprep.subr.bf16.mxu0 %v2877
    %4249 = vmatpush2.bf16.msra.mxu0 %v2876
    %4250 = vmatprep.subr.bf16.mxu0 %v2873
    %4251 = vmatpush2.bf16.msra.mxu0 %v2872
    %4252 = vmatprep.subr.bf16.mxu0 %v2869
    %4253 = vmatpush2.bf16.msra.mxu0 %v2868
    %4254 = vmatprep.subr.bf16.mxu0 %v2865
    %4255 = vmatpush2.bf16.msra.mxu0 %v2864
    %4256 = vmatprep.subr.bf16.mxu0 %v2861
    %4257 = vmatpush2.bf16.msra.mxu0 %v2860
    %4258 = vmatprep.subr.bf16.mxu0 %v2857
    %4259 = vmatpush2.bf16.msra.mxu0 %v2856
    %4260 = vmatprep.mubr.bf16.mxu0 %v749
    %4261 = vmatmul.mubr.bf16.gmra.mxu0 %v748
    %v4262 = vpop.f32.mrf.mxu0
    %v4263 = vadd.f32 %v4222, %v4262
    %v4264 = vpop.f32.mrf.mxu0
    %v4265 = vadd.f32 %v4224, %v4264
    %v4266 = vpop.f32.mrf.mxu0
    %v4267 = vpop.f32.mrf.mxu0
    %4268 = vdwg.mxu0
    %4269 = vmatprep.subr.bf16.mxu0 %v2917
    %4270 = vmatpush1.bf16.msra.mxu0 %v2916
    %4271 = vmatprep.subr.bf16.mxu0 %v2913
    %4272 = vmatpush1.bf16.msra.mxu0 %v2912
    %4273 = vmatprep.subr.bf16.mxu0 %v2909
    %4274 = vmatpush1.bf16.msra.mxu0 %v2908
    %4275 = vmatprep.subr.bf16.mxu0 %v2905
    %4276 = vmatpush1.bf16.msra.mxu0 %v2904
    %4277 = vmatprep.subr.bf16.mxu0 %v2901
    %4278 = vmatpush1.bf16.msra.mxu0 %v2900
    %4279 = vmatprep.subr.bf16.mxu0 %v2897
    %4280 = vmatpush1.bf16.msra.mxu0 %v2896
    %4281 = vmatprep.subr.bf16.mxu0 %v2893
    %4282 = vmatpush1.bf16.msra.mxu0 %v2892
    %4283 = vmatprep.subr.bf16.mxu0 %v2889
    %4284 = vmatpush1.bf16.msra.mxu0 %v2888
    %4285 = vmatprep.subr.bf16.mxu0 %v2949
    %4286 = vmatpush2.bf16.msra.mxu0 %v2948
    %4287 = vmatprep.subr.bf16.mxu0 %v2945
    %4288 = vmatpush2.bf16.msra.mxu0 %v2944
    %4289 = vmatprep.subr.bf16.mxu0 %v2941
    %4290 = vmatpush2.bf16.msra.mxu0 %v2940
    %4291 = vmatprep.subr.bf16.mxu0 %v2937
    %4292 = vmatpush2.bf16.msra.mxu0 %v2936
    %4293 = vmatprep.subr.bf16.mxu0 %v2933
    %4294 = vmatpush2.bf16.msra.mxu0 %v2932
    %4295 = vmatprep.subr.bf16.mxu0 %v2929
    %4296 = vmatpush2.bf16.msra.mxu0 %v2928
    %4297 = vmatprep.subr.bf16.mxu0 %v2925
    %4298 = vmatpush2.bf16.msra.mxu0 %v2924
    %4299 = vmatprep.subr.bf16.mxu0 %v2921
    %4300 = vmatpush2.bf16.msra.mxu0 %v2920
    %4301 = vmatprep.mubr.bf16.mxu0 %v751
    %4302 = vmatmul.mubr.bf16.gmra.mxu0 %v750
    %v4303 = vpop.f32.mrf.mxu0
    %v4304 = vadd.f32 %v4263, %v4303
    %v4305 = vpop.f32.mrf.mxu0
    %v4306 = vadd.f32 %v4265, %v4305
    %v4307 = vpop.f32.mrf.mxu0
    %v4308 = vpop.f32.mrf.mxu0
    %4309 = vdwg.mxu0
    %4310 = vmatprep.subr.bf16.mxu0 %v2981
    %4311 = vmatpush1.bf16.msra.mxu0 %v2980
    %4312 = vmatprep.subr.bf16.mxu0 %v2977
    %4313 = vmatpush1.bf16.msra.mxu0 %v2976
    %4314 = vmatprep.subr.bf16.mxu0 %v2973
    %4315 = vmatpush1.bf16.msra.mxu0 %v2972
    %4316 = vmatprep.subr.bf16.mxu0 %v2969
    %4317 = vmatpush1.bf16.msra.mxu0 %v2968
    %4318 = vmatprep.subr.bf16.mxu0 %v2965
    %4319 = vmatpush1.bf16.msra.mxu0 %v2964
    %4320 = vmatprep.subr.bf16.mxu0 %v2961
    %4321 = vmatpush1.bf16.msra.mxu0 %v2960
    %4322 = vmatprep.subr.bf16.mxu0 %v2957
    %4323 = vmatpush1.bf16.msra.mxu0 %v2956
    %4324 = vmatprep.subr.bf16.mxu0 %v2953
    %4325 = vmatpush1.bf16.msra.mxu0 %v2952
    %4326 = vmatprep.subr.bf16.mxu0 %v3013
    %4327 = vmatpush2.bf16.msra.mxu0 %v3012
    %4328 = vmatprep.subr.bf16.mxu0 %v3009
    %4329 = vmatpush2.bf16.msra.mxu0 %v3008
    %4330 = vmatprep.subr.bf16.mxu0 %v3005
    %4331 = vmatpush2.bf16.msra.mxu0 %v3004
    %4332 = vmatprep.subr.bf16.mxu0 %v3001
    %4333 = vmatpush2.bf16.msra.mxu0 %v3000
    %4334 = vmatprep.subr.bf16.mxu0 %v2997
    %4335 = vmatpush2.bf16.msra.mxu0 %v2996
    %4336 = vmatprep.subr.bf16.mxu0 %v2993
    %4337 = vmatpush2.bf16.msra.mxu0 %v2992
    %4338 = vmatprep.subr.bf16.mxu0 %v2989
    %4339 = vmatpush2.bf16.msra.mxu0 %v2988
    %4340 = vmatprep.subr.bf16.mxu0 %v2985
    %4341 = vmatpush2.bf16.msra.mxu0 %v2984
    %4342 = vmatprep.mubr.bf16.mxu0 %v753
    %4343 = vmatmul.mubr.bf16.gmra.mxu0 %v752
    %v4344 = vpop.f32.mrf.mxu0
    %v4345 = vadd.f32 %v4304, %v4344
    %v4346 = vpop.f32.mrf.mxu0
    %v4347 = vadd.f32 %v4306, %v4346
    %v4348 = vpop.f32.mrf.mxu0
    %v4349 = vpop.f32.mrf.mxu0
    %4350 = vdwg.mxu0
    %4351 = vmatprep.subr.bf16.mxu0 %v3045
    %4352 = vmatpush1.bf16.msra.mxu0 %v3044
    %4353 = vmatprep.subr.bf16.mxu0 %v3041
    %4354 = vmatpush1.bf16.msra.mxu0 %v3040
    %4355 = vmatprep.subr.bf16.mxu0 %v3037
    %4356 = vmatpush1.bf16.msra.mxu0 %v3036
    %4357 = vmatprep.subr.bf16.mxu0 %v3033
    %4358 = vmatpush1.bf16.msra.mxu0 %v3032
    %4359 = vmatprep.subr.bf16.mxu0 %v3029
    %4360 = vmatpush1.bf16.msra.mxu0 %v3028
    %4361 = vmatprep.subr.bf16.mxu0 %v3025
    %4362 = vmatpush1.bf16.msra.mxu0 %v3024
    %4363 = vmatprep.subr.bf16.mxu0 %v3021
    %4364 = vmatpush1.bf16.msra.mxu0 %v3020
    %4365 = vmatprep.subr.bf16.mxu0 %v3017
    %4366 = vmatpush1.bf16.msra.mxu0 %v3016
    %4367 = vmatprep.subr.bf16.mxu0 %v3077
    %4368 = vmatpush2.bf16.msra.mxu0 %v3076
    %4369 = vmatprep.subr.bf16.mxu0 %v3073
    %4370 = vmatpush2.bf16.msra.mxu0 %v3072
    %4371 = vmatprep.subr.bf16.mxu0 %v3069
    %4372 = vmatpush2.bf16.msra.mxu0 %v3068
    %4373 = vmatprep.subr.bf16.mxu0 %v3065
    %4374 = vmatpush2.bf16.msra.mxu0 %v3064
    %4375 = vmatprep.subr.bf16.mxu0 %v3061
    %4376 = vmatpush2.bf16.msra.mxu0 %v3060
    %4377 = vmatprep.subr.bf16.mxu0 %v3057
    %4378 = vmatpush2.bf16.msra.mxu0 %v3056
    %4379 = vmatprep.subr.bf16.mxu0 %v3053
    %4380 = vmatpush2.bf16.msra.mxu0 %v3052
    %4381 = vmatprep.subr.bf16.mxu0 %v3049
    %4382 = vmatpush2.bf16.msra.mxu0 %v3048
    %4383 = vmatprep.mubr.bf16.mxu0 %v755
    %4384 = vmatmul.mubr.bf16.gmra.mxu0 %v754
    %v4385 = vpop.f32.mrf.mxu0
    %v4386 = vadd.f32 %v4345, %v4385
    %v4387 = vpop.f32.mrf.mxu0
    %v4388 = vadd.f32 %v4347, %v4387
    %v4389 = vpop.f32.mrf.mxu0
    %v4390 = vpop.f32.mrf.mxu0
    %4391 = vdwg.mxu0
    %v4392 = vmax.f32 %v4017, 0.0
    %v4393 = vmax.f32 %v4019, 0.0
    %v4394 = vmax.f32 %v4386, 0.0
    %v4395 = vmax.f32 %v4388, 0.0
    %v4396 = vpack.c.bf16 %v4392, %v4392
    %v4397 = vpack.c.bf16 %v4393, %v4393
    %v4398 = vpack.c.bf16 %v4394, %v4394
    %v4399 = vpack.c.bf16 %v4395, %v4395
    %v4400 = vld [vmem:[#allocation7] sm:$0xff]
    %v4401 = vld [vmem:[#allocation7 + $0x8] sm:$0xff]
    %v4402 = vld [vmem:[#allocation7 + $0x10] sm:$0xff]
    %v4403 = vld [vmem:[#allocation7 + $0x18] sm:$0xff]
    %v4404 = vld [vmem:[#allocation7 + $0x20] sm:$0xff]
    %v4405 = vld [vmem:[#allocation7 + $0x28] sm:$0xff]
    %v4406 = vld [vmem:[#allocation7 + $0x30] sm:$0xff]
    %v4407 = vld [vmem:[#allocation7 + $0x38] sm:$0xff]
    %v4408 = vld [vmem:[#allocation7 + $0x40] sm:$0xff]
    %v4409 = vld [vmem:[#allocation7 + $0x48] sm:$0xff]
    %v4410 = vld [vmem:[#allocation7 + $0x50] sm:$0xff]
    %v4411 = vld [vmem:[#allocation7 + $0x58] sm:$0xff]
    %v4412 = vld [vmem:[#allocation7 + $0x60] sm:$0xff]
    %v4413 = vld [vmem:[#allocation7 + $0x68] sm:$0xff]
    %v4414 = vld [vmem:[#allocation7 + $0x70] sm:$0xff]
    %v4415 = vld [vmem:[#allocation7 + $0x78] sm:$0xff]
    %v4416 = vld [vmem:[#allocation7 + $0x80] sm:$0xff]
    %v4417 = vld [vmem:[#allocation7 + $0x88] sm:$0xff]
    %v4418 = vld [vmem:[#allocation7 + $0x90] sm:$0xff]
    %v4419 = vld [vmem:[#allocation7 + $0x98] sm:$0xff]
    %v4420 = vld [vmem:[#allocation7 + $0xa0] sm:$0xff]
    %v4421 = vld [vmem:[#allocation7 + $0xa8] sm:$0xff]
    %v4422 = vld [vmem:[#allocation7 + $0xb0] sm:$0xff]
    %v4423 = vld [vmem:[#allocation7 + $0xb8] sm:$0xff]
    %v4424 = vld [vmem:[#allocation7 + $0xc0] sm:$0xff]
    %v4425 = vld [vmem:[#allocation7 + $0xc8] sm:$0xff]
    %v4426 = vld [vmem:[#allocation7 + $0xd0] sm:$0xff]
    %v4427 = vld [vmem:[#allocation7 + $0xd8] sm:$0xff]
    %v4428 = vld [vmem:[#allocation7 + $0xe0] sm:$0xff]
    %v4429 = vld [vmem:[#allocation7 + $0xe8] sm:$0xff]
    %v4430 = vld [vmem:[#allocation7 + $0xf0] sm:$0xff]
    %v4431 = vld [vmem:[#allocation7 + $0xf8] sm:$0xff]
    %v4432 = vld [vmem:[#allocation7 + $0x100] sm:$0xff]
    %v4433 = vld [vmem:[#allocation7 + $0x108] sm:$0xff]
    %v4434 = vld [vmem:[#allocation7 + $0x110] sm:$0xff]
    %v4435 = vld [vmem:[#allocation7 + $0x118] sm:$0xff]
    %v4436 = vld [vmem:[#allocation7 + $0x120] sm:$0xff]
    %v4437 = vld [vmem:[#allocation7 + $0x128] sm:$0xff]
    %v4438 = vld [vmem:[#allocation7 + $0x130] sm:$0xff]
    %v4439 = vld [vmem:[#allocation7 + $0x138] sm:$0xff]
    %v4440 = vld [vmem:[#allocation7 + $0x140] sm:$0xff]
    %v4441 = vld [vmem:[#allocation7 + $0x148] sm:$0xff]
    %v4442 = vld [vmem:[#allocation7 + $0x150] sm:$0xff]
    %v4443 = vld [vmem:[#allocation7 + $0x158] sm:$0xff]
    %v4444 = vld [vmem:[#allocation7 + $0x160] sm:$0xff]
    %v4445 = vld [vmem:[#allocation7 + $0x168] sm:$0xff]
    %v4446 = vld [vmem:[#allocation7 + $0x170] sm:$0xff]
    %v4447 = vld [vmem:[#allocation7 + $0x178] sm:$0xff]
    %v4448 = vld [vmem:[#allocation7 + $0x180] sm:$0xff]
    %v4449 = vld [vmem:[#allocation7 + $0x188] sm:$0xff]
    %v4450 = vld [vmem:[#allocation7 + $0x190] sm:$0xff]
    %v4451 = vld [vmem:[#allocation7 + $0x198] sm:$0xff]
    %v4452 = vld [vmem:[#allocation7 + $0x1a0] sm:$0xff]
    %v4453 = vld [vmem:[#allocation7 + $0x1a8] sm:$0xff]
    %v4454 = vld [vmem:[#allocation7 + $0x1b0] sm:$0xff]
    %v4455 = vld [vmem:[#allocation7 + $0x1b8] sm:$0xff]
    %v4456 = vld [vmem:[#allocation7 + $0x1c0] sm:$0xff]
    %v4457 = vld [vmem:[#allocation7 + $0x1c8] sm:$0xff]
    %v4458 = vld [vmem:[#allocation7 + $0x1d0] sm:$0xff]
    %v4459 = vld [vmem:[#allocation7 + $0x1d8] sm:$0xff]
    %v4460 = vld [vmem:[#allocation7 + $0x1e0] sm:$0xff]
    %v4461 = vld [vmem:[#allocation7 + $0x1e8] sm:$0xff]
    %v4462 = vld [vmem:[#allocation7 + $0x1f0] sm:$0xff]
    %v4463 = vld [vmem:[#allocation7 + $0x1f8] sm:$0xff]
    %v4464 = vld [vmem:[#allocation7 + $0x200] sm:$0xff]
    %v4465 = vld [vmem:[#allocation7 + $0x208] sm:$0xff]
    %v4466 = vld [vmem:[#allocation7 + $0x210] sm:$0xff]
    %v4467 = vld [vmem:[#allocation7 + $0x218] sm:$0xff]
    %v4468 = vld [vmem:[#allocation7 + $0x220] sm:$0xff]
    %v4469 = vld [vmem:[#allocation7 + $0x228] sm:$0xff]
    %v4470 = vld [vmem:[#allocation7 + $0x230] sm:$0xff]
    %v4471 = vld [vmem:[#allocation7 + $0x238] sm:$0xff]
    %v4472 = vld [vmem:[#allocation7 + $0x240] sm:$0xff]
    %v4473 = vld [vmem:[#allocation7 + $0x248] sm:$0xff]
    %v4474 = vld [vmem:[#allocation7 + $0x250] sm:$0xff]
    %v4475 = vld [vmem:[#allocation7 + $0x258] sm:$0xff]
    %v4476 = vld [vmem:[#allocation7 + $0x260] sm:$0xff]
    %v4477 = vld [vmem:[#allocation7 + $0x268] sm:$0xff]
    %v4478 = vld [vmem:[#allocation7 + $0x270] sm:$0xff]
    %v4479 = vld [vmem:[#allocation7 + $0x278] sm:$0xff]
    %v4480 = vld [vmem:[#allocation7 + $0x280] sm:$0xff]
    %v4481 = vld [vmem:[#allocation7 + $0x288] sm:$0xff]
    %v4482 = vld [vmem:[#allocation7 + $0x290] sm:$0xff]
    %v4483 = vld [vmem:[#allocation7 + $0x298] sm:$0xff]
    %v4484 = vld [vmem:[#allocation7 + $0x2a0] sm:$0xff]
    %v4485 = vld [vmem:[#allocation7 + $0x2a8] sm:$0xff]
    %v4486 = vld [vmem:[#allocation7 + $0x2b0] sm:$0xff]
    %v4487 = vld [vmem:[#allocation7 + $0x2b8] sm:$0xff]
    %v4488 = vld [vmem:[#allocation7 + $0x2c0] sm:$0xff]
    %v4489 = vld [vmem:[#allocation7 + $0x2c8] sm:$0xff]
    %v4490 = vld [vmem:[#allocation7 + $0x2d0] sm:$0xff]
    %v4491 = vld [vmem:[#allocation7 + $0x2d8] sm:$0xff]
    %v4492 = vld [vmem:[#allocation7 + $0x2e0] sm:$0xff]
    %v4493 = vld [vmem:[#allocation7 + $0x2e8] sm:$0xff]
    %v4494 = vld [vmem:[#allocation7 + $0x2f0] sm:$0xff]
    %v4495 = vld [vmem:[#allocation7 + $0x2f8] sm:$0xff]
    %v4496 = vld [vmem:[#allocation7 + $0x300] sm:$0xff]
    %v4497 = vld [vmem:[#allocation7 + $0x308] sm:$0xff]
    %v4498 = vld [vmem:[#allocation7 + $0x310] sm:$0xff]
    %v4499 = vld [vmem:[#allocation7 + $0x318] sm:$0xff]
    %v4500 = vld [vmem:[#allocation7 + $0x320] sm:$0xff]
    %v4501 = vld [vmem:[#allocation7 + $0x328] sm:$0xff]
    %v4502 = vld [vmem:[#allocation7 + $0x330] sm:$0xff]
    %v4503 = vld [vmem:[#allocation7 + $0x338] sm:$0xff]
    %v4504 = vld [vmem:[#allocation7 + $0x340] sm:$0xff]
    %v4505 = vld [vmem:[#allocation7 + $0x348] sm:$0xff]
    %v4506 = vld [vmem:[#allocation7 + $0x350] sm:$0xff]
    %v4507 = vld [vmem:[#allocation7 + $0x358] sm:$0xff]
    %v4508 = vld [vmem:[#allocation7 + $0x360] sm:$0xff]
    %v4509 = vld [vmem:[#allocation7 + $0x368] sm:$0xff]
    %v4510 = vld [vmem:[#allocation7 + $0x370] sm:$0xff]
    %v4511 = vld [vmem:[#allocation7 + $0x378] sm:$0xff]
    %v4512 = vld [vmem:[#allocation7 + $0x380] sm:$0xff]
    %v4513 = vld [vmem:[#allocation7 + $0x388] sm:$0xff]
    %v4514 = vld [vmem:[#allocation7 + $0x390] sm:$0xff]
    %v4515 = vld [vmem:[#allocation7 + $0x398] sm:$0xff]
    %v4516 = vld [vmem:[#allocation7 + $0x3a0] sm:$0xff]
    %v4517 = vld [vmem:[#allocation7 + $0x3a8] sm:$0xff]
    %v4518 = vld [vmem:[#allocation7 + $0x3b0] sm:$0xff]
    %v4519 = vld [vmem:[#allocation7 + $0x3b8] sm:$0xff]
    %v4520 = vld [vmem:[#allocation7 + $0x3c0] sm:$0xff]
    %v4521 = vld [vmem:[#allocation7 + $0x3c8] sm:$0xff]
    %v4522 = vld [vmem:[#allocation7 + $0x3d0] sm:$0xff]
    %v4523 = vld [vmem:[#allocation7 + $0x3d8] sm:$0xff]
    %v4524 = vld [vmem:[#allocation7 + $0x3e0] sm:$0xff]
    %v4525 = vld [vmem:[#allocation7 + $0x3e8] sm:$0xff]
    %v4526 = vld [vmem:[#allocation7 + $0x3f0] sm:$0xff]
    %v4527 = vld [vmem:[#allocation7 + $0x3f8] sm:$0xff]
    %v4528 = vld [vmem:[#allocation8] sm:$0xf]
    %v4530 = vlaneseq
    %v4531 = vshrl.u32 %v4530, 7
    %v4532 = vsub.s32 0, %v4531
    %v4533 = vrot.slane %v4528, %v4532
    %v4534 = vlaneseq
    %v4535 = vshrl.u32 %v4534, 7
    %v4536 = vsub.s32 1, %v4535
    %v4537 = vrot.slane %v4528, %v4536
    %v4538 = vlaneseq
    %v4539 = vshrl.u32 %v4538, 7
    %v4540 = vsub.s32 2, %v4539
    %v4541 = vrot.slane %v4528, %v4540
    %v4542 = vlaneseq
    %v4543 = vshrl.u32 %v4542, 7
    %v4544 = vsub.s32 3, %v4543
    %v4545 = vrot.slane %v4528, %v4544
    %v4678 = vunpack.c.l.b16 %v4400
    %v4679 = vunpack.c.h.b16 %v4400
    %v4680 = vunpack.c.l.b16 %v4401
    %v4681 = vunpack.c.h.b16 %v4401
    %v4682 = vunpack.c.l.b16 %v4402
    %v4683 = vunpack.c.h.b16 %v4402
    %v4684 = vunpack.c.l.b16 %v4403
    %v4685 = vunpack.c.h.b16 %v4403
    %v4686 = vunpack.c.l.b16 %v4404
    %v4687 = vunpack.c.h.b16 %v4404
    %v4688 = vunpack.c.l.b16 %v4405
    %v4689 = vunpack.c.h.b16 %v4405
    %v4690 = vunpack.c.l.b16 %v4406
    %v4691 = vunpack.c.h.b16 %v4406
    %v4692 = vunpack.c.l.b16 %v4407
    %v4693 = vunpack.c.h.b16 %v4407
    %v4694 = vunpack.c.l.b16 %v4408
    %v4695 = vunpack.c.h.b16 %v4408
    %v4696 = vunpack.c.l.b16 %v4409
    %v4697 = vunpack.c.h.b16 %v4409
    %v4698 = vunpack.c.l.b16 %v4410
    %v4699 = vunpack.c.h.b16 %v4410
    %v4700 = vunpack.c.l.b16 %v4411
    %v4701 = vunpack.c.h.b16 %v4411
    %v4702 = vunpack.c.l.b16 %v4412
    %v4703 = vunpack.c.h.b16 %v4412
    %v4704 = vunpack.c.l.b16 %v4413
    %v4705 = vunpack.c.h.b16 %v4413
    %v4706 = vunpack.c.l.b16 %v4414
    %v4707 = vunpack.c.h.b16 %v4414
    %v4708 = vunpack.c.l.b16 %v4415
    %v4709 = vunpack.c.h.b16 %v4415
    %v4710 = vunpack.c.l.b16 %v4416
    %v4711 = vunpack.c.h.b16 %v4416
    %v4712 = vunpack.c.l.b16 %v4417
    %v4713 = vunpack.c.h.b16 %v4417
    %v4714 = vunpack.c.l.b16 %v4418
    %v4715 = vunpack.c.h.b16 %v4418
    %v4716 = vunpack.c.l.b16 %v4419
    %v4717 = vunpack.c.h.b16 %v4419
    %v4718 = vunpack.c.l.b16 %v4420
    %v4719 = vunpack.c.h.b16 %v4420
    %v4720 = vunpack.c.l.b16 %v4421
    %v4721 = vunpack.c.h.b16 %v4421
    %v4722 = vunpack.c.l.b16 %v4422
    %v4723 = vunpack.c.h.b16 %v4422
    %v4724 = vunpack.c.l.b16 %v4423
    %v4725 = vunpack.c.h.b16 %v4423
    %v4726 = vunpack.c.l.b16 %v4424
    %v4727 = vunpack.c.h.b16 %v4424
    %v4728 = vunpack.c.l.b16 %v4425
    %v4729 = vunpack.c.h.b16 %v4425
    %v4730 = vunpack.c.l.b16 %v4426
    %v4731 = vunpack.c.h.b16 %v4426
    %v4732 = vunpack.c.l.b16 %v4427
    %v4733 = vunpack.c.h.b16 %v4427
    %v4734 = vunpack.c.l.b16 %v4428
    %v4735 = vunpack.c.h.b16 %v4428
    %v4736 = vunpack.c.l.b16 %v4429
    %v4737 = vunpack.c.h.b16 %v4429
    %v4738 = vunpack.c.l.b16 %v4430
    %v4739 = vunpack.c.h.b16 %v4430
    %v4740 = vunpack.c.l.b16 %v4431
    %v4741 = vunpack.c.h.b16 %v4431
    %v4742 = vunpack.c.l.b16 %v4432
    %v4743 = vunpack.c.h.b16 %v4432
    %v4744 = vunpack.c.l.b16 %v4433
    %v4745 = vunpack.c.h.b16 %v4433
    %v4746 = vunpack.c.l.b16 %v4434
    %v4747 = vunpack.c.h.b16 %v4434
    %v4748 = vunpack.c.l.b16 %v4435
    %v4749 = vunpack.c.h.b16 %v4435
    %v4750 = vunpack.c.l.b16 %v4436
    %v4751 = vunpack.c.h.b16 %v4436
    %v4752 = vunpack.c.l.b16 %v4437
    %v4753 = vunpack.c.h.b16 %v4437
    %v4754 = vunpack.c.l.b16 %v4438
    %v4755 = vunpack.c.h.b16 %v4438
    %v4756 = vunpack.c.l.b16 %v4439
    %v4757 = vunpack.c.h.b16 %v4439
    %v4758 = vunpack.c.l.b16 %v4440
    %v4759 = vunpack.c.h.b16 %v4440
    %v4760 = vunpack.c.l.b16 %v4441
    %v4761 = vunpack.c.h.b16 %v4441
    %v4762 = vunpack.c.l.b16 %v4442
    %v4763 = vunpack.c.h.b16 %v4442
    %v4764 = vunpack.c.l.b16 %v4443
    %v4765 = vunpack.c.h.b16 %v4443
    %v4766 = vunpack.c.l.b16 %v4444
    %v4767 = vunpack.c.h.b16 %v4444
    %v4768 = vunpack.c.l.b16 %v4445
    %v4769 = vunpack.c.h.b16 %v4445
    %v4770 = vunpack.c.l.b16 %v4446
    %v4771 = vunpack.c.h.b16 %v4446
    %v4772 = vunpack.c.l.b16 %v4447
    %v4773 = vunpack.c.h.b16 %v4447
    %v4774 = vunpack.c.l.b16 %v4448
    %v4775 = vunpack.c.h.b16 %v4448
    %v4776 = vunpack.c.l.b16 %v4449
    %v4777 = vunpack.c.h.b16 %v4449
    %v4778 = vunpack.c.l.b16 %v4450
    %v4779 = vunpack.c.h.b16 %v4450
    %v4780 = vunpack.c.l.b16 %v4451
    %v4781 = vunpack.c.h.b16 %v4451
    %v4782 = vunpack.c.l.b16 %v4452
    %v4783 = vunpack.c.h.b16 %v4452
    %v4784 = vunpack.c.l.b16 %v4453
    %v4785 = vunpack.c.h.b16 %v4453
    %v4786 = vunpack.c.l.b16 %v4454
    %v4787 = vunpack.c.h.b16 %v4454
    %v4788 = vunpack.c.l.b16 %v4455
    %v4789 = vunpack.c.h.b16 %v4455
    %v4790 = vunpack.c.l.b16 %v4456
    %v4791 = vunpack.c.h.b16 %v4456
    %v4792 = vunpack.c.l.b16 %v4457
    %v4793 = vunpack.c.h.b16 %v4457
    %v4794 = vunpack.c.l.b16 %v4458
    %v4795 = vunpack.c.h.b16 %v4458
    %v4796 = vunpack.c.l.b16 %v4459
    %v4797 = vunpack.c.h.b16 %v4459
    %v4798 = vunpack.c.l.b16 %v4460
    %v4799 = vunpack.c.h.b16 %v4460
    %v4800 = vunpack.c.l.b16 %v4461
    %v4801 = vunpack.c.h.b16 %v4461
    %v4802 = vunpack.c.l.b16 %v4462
    %v4803 = vunpack.c.h.b16 %v4462
    %v4804 = vunpack.c.l.b16 %v4463
    %v4805 = vunpack.c.h.b16 %v4463
    %v4806 = vunpack.c.l.b16 %v4464
    %v4807 = vunpack.c.h.b16 %v4464
    %v4808 = vunpack.c.l.b16 %v4465
    %v4809 = vunpack.c.h.b16 %v4465
    %v4810 = vunpack.c.l.b16 %v4466
    %v4811 = vunpack.c.h.b16 %v4466
    %v4812 = vunpack.c.l.b16 %v4467
    %v4813 = vunpack.c.h.b16 %v4467
    %v4814 = vunpack.c.l.b16 %v4468
    %v4815 = vunpack.c.h.b16 %v4468
    %v4816 = vunpack.c.l.b16 %v4469
    %v4817 = vunpack.c.h.b16 %v4469
    %v4818 = vunpack.c.l.b16 %v4470
    %v4819 = vunpack.c.h.b16 %v4470
    %v4820 = vunpack.c.l.b16 %v4471
    %v4821 = vunpack.c.h.b16 %v4471
    %v4822 = vunpack.c.l.b16 %v4472
    %v4823 = vunpack.c.h.b16 %v4472
    %v4824 = vunpack.c.l.b16 %v4473
    %v4825 = vunpack.c.h.b16 %v4473
    %v4826 = vunpack.c.l.b16 %v4474
    %v4827 = vunpack.c.h.b16 %v4474
    %v4828 = vunpack.c.l.b16 %v4475
    %v4829 = vunpack.c.h.b16 %v4475
    %v4830 = vunpack.c.l.b16 %v4476
    %v4831 = vunpack.c.h.b16 %v4476
    %v4832 = vunpack.c.l.b16 %v4477
    %v4833 = vunpack.c.h.b16 %v4477
    %v4834 = vunpack.c.l.b16 %v4478
    %v4835 = vunpack.c.h.b16 %v4478
    %v4836 = vunpack.c.l.b16 %v4479
    %v4837 = vunpack.c.h.b16 %v4479
    %v4838 = vunpack.c.l.b16 %v4480
    %v4839 = vunpack.c.h.b16 %v4480
    %v4840 = vunpack.c.l.b16 %v4481
    %v4841 = vunpack.c.h.b16 %v4481
    %v4842 = vunpack.c.l.b16 %v4482
    %v4843 = vunpack.c.h.b16 %v4482
    %v4844 = vunpack.c.l.b16 %v4483
    %v4845 = vunpack.c.h.b16 %v4483
    %v4846 = vunpack.c.l.b16 %v4484
    %v4847 = vunpack.c.h.b16 %v4484
    %v4848 = vunpack.c.l.b16 %v4485
    %v4849 = vunpack.c.h.b16 %v4485
    %v4850 = vunpack.c.l.b16 %v4486
    %v4851 = vunpack.c.h.b16 %v4486
    %v4852 = vunpack.c.l.b16 %v4487
    %v4853 = vunpack.c.h.b16 %v4487
    %v4854 = vunpack.c.l.b16 %v4488
    %v4855 = vunpack.c.h.b16 %v4488
    %v4856 = vunpack.c.l.b16 %v4489
    %v4857 = vunpack.c.h.b16 %v4489
    %v4858 = vunpack.c.l.b16 %v4490
    %v4859 = vunpack.c.h.b16 %v4490
    %v4860 = vunpack.c.l.b16 %v4491
    %v4861 = vunpack.c.h.b16 %v4491
    %v4862 = vunpack.c.l.b16 %v4492
    %v4863 = vunpack.c.h.b16 %v4492
    %v4864 = vunpack.c.l.b16 %v4493
    %v4865 = vunpack.c.h.b16 %v4493
    %v4866 = vunpack.c.l.b16 %v4494
    %v4867 = vunpack.c.h.b16 %v4494
    %v4868 = vunpack.c.l.b16 %v4495
    %v4869 = vunpack.c.h.b16 %v4495
    %v4870 = vunpack.c.l.b16 %v4496
    %v4871 = vunpack.c.h.b16 %v4496
    %v4872 = vunpack.c.l.b16 %v4497
    %v4873 = vunpack.c.h.b16 %v4497
    %v4874 = vunpack.c.l.b16 %v4498
    %v4875 = vunpack.c.h.b16 %v4498
    %v4876 = vunpack.c.l.b16 %v4499
    %v4877 = vunpack.c.h.b16 %v4499
    %v4878 = vunpack.c.l.b16 %v4500
    %v4879 = vunpack.c.h.b16 %v4500
    %v4880 = vunpack.c.l.b16 %v4501
    %v4881 = vunpack.c.h.b16 %v4501
    %v4882 = vunpack.c.l.b16 %v4502
    %v4883 = vunpack.c.h.b16 %v4502
    %v4884 = vunpack.c.l.b16 %v4503
    %v4885 = vunpack.c.h.b16 %v4503
    %v4886 = vunpack.c.l.b16 %v4504
    %v4887 = vunpack.c.h.b16 %v4504
    %v4888 = vunpack.c.l.b16 %v4505
    %v4889 = vunpack.c.h.b16 %v4505
    %v4890 = vunpack.c.l.b16 %v4506
    %v4891 = vunpack.c.h.b16 %v4506
    %v4892 = vunpack.c.l.b16 %v4507
    %v4893 = vunpack.c.h.b16 %v4507
    %v4894 = vunpack.c.l.b16 %v4508
    %v4895 = vunpack.c.h.b16 %v4508
    %v4896 = vunpack.c.l.b16 %v4509
    %v4897 = vunpack.c.h.b16 %v4509
    %v4898 = vunpack.c.l.b16 %v4510
    %v4899 = vunpack.c.h.b16 %v4510
    %v4900 = vunpack.c.l.b16 %v4511
    %v4901 = vunpack.c.h.b16 %v4511
    %v4902 = vunpack.c.l.b16 %v4512
    %v4903 = vunpack.c.h.b16 %v4512
    %v4904 = vunpack.c.l.b16 %v4513
    %v4905 = vunpack.c.h.b16 %v4513
    %v4906 = vunpack.c.l.b16 %v4514
    %v4907 = vunpack.c.h.b16 %v4514
    %v4908 = vunpack.c.l.b16 %v4515
    %v4909 = vunpack.c.h.b16 %v4515
    %v4910 = vunpack.c.l.b16 %v4516
    %v4911 = vunpack.c.h.b16 %v4516
    %v4912 = vunpack.c.l.b16 %v4517
    %v4913 = vunpack.c.h.b16 %v4517
    %v4914 = vunpack.c.l.b16 %v4518
    %v4915 = vunpack.c.h.b16 %v4518
    %v4916 = vunpack.c.l.b16 %v4519
    %v4917 = vunpack.c.h.b16 %v4519
    %v4918 = vunpack.c.l.b16 %v4520
    %v4919 = vunpack.c.h.b16 %v4520
    %v4920 = vunpack.c.l.b16 %v4521
    %v4921 = vunpack.c.h.b16 %v4521
    %v4922 = vunpack.c.l.b16 %v4522
    %v4923 = vunpack.c.h.b16 %v4522
    %v4924 = vunpack.c.l.b16 %v4523
    %v4925 = vunpack.c.h.b16 %v4523
    %v4926 = vunpack.c.l.b16 %v4524
    %v4927 = vunpack.c.h.b16 %v4524
    %v4928 = vunpack.c.l.b16 %v4525
    %v4929 = vunpack.c.h.b16 %v4525
    %v4930 = vunpack.c.l.b16 %v4526
    %v4931 = vunpack.c.h.b16 %v4526
    %v4932 = vunpack.c.l.b16 %v4527
    %v4933 = vunpack.c.h.b16 %v4527
    %v4934 = vpack.c.b16 %v4682, %v4678
    %v4935 = vpack.c.b16 %v4683, %v4679
    %v4936 = vpack.c.b16 %v4684, %v4680
    %v4937 = vpack.c.b16 %v4685, %v4681
    %v4938 = vpack.c.b16 %v4690, %v4686
    %v4939 = vpack.c.b16 %v4691, %v4687
    %v4940 = vpack.c.b16 %v4692, %v4688
    %v4941 = vpack.c.b16 %v4693, %v4689
    %v4942 = vpack.c.b16 %v4698, %v4694
    %v4943 = vpack.c.b16 %v4699, %v4695
    %v4944 = vpack.c.b16 %v4700, %v4696
    %v4945 = vpack.c.b16 %v4701, %v4697
    %v4946 = vpack.c.b16 %v4706, %v4702
    %v4947 = vpack.c.b16 %v4707, %v4703
    %v4948 = vpack.c.b16 %v4708, %v4704
    %v4949 = vpack.c.b16 %v4709, %v4705
    %v4950 = vpack.c.b16 %v4714, %v4710
    %v4951 = vpack.c.b16 %v4715, %v4711
    %v4952 = vpack.c.b16 %v4716, %v4712
    %v4953 = vpack.c.b16 %v4717, %v4713
    %v4954 = vpack.c.b16 %v4722, %v4718
    %v4955 = vpack.c.b16 %v4723, %v4719
    %v4956 = vpack.c.b16 %v4724, %v4720
    %v4957 = vpack.c.b16 %v4725, %v4721
    %v4958 = vpack.c.b16 %v4730, %v4726
    %v4959 = vpack.c.b16 %v4731, %v4727
    %v4960 = vpack.c.b16 %v4732, %v4728
    %v4961 = vpack.c.b16 %v4733, %v4729
    %v4962 = vpack.c.b16 %v4738, %v4734
    %v4963 = vpack.c.b16 %v4739, %v4735
    %v4964 = vpack.c.b16 %v4740, %v4736
    %v4965 = vpack.c.b16 %v4741, %v4737
    %v4966 = vpack.c.b16 %v4746, %v4742
    %v4967 = vpack.c.b16 %v4747, %v4743
    %v4968 = vpack.c.b16 %v4748, %v4744
    %v4969 = vpack.c.b16 %v4749, %v4745
    %v4970 = vpack.c.b16 %v4754, %v4750
    %v4971 = vpack.c.b16 %v4755, %v4751
    %v4972 = vpack.c.b16 %v4756, %v4752
    %v4973 = vpack.c.b16 %v4757, %v4753
    %v4974 = vpack.c.b16 %v4762, %v4758
    %v4975 = vpack.c.b16 %v4763, %v4759
    %v4976 = vpack.c.b16 %v4764, %v4760
    %v4977 = vpack.c.b16 %v4765, %v4761
    %v4978 = vpack.c.b16 %v4770, %v4766
    %v4979 = vpack.c.b16 %v4771, %v4767
    %v4980 = vpack.c.b16 %v4772, %v4768
    %v4981 = vpack.c.b16 %v4773, %v4769
    %v4982 = vpack.c.b16 %v4778, %v4774
    %v4983 = vpack.c.b16 %v4779, %v4775
    %v4984 = vpack.c.b16 %v4780, %v4776
    %v4985 = vpack.c.b16 %v4781, %v4777
    %v4986 = vpack.c.b16 %v4786, %v4782
    %v4987 = vpack.c.b16 %v4787, %v4783
    %v4988 = vpack.c.b16 %v4788, %v4784
    %v4989 = vpack.c.b16 %v4789, %v4785
    %v4990 = vpack.c.b16 %v4794, %v4790
    %v4991 = vpack.c.b16 %v4795, %v4791
    %v4992 = vpack.c.b16 %v4796, %v4792
    %v4993 = vpack.c.b16 %v4797, %v4793
    %v4994 = vpack.c.b16 %v4802, %v4798
    %v4995 = vpack.c.b16 %v4803, %v4799
    %v4996 = vpack.c.b16 %v4804, %v4800
    %v4997 = vpack.c.b16 %v4805, %v4801
    %v4998 = vpack.c.b16 %v4810, %v4806
    %v4999 = vpack.c.b16 %v4811, %v4807
    %v5000 = vpack.c.b16 %v4812, %v4808
    %v5001 = vpack.c.b16 %v4813, %v4809
    %v5002 = vpack.c.b16 %v4818, %v4814
    %v5003 = vpack.c.b16 %v4819, %v4815
    %v5004 = vpack.c.b16 %v4820, %v4816
    %v5005 = vpack.c.b16 %v4821, %v4817
    %v5006 = vpack.c.b16 %v4826, %v4822
    %v5007 = vpack.c.b16 %v4827, %v4823
    %v5008 = vpack.c.b16 %v4828, %v4824
    %v5009 = vpack.c.b16 %v4829, %v4825
    %v5010 = vpack.c.b16 %v4834, %v4830
    %v5011 = vpack.c.b16 %v4835, %v4831
    %v5012 = vpack.c.b16 %v4836, %v4832
    %v5013 = vpack.c.b16 %v4837, %v4833
    %v5014 = vpack.c.b16 %v4842, %v4838
    %v5015 = vpack.c.b16 %v4843, %v4839
    %v5016 = vpack.c.b16 %v4844, %v4840
    %v5017 = vpack.c.b16 %v4845, %v4841
    %v5018 = vpack.c.b16 %v4850, %v4846
    %v5019 = vpack.c.b16 %v4851, %v4847
    %v5020 = vpack.c.b16 %v4852, %v4848
    %v5021 = vpack.c.b16 %v4853, %v4849
    %v5022 = vpack.c.b16 %v4858, %v4854
    %v5023 = vpack.c.b16 %v4859, %v4855
    %v5024 = vpack.c.b16 %v4860, %v4856
    %v5025 = vpack.c.b16 %v4861, %v4857
    %v5026 = vpack.c.b16 %v4866, %v4862
    %v5027 = vpack.c.b16 %v4867, %v4863
    %v5028 = vpack.c.b16 %v4868, %v4864
    %v5029 = vpack.c.b16 %v4869, %v4865
    %v5030 = vpack.c.b16 %v4874, %v4870
    %v5031 = vpack.c.b16 %v4875, %v4871
    %v5032 = vpack.c.b16 %v4876, %v4872
    %v5033 = vpack.c.b16 %v4877, %v4873
    %v5034 = vpack.c.b16 %v4882, %v4878
    %v5035 = vpack.c.b16 %v4883, %v4879
    %v5036 = vpack.c.b16 %v4884, %v4880
    %v5037 = vpack.c.b16 %v4885, %v4881
    %v5038 = vpack.c.b16 %v4890, %v4886
    %v5039 = vpack.c.b16 %v4891, %v4887
    %v5040 = vpack.c.b16 %v4892, %v4888
    %v5041 = vpack.c.b16 %v4893, %v4889
    %v5042 = vpack.c.b16 %v4898, %v4894
    %v5043 = vpack.c.b16 %v4899, %v4895
    %v5044 = vpack.c.b16 %v4900, %v4896
    %v5045 = vpack.c.b16 %v4901, %v4897
    %v5046 = vpack.c.b16 %v4906, %v4902
    %v5047 = vpack.c.b16 %v4907, %v4903
    %v5048 = vpack.c.b16 %v4908, %v4904
    %v5049 = vpack.c.b16 %v4909, %v4905
    %v5050 = vpack.c.b16 %v4914, %v4910
    %v5051 = vpack.c.b16 %v4915, %v4911
    %v5052 = vpack.c.b16 %v4916, %v4912
    %v5053 = vpack.c.b16 %v4917, %v4913
    %v5054 = vpack.c.b16 %v4922, %v4918
    %v5055 = vpack.c.b16 %v4923, %v4919
    %v5056 = vpack.c.b16 %v4924, %v4920
    %v5057 = vpack.c.b16 %v4925, %v4921
    %v5058 = vpack.c.b16 %v4930, %v4926
    %v5059 = vpack.c.b16 %v4931, %v4927
    %v5060 = vpack.c.b16 %v4932, %v4928
    %v5061 = vpack.c.b16 %v4933, %v4929
    %5190 = vmatprep.subr.bf16.mxu0 %v4963
    %5191 = vmatpush1.bf16.msra.mxu0 %v4962
    %5192 = vmatprep.subr.bf16.mxu0 %v4959
    %5193 = vmatpush1.bf16.msra.mxu0 %v4958
    %5194 = vmatprep.subr.bf16.mxu0 %v4955
    %5195 = vmatpush1.bf16.msra.mxu0 %v4954
    %5196 = vmatprep.subr.bf16.mxu0 %v4951
    %5197 = vmatpush1.bf16.msra.mxu0 %v4950
    %5198 = vmatprep.subr.bf16.mxu0 %v4947
    %5199 = vmatpush1.bf16.msra.mxu0 %v4946
    %5200 = vmatprep.subr.bf16.mxu0 %v4943
    %5201 = vmatpush1.bf16.msra.mxu0 %v4942
    %5202 = vmatprep.subr.bf16.mxu0 %v4939
    %5203 = vmatpush1.bf16.msra.mxu0 %v4938
    %5204 = vmatprep.subr.bf16.mxu0 %v4935
    %5205 = vmatpush1.bf16.msra.mxu0 %v4934
    %5206 = vmatprep.subr.bf16.mxu0 %v4995
    %5207 = vmatpush2.bf16.msra.mxu0 %v4994
    %5208 = vmatprep.subr.bf16.mxu0 %v4991
    %5209 = vmatpush2.bf16.msra.mxu0 %v4990
    %5210 = vmatprep.subr.bf16.mxu0 %v4987
    %5211 = vmatpush2.bf16.msra.mxu0 %v4986
    %5212 = vmatprep.subr.bf16.mxu0 %v4983
    %5213 = vmatpush2.bf16.msra.mxu0 %v4982
    %5214 = vmatprep.subr.bf16.mxu0 %v4979
    %5215 = vmatpush2.bf16.msra.mxu0 %v4978
    %5216 = vmatprep.subr.bf16.mxu0 %v4975
    %5217 = vmatpush2.bf16.msra.mxu0 %v4974
    %5218 = vmatprep.subr.bf16.mxu0 %v4971
    %5219 = vmatpush2.bf16.msra.mxu0 %v4970
    %5220 = vmatprep.subr.bf16.mxu0 %v4967
    %5221 = vmatpush2.bf16.msra.mxu0 %v4966
    %5222 = vmatprep.mubr.bf16.mxu0 %v4397
    %5223 = vmatmul.mubr.bf16.gmra.mxu0 %v4396
    %v5224 = vpop.f32.mrf.mxu0
    %v5225 = vadd.f32 %v4533, %v5224
    %v5226 = vpop.f32.mrf.mxu0
    %v5227 = vadd.f32 %v4537, %v5226
    %v5228 = vpop.f32.mrf.mxu0
    %v5229 = vpop.f32.mrf.mxu0
    %5230 = vdwg.mxu0
    %5231 = vmatprep.subr.bf16.mxu0 %v5027
    %5232 = vmatpush1.bf16.msra.mxu0 %v5026
    %5233 = vmatprep.subr.bf16.mxu0 %v5023
    %5234 = vmatpush1.bf16.msra.mxu0 %v5022
    %5235 = vmatprep.subr.bf16.mxu0 %v5019
    %5236 = vmatpush1.bf16.msra.mxu0 %v5018
    %5237 = vmatprep.subr.bf16.mxu0 %v5015
    %5238 = vmatpush1.bf16.msra.mxu0 %v5014
    %5239 = vmatprep.subr.bf16.mxu0 %v5011
    %5240 = vmatpush1.bf16.msra.mxu0 %v5010
    %5241 = vmatprep.subr.bf16.mxu0 %v5007
    %5242 = vmatpush1.bf16.msra.mxu0 %v5006
    %5243 = vmatprep.subr.bf16.mxu0 %v5003
    %5244 = vmatpush1.bf16.msra.mxu0 %v5002
    %5245 = vmatprep.subr.bf16.mxu0 %v4999
    %5246 = vmatpush1.bf16.msra.mxu0 %v4998
    %5247 = vmatprep.subr.bf16.mxu0 %v5059
    %5248 = vmatpush2.bf16.msra.mxu0 %v5058
    %5249 = vmatprep.subr.bf16.mxu0 %v5055
    %5250 = vmatpush2.bf16.msra.mxu0 %v5054
    %5251 = vmatprep.subr.bf16.mxu0 %v5051
    %5252 = vmatpush2.bf16.msra.mxu0 %v5050
    %5253 = vmatprep.subr.bf16.mxu0 %v5047
    %5254 = vmatpush2.bf16.msra.mxu0 %v5046
    %5255 = vmatprep.subr.bf16.mxu0 %v5043
    %5256 = vmatpush2.bf16.msra.mxu0 %v5042
    %5257 = vmatprep.subr.bf16.mxu0 %v5039
    %5258 = vmatpush2.bf16.msra.mxu0 %v5038
    %5259 = vmatprep.subr.bf16.mxu0 %v5035
    %5260 = vmatpush2.bf16.msra.mxu0 %v5034
    %5261 = vmatprep.subr.bf16.mxu0 %v5031
    %5262 = vmatpush2.bf16.msra.mxu0 %v5030
    %5263 = vmatprep.mubr.bf16.mxu0 %v4399
    %5264 = vmatmul.mubr.bf16.gmra.mxu0 %v4398
    %v5265 = vpop.f32.mrf.mxu0
    %v5266 = vadd.f32 %v5225, %v5265
    %v5267 = vpop.f32.mrf.mxu0
    %v5268 = vadd.f32 %v5227, %v5267
    %v5269 = vpop.f32.mrf.mxu0
    %v5270 = vpop.f32.mrf.mxu0
    %5271 = vdwg.mxu0
    %5272 = vmatprep.subr.bf16.mxu0 %v4965
    %5273 = vmatpush1.bf16.msra.mxu0 %v4964
    %5274 = vmatprep.subr.bf16.mxu0 %v4961
    %5275 = vmatpush1.bf16.msra.mxu0 %v4960
    %5276 = vmatprep.subr.bf16.mxu0 %v4957
    %5277 = vmatpush1.bf16.msra.mxu0 %v4956
    %5278 = vmatprep.subr.bf16.mxu0 %v4953
    %5279 = vmatpush1.bf16.msra.mxu0 %v4952
    %5280 = vmatprep.subr.bf16.mxu0 %v4949
    %5281 = vmatpush1.bf16.msra.mxu0 %v4948
    %5282 = vmatprep.subr.bf16.mxu0 %v4945
    %5283 = vmatpush1.bf16.msra.mxu0 %v4944
    %5284 = vmatprep.subr.bf16.mxu0 %v4941
    %5285 = vmatpush1.bf16.msra.mxu0 %v4940
    %5286 = vmatprep.subr.bf16.mxu0 %v4937
    %5287 = vmatpush1.bf16.msra.mxu0 %v4936
    %5288 = vmatprep.subr.bf16.mxu0 %v4997
    %5289 = vmatpush2.bf16.msra.mxu0 %v4996
    %5290 = vmatprep.subr.bf16.mxu0 %v4993
    %5291 = vmatpush2.bf16.msra.mxu0 %v4992
    %5292 = vmatprep.subr.bf16.mxu0 %v4989
    %5293 = vmatpush2.bf16.msra.mxu0 %v4988
    %5294 = vmatprep.subr.bf16.mxu0 %v4985
    %5295 = vmatpush2.bf16.msra.mxu0 %v4984
    %5296 = vmatprep.subr.bf16.mxu0 %v4981
    %5297 = vmatpush2.bf16.msra.mxu0 %v4980
    %5298 = vmatprep.subr.bf16.mxu0 %v4977
    %5299 = vmatpush2.bf16.msra.mxu0 %v4976
    %5300 = vmatprep.subr.bf16.mxu0 %v4973
    %5301 = vmatpush2.bf16.msra.mxu0 %v4972
    %5302 = vmatprep.subr.bf16.mxu0 %v4969
    %5303 = vmatpush2.bf16.msra.mxu0 %v4968
    %5304 = vmatprep.mubr.bf16.mxu0 %v4397
    %5305 = vmatmul.mubr.bf16.gmra.mxu0 %v4396
    %v5306 = vpop.f32.mrf.mxu0
    %v5307 = vadd.f32 %v4541, %v5306
    %v5308 = vpop.f32.mrf.mxu0
    %v5309 = vadd.f32 %v4545, %v5308
    %v5310 = vpop.f32.mrf.mxu0
    %v5311 = vpop.f32.mrf.mxu0
    %5312 = vdwg.mxu0
    %5313 = vmatprep.subr.bf16.mxu0 %v5029
    %5314 = vmatpush1.bf16.msra.mxu0 %v5028
    %5315 = vmatprep.subr.bf16.mxu0 %v5025
    %5316 = vmatpush1.bf16.msra.mxu0 %v5024
    %5317 = vmatprep.subr.bf16.mxu0 %v5021
    %5318 = vmatpush1.bf16.msra.mxu0 %v5020
    %5319 = vmatprep.subr.bf16.mxu0 %v5017
    %5320 = vmatpush1.bf16.msra.mxu0 %v5016
    %5321 = vmatprep.subr.bf16.mxu0 %v5013
    %5322 = vmatpush1.bf16.msra.mxu0 %v5012
    %5323 = vmatprep.subr.bf16.mxu0 %v5009
    %5324 = vmatpush1.bf16.msra.mxu0 %v5008
    %5325 = vmatprep.subr.bf16.mxu0 %v5005
    %5326 = vmatpush1.bf16.msra.mxu0 %v5004
    %5327 = vmatprep.subr.bf16.mxu0 %v5001
    %5328 = vmatpush1.bf16.msra.mxu0 %v5000
    %5329 = vmatprep.subr.bf16.mxu0 %v5061
    %5330 = vmatpush2.bf16.msra.mxu0 %v5060
    %5331 = vmatprep.subr.bf16.mxu0 %v5057
    %5332 = vmatpush2.bf16.msra.mxu0 %v5056
    %5333 = vmatprep.subr.bf16.mxu0 %v5053
    %5334 = vmatpush2.bf16.msra.mxu0 %v5052
    %5335 = vmatprep.subr.bf16.mxu0 %v5049
    %5336 = vmatpush2.bf16.msra.mxu0 %v5048
    %5337 = vmatprep.subr.bf16.mxu0 %v5045
    %5338 = vmatpush2.bf16.msra.mxu0 %v5044
    %5339 = vmatprep.subr.bf16.mxu0 %v5041
    %5340 = vmatpush2.bf16.msra.mxu0 %v5040
    %5341 = vmatprep.subr.bf16.mxu0 %v5037
    %5342 = vmatpush2.bf16.msra.mxu0 %v5036
    %5343 = vmatprep.subr.bf16.mxu0 %v5033
    %5344 = vmatpush2.bf16.msra.mxu0 %v5032
    %5345 = vmatprep.mubr.bf16.mxu0 %v4399
    %5346 = vmatmul.mubr.bf16.gmra.mxu0 %v4398
    %v5347 = vpop.f32.mrf.mxu0
    %v5348 = vadd.f32 %v5307, %v5347
    %v5349 = vpop.f32.mrf.mxu0
    %v5350 = vadd.f32 %v5309, %v5349
    %v5351 = vpop.f32.mrf.mxu0
    %v5352 = vpop.f32.mrf.mxu0
    %5353 = vdwg.mxu0
    %v5354 = vmax.f32 %v5266, 0.0
    %v5355 = vmax.f32 %v5268, 0.0
    %v5356 = vmax.f32 %v5348, 0.0
    %v5357 = vmax.f32 %v5350, 0.0
    %v5358 = vpack.c.bf16 %v5354, %v5354
    %v5359 = vpack.c.bf16 %v5355, %v5355
    %v5360 = vpack.c.bf16 %v5356, %v5356
    %v5361 = vpack.c.bf16 %v5357, %v5357
    %v5362 = vld [vmem:[#allocation10] sm:$0xf]
    %v5363 = vld [vmem:[#allocation10 + $0x4] sm:$0xf]
    %v5364 = vld [vmem:[#allocation10 + $0x8] sm:$0xf]
    %v5365 = vld [vmem:[#allocation10 + $0xc] sm:$0xf]
    %v5366 = vld [vmem:[#allocation10 + $0x10] sm:$0xf]
    %v5367 = vld [vmem:[#allocation10 + $0x14] sm:$0xf]
    %v5368 = vld [vmem:[#allocation10 + $0x18] sm:$0xf]
    %v5369 = vld [vmem:[#allocation10 + $0x1c] sm:$0xf]
    %v5370 = vld [vmem:[#allocation10 + $0x20] sm:$0xf]
    %v5371 = vld [vmem:[#allocation10 + $0x24] sm:$0xf]
    %v5372 = vld [vmem:[#allocation10 + $0x28] sm:$0xf]
    %v5373 = vld [vmem:[#allocation10 + $0x2c] sm:$0xf]
    %v5374 = vld [vmem:[#allocation10 + $0x30] sm:$0xf]
    %v5375 = vld [vmem:[#allocation10 + $0x34] sm:$0xf]
    %v5376 = vld [vmem:[#allocation10 + $0x38] sm:$0xf]
    %v5377 = vld [vmem:[#allocation10 + $0x3c] sm:$0xf]
    %v5378 = vld [vmem:[#allocation10 + $0x40] sm:$0xf]
    %v5379 = vld [vmem:[#allocation10 + $0x44] sm:$0xf]
    %v5380 = vld [vmem:[#allocation10 + $0x48] sm:$0xf]
    %v5381 = vld [vmem:[#allocation10 + $0x4c] sm:$0xf]
    %v5382 = vld [vmem:[#allocation10 + $0x50] sm:$0xf]
    %v5383 = vld [vmem:[#allocation10 + $0x54] sm:$0xf]
    %v5384 = vld [vmem:[#allocation10 + $0x58] sm:$0xf]
    %v5385 = vld [vmem:[#allocation10 + $0x5c] sm:$0xf]
    %v5386 = vld [vmem:[#allocation10 + $0x60] sm:$0xf]
    %v5387 = vld [vmem:[#allocation10 + $0x64] sm:$0xf]
    %v5388 = vld [vmem:[#allocation10 + $0x68] sm:$0xf]
    %v5389 = vld [vmem:[#allocation10 + $0x6c] sm:$0xf]
    %v5390 = vld [vmem:[#allocation10 + $0x70] sm:$0xf]
    %v5391 = vld [vmem:[#allocation10 + $0x74] sm:$0xf]
    %v5392 = vld [vmem:[#allocation10 + $0x78] sm:$0xf]
    %v5393 = vld [vmem:[#allocation10 + $0x7c] sm:$0xf]
    %v5394 = vld [vmem:[#allocation10 + $0x80] sm:$0xf]
    %v5395 = vld [vmem:[#allocation10 + $0x84] sm:$0xf]
    %v5396 = vld [vmem:[#allocation10 + $0x88] sm:$0xf]
    %v5397 = vld [vmem:[#allocation10 + $0x8c] sm:$0xf]
    %v5398 = vld [vmem:[#allocation10 + $0x90] sm:$0xf]
    %v5399 = vld [vmem:[#allocation10 + $0x94] sm:$0xf]
    %v5400 = vld [vmem:[#allocation10 + $0x98] sm:$0xf]
    %v5401 = vld [vmem:[#allocation10 + $0x9c] sm:$0xf]
    %v5402 = vld [vmem:[#allocation10 + $0xa0] sm:$0xf]
    %v5403 = vld [vmem:[#allocation10 + $0xa4] sm:$0xf]
    %v5404 = vld [vmem:[#allocation10 + $0xa8] sm:$0xf]
    %v5405 = vld [vmem:[#allocation10 + $0xac] sm:$0xf]
    %v5406 = vld [vmem:[#allocation10 + $0xb0] sm:$0xf]
    %v5407 = vld [vmem:[#allocation10 + $0xb4] sm:$0xf]
    %v5408 = vld [vmem:[#allocation10 + $0xb8] sm:$0xf]
    %v5409 = vld [vmem:[#allocation10 + $0xbc] sm:$0xf]
    %v5410 = vld [vmem:[#allocation10 + $0xc0] sm:$0xf]
    %v5411 = vld [vmem:[#allocation10 + $0xc4] sm:$0xf]
    %v5412 = vld [vmem:[#allocation10 + $0xc8] sm:$0xf]
    %v5413 = vld [vmem:[#allocation10 + $0xcc] sm:$0xf]
    %v5414 = vld [vmem:[#allocation10 + $0xd0] sm:$0xf]
    %v5415 = vld [vmem:[#allocation10 + $0xd4] sm:$0xf]
    %v5416 = vld [vmem:[#allocation10 + $0xd8] sm:$0xf]
    %v5417 = vld [vmem:[#allocation10 + $0xdc] sm:$0xf]
    %v5418 = vld [vmem:[#allocation10 + $0xe0] sm:$0xf]
    %v5419 = vld [vmem:[#allocation10 + $0xe4] sm:$0xf]
    %v5420 = vld [vmem:[#allocation10 + $0xe8] sm:$0xf]
    %v5421 = vld [vmem:[#allocation10 + $0xec] sm:$0xf]
    %v5422 = vld [vmem:[#allocation10 + $0xf0] sm:$0xf]
    %v5423 = vld [vmem:[#allocation10 + $0xf4] sm:$0xf]
    %v5424 = vld [vmem:[#allocation10 + $0xf8] sm:$0xf]
    %v5425 = vld [vmem:[#allocation10 + $0xfc] sm:$0xf]
    %v5426 = vld [vmem:[#allocation11] sm:$0x1]
    %v5428 = vlaneseq
    %v5429 = vshrl.u32 %v5428, 7
    %v5430 = vsub.s32 0, %v5429
    %v5431 = vrot.slane %v5426, %v5430
    %v5497 = vunpack.c.l.b16 %v5362
    %v5498 = vunpack.c.l.b16 %v5363
    %v5499 = vunpack.c.l.b16 %v5364
    %v5500 = vunpack.c.l.b16 %v5365
    %v5501 = vunpack.c.l.b16 %v5366
    %v5502 = vunpack.c.l.b16 %v5367
    %v5503 = vunpack.c.l.b16 %v5368
    %v5504 = vunpack.c.l.b16 %v5369
    %v5505 = vunpack.c.l.b16 %v5370
    %v5506 = vunpack.c.l.b16 %v5371
    %v5507 = vunpack.c.l.b16 %v5372
    %v5508 = vunpack.c.l.b16 %v5373
    %v5509 = vunpack.c.l.b16 %v5374
    %v5510 = vunpack.c.l.b16 %v5375
    %v5511 = vunpack.c.l.b16 %v5376
    %v5512 = vunpack.c.l.b16 %v5377
    %v5513 = vunpack.c.l.b16 %v5378
    %v5514 = vunpack.c.l.b16 %v5379
    %v5515 = vunpack.c.l.b16 %v5380
    %v5516 = vunpack.c.l.b16 %v5381
    %v5517 = vunpack.c.l.b16 %v5382
    %v5518 = vunpack.c.l.b16 %v5383
    %v5519 = vunpack.c.l.b16 %v5384
    %v5520 = vunpack.c.l.b16 %v5385
    %v5521 = vunpack.c.l.b16 %v5386
    %v5522 = vunpack.c.l.b16 %v5387
    %v5523 = vunpack.c.l.b16 %v5388
    %v5524 = vunpack.c.l.b16 %v5389
    %v5525 = vunpack.c.l.b16 %v5390
    %v5526 = vunpack.c.l.b16 %v5391
    %v5527 = vunpack.c.l.b16 %v5392
    %v5528 = vunpack.c.l.b16 %v5393
    %v5529 = vunpack.c.l.b16 %v5394
    %v5530 = vunpack.c.l.b16 %v5395
    %v5531 = vunpack.c.l.b16 %v5396
    %v5532 = vunpack.c.l.b16 %v5397
    %v5533 = vunpack.c.l.b16 %v5398
    %v5534 = vunpack.c.l.b16 %v5399
    %v5535 = vunpack.c.l.b16 %v5400
    %v5536 = vunpack.c.l.b16 %v5401
    %v5537 = vunpack.c.l.b16 %v5402
    %v5538 = vunpack.c.l.b16 %v5403
    %v5539 = vunpack.c.l.b16 %v5404
    %v5540 = vunpack.c.l.b16 %v5405
    %v5541 = vunpack.c.l.b16 %v5406
    %v5542 = vunpack.c.l.b16 %v5407
    %v5543 = vunpack.c.l.b16 %v5408
    %v5544 = vunpack.c.l.b16 %v5409
    %v5545 = vunpack.c.l.b16 %v5410
    %v5546 = vunpack.c.l.b16 %v5411
    %v5547 = vunpack.c.l.b16 %v5412
    %v5548 = vunpack.c.l.b16 %v5413
    %v5549 = vunpack.c.l.b16 %v5414
    %v5550 = vunpack.c.l.b16 %v5415
    %v5551 = vunpack.c.l.b16 %v5416
    %v5552 = vunpack.c.l.b16 %v5417
    %v5553 = vunpack.c.l.b16 %v5418
    %v5554 = vunpack.c.l.b16 %v5419
    %v5555 = vunpack.c.l.b16 %v5420
    %v5556 = vunpack.c.l.b16 %v5421
    %v5557 = vunpack.c.l.b16 %v5422
    %v5558 = vunpack.c.l.b16 %v5423
    %v5559 = vunpack.c.l.b16 %v5424
    %v5560 = vunpack.c.l.b16 %v5425
    %v5561 = vpack.c.b16 %v5498, %v5497
    %v5562 = vpack.c.b16 %v5500, %v5499
    %v5563 = vpack.c.b16 %v5502, %v5501
    %v5564 = vpack.c.b16 %v5504, %v5503
    %v5565 = vpack.c.b16 %v5506, %v5505
    %v5566 = vpack.c.b16 %v5508, %v5507
    %v5567 = vpack.c.b16 %v5510, %v5509
    %v5568 = vpack.c.b16 %v5512, %v5511
    %v5569 = vpack.c.b16 %v5514, %v5513
    %v5570 = vpack.c.b16 %v5516, %v5515
    %v5571 = vpack.c.b16 %v5518, %v5517
    %v5572 = vpack.c.b16 %v5520, %v5519
    %v5573 = vpack.c.b16 %v5522, %v5521
    %v5574 = vpack.c.b16 %v5524, %v5523
    %v5575 = vpack.c.b16 %v5526, %v5525
    %v5576 = vpack.c.b16 %v5528, %v5527
    %v5577 = vpack.c.b16 %v5530, %v5529
    %v5578 = vpack.c.b16 %v5532, %v5531
    %v5579 = vpack.c.b16 %v5534, %v5533
    %v5580 = vpack.c.b16 %v5536, %v5535
    %v5581 = vpack.c.b16 %v5538, %v5537
    %v5582 = vpack.c.b16 %v5540, %v5539
    %v5583 = vpack.c.b16 %v5542, %v5541
    %v5584 = vpack.c.b16 %v5544, %v5543
    %v5585 = vpack.c.b16 %v5546, %v5545
    %v5586 = vpack.c.b16 %v5548, %v5547
    %v5587 = vpack.c.b16 %v5550, %v5549
    %v5588 = vpack.c.b16 %v5552, %v5551
    %v5589 = vpack.c.b16 %v5554, %v5553
    %v5590 = vpack.c.b16 %v5556, %v5555
    %v5591 = vpack.c.b16 %v5558, %v5557
    %v5592 = vpack.c.b16 %v5560, %v5559
    %5625 = vmatprep.subr.bf16.mxu0 0
    %5626 = vmatpush1.bf16.msra.mxu0 %v5568
    %5627 = vmatprep.subr.bf16.mxu0 0
    %5628 = vmatpush1.bf16.msra.mxu0 %v5567
    %5629 = vmatprep.subr.bf16.mxu0 0
    %5630 = vmatpush1.bf16.msra.mxu0 %v5566
    %5631 = vmatprep.subr.bf16.mxu0 0
    %5632 = vmatpush1.bf16.msra.mxu0 %v5565
    %5633 = vmatprep.subr.bf16.mxu0 0
    %5634 = vmatpush1.bf16.msra.mxu0 %v5564
    %5635 = vmatprep.subr.bf16.mxu0 0
    %5636 = vmatpush1.bf16.msra.mxu0 %v5563
    %5637 = vmatprep.subr.bf16.mxu0 0
    %5638 = vmatpush1.bf16.msra.mxu0 %v5562
    %5639 = vmatprep.subr.bf16.mxu0 0
    %5640 = vmatpush1.bf16.msra.mxu0 %v5561
    %5641 = vmatprep.subr.bf16.mxu0 0
    %5642 = vmatpush2.bf16.msra.mxu0 %v5576
    %5643 = vmatprep.subr.bf16.mxu0 0
    %5644 = vmatpush2.bf16.msra.mxu0 %v5575
    %5645 = vmatprep.subr.bf16.mxu0 0
    %5646 = vmatpush2.bf16.msra.mxu0 %v5574
    %5647 = vmatprep.subr.bf16.mxu0 0
    %5648 = vmatpush2.bf16.msra.mxu0 %v5573
    %5649 = vmatprep.subr.bf16.mxu0 0
    %5650 = vmatpush2.bf16.msra.mxu0 %v5572
    %5651 = vmatprep.subr.bf16.mxu0 0
    %5652 = vmatpush2.bf16.msra.mxu0 %v5571
    %5653 = vmatprep.subr.bf16.mxu0 0
    %5654 = vmatpush2.bf16.msra.mxu0 %v5570
    %5655 = vmatprep.subr.bf16.mxu0 0
    %5656 = vmatpush2.bf16.msra.mxu0 %v5569
    %5657 = vmatprep.mubr.bf16.mxu0 %v5359
    %5658 = vmatmul.mubr.bf16.gmra.mxu0 %v5358
    %v5659 = vpop.f32.mrf.mxu0
    %v5660 = vadd.f32 %v5431, %v5659
    %v5661 = vpop.f32.mrf.mxu0
    %v5662 = vpop.f32.mrf.mxu0
    %v5663 = vpop.f32.mrf.mxu0
    %5664 = vdwg.mxu0
    %5665 = vmatprep.subr.bf16.mxu0 0
    %5666 = vmatpush1.bf16.msra.mxu0 %v5584
    %5667 = vmatprep.subr.bf16.mxu0 0
    %5668 = vmatpush1.bf16.msra.mxu0 %v5583
    %5669 = vmatprep.subr.bf16.mxu0 0
    %5670 = vmatpush1.bf16.msra.mxu0 %v5582
    %5671 = vmatprep.subr.bf16.mxu0 0
    %5672 = vmatpush1.bf16.msra.mxu0 %v5581
    %5673 = vmatprep.subr.bf16.mxu0 0
    %5674 = vmatpush1.bf16.msra.mxu0 %v5580
    %5675 = vmatprep.subr.bf16.mxu0 0
    %5676 = vmatpush1.bf16.msra.mxu0 %v5579
    %5677 = vmatprep.subr.bf16.mxu0 0
    %5678 = vmatpush1.bf16.msra.mxu0 %v5578
    %5679 = vmatprep.subr.bf16.mxu0 0
    %5680 = vmatpush1.bf16.msra.mxu0 %v5577
    %5681 = vmatprep.subr.bf16.mxu0 0
    %5682 = vmatpush2.bf16.msra.mxu0 %v5592
    %5683 = vmatprep.subr.bf16.mxu0 0
    %5684 = vmatpush2.bf16.msra.mxu0 %v5591
    %5685 = vmatprep.subr.bf16.mxu0 0
    %5686 = vmatpush2.bf16.msra.mxu0 %v5590
    %5687 = vmatprep.subr.bf16.mxu0 0
    %5688 = vmatpush2.bf16.msra.mxu0 %v5589
    %5689 = vmatprep.subr.bf16.mxu0 0
    %5690 = vmatpush2.bf16.msra.mxu0 %v5588
    %5691 = vmatprep.subr.bf16.mxu0 0
    %5692 = vmatpush2.bf16.msra.mxu0 %v5587
    %5693 = vmatprep.subr.bf16.mxu0 0
    %5694 = vmatpush2.bf16.msra.mxu0 %v5586
    %5695 = vmatprep.subr.bf16.mxu0 0
    %5696 = vmatpush2.bf16.msra.mxu0 %v5585
    %5697 = vmatprep.mubr.bf16.mxu0 %v5361
    %5698 = vmatmul.mubr.bf16.gmra.mxu0 %v5360
    %v5699 = vpop.f32.mrf.mxu0
    %v5700 = vadd.f32 %v5660, %v5699
    %v5701 = vpop.f32.mrf.mxu0
    %v5702 = vpop.f32.mrf.mxu0
    %v5703 = vpop.f32.mrf.mxu0
    %5704 = vdwg.mxu0
    %5705 = vst [vmem:[#allocation13] sm:$0xff] %v5700
    // Predicated region
    $region54: #{neural_network_forward.1} parent=1 // pred_check
      _
    $region55: #{neural_network_forward.1} parent=1 // pred_check_branch
      %5707 = sbr.rel (0) target = $region57
    $region56: #{neural_network_forward.1} parent=1 // pred_region
      %s5709 = ssub.s32 128, 128
      %5710 = vsyncadd [#allocation4], %s5709
      %s5712 = sshll.u32 [#allocation13], 4
      %s5713 = int_to_ptr.vmem [resolvable:$true] %s5712
      %5715 = dma.vmem_to_hbm [thread:$0]  %s5713, 128, %s7, [#allocation4]
    $region57: #{neural_network_forward.1} parent=1 // pred_fallthru
      _
    // Predicated region
    $region58: #{neural_network_forward.1} parent=1 // pred_check
      _
    $region59: #{neural_network_forward.1} parent=1 // pred_check_branch
      %5717 = sbr.rel (0) target = $region61
    $region60: #{neural_network_forward.1} parent=1 // pred_region
      %5718 = dma.done [#allocation4], 128
    $region61: #{neural_network_forward.1} parent=1 // pred_fallthru
      _
    %5719 = vsyncpa [#allocation3], 1
    %5720 = vsyncpa [#allocation6], 1
    %5721 = vsyncpa [#allocation9], 1
    %5722 = vsyncpa [#allocation12], 1
    %5723 = vsyncpa [#allocation4], 1

</llo_original>
